<compile_context>
chip_gen: v5e
topology: v5e:2x2
jax: 0.10.0
libtpu: 0.0.40
codegen_flags: <defaults>
</compile_context>

<pallas_src>
import numpy as np
import jax
import jax.numpy as jnp
from jax.experimental import pallas as pl
from jax.experimental.pallas import tpu as pltpu

# ----- "args" (small synthetic config consistent with the module) -----------
N_CLASSES  = 4
LATENT_DIM = 8
CHANNELS   = 1
IMG_SIZE   = 8
IMG_SHAPE  = (CHANNELS, IMG_SIZE, IMG_SIZE)
IMG_PROD   = int(np.prod(IMG_SHAPE))          # 64
D_IN       = LATENT_DIM + N_CLASSES           # 12
BN_EPS     = 0.8                              # nn.BatchNorm1d(out_feat, 0.8) -> eps=0.8

H1, H2, H3, H4 = 128, 256, 512, 1024

# Static offsets into the packed f32 slabs (all 128-aligned).
B1_OFF = 0
B2_OFF = H1                     # 128
B3_OFF = H1 + H2                # 384
B4_OFF = H1 + H2 + H3           # 896
B5_OFF = H1 + H2 + H3 + H4      # 1920
BIAS_TOT = B5_OFF + IMG_PROD    # 1984

G2_OFF = 0
G3_OFF = H2                     # 256
G4_OFF = H2 + H3                # 768
BN_TOT = H2 + H3 + H4           # 1792


# ----- Pallas kernel: embedding + full MLP for one batch group --------------
def generator_kernel(noise_ref, lbl_ref, emb_ref,
                     w1e_ref, w1n_ref, w2_ref, w3_ref, w4_ref, w5_ref,
                     bias_ref, gamma_ref, beta_ref,
                     o_ref):
    B = noise_ref.shape[0]

    def leaky_relu(x):
        return jnp.where(x > 0, x, 0.2 * x)

    def linear(h_f32, w_ref, boff, width):
        # bf16 operands into the MXU, f32 accumulation; (1, width) bias add
        # broadcasts on the VPU in f32.
        acc = jnp.dot(h_f32.astype(jnp.bfloat16), w_ref[...],
                      preferred_element_type=jnp.float32)
        return acc + bias_ref[:, boff:boff + width]

    def batchnorm_train(x, goff, width):
        # PyTorch BatchNorm1d in training mode: per-group mean, biased var.
        mean = jnp.mean(x, axis=0, keepdims=True)
        var = jnp.mean((x - mean) ** 2, axis=0, keepdims=True)
        xn = (x - mean) * jax.lax.rsqrt(var + BN_EPS)
        return (xn * gamma_ref[:, goff:goff + width]
                + beta_ref[:, goff:goff + width])

    # --- fused embedding lookup: one-hot(labels) @ emb_table (exact gather) ---
    lbl = lbl_ref[...]                                               # (B, 1) int32
    classes = jax.lax.broadcasted_iota(jnp.int32, (B, N_CLASSES), 1)  # (B, C)
    onehot = (lbl == classes).astype(jnp.float32)                    # (B, C)
    emb = jnp.dot(onehot, emb_ref[...],
                  preferred_element_type=jnp.float32)                # (B, C) f32

    noise = noise_ref[...]                                           # (B, LATENT) f32

    # --- layer 1 (no BN): Linear(D_IN, 128) split across the concat boundary ---
    h = (jnp.dot(emb.astype(jnp.bfloat16), w1e_ref[...],
                 preferred_element_type=jnp.float32)
         + jnp.dot(noise.astype(jnp.bfloat16), w1n_ref[...],
                   preferred_element_type=jnp.float32)
         + bias_ref[:, B1_OFF:B1_OFF + H1])
    h = leaky_relu(h)                                                # (B, 128)

    h = leaky_relu(batchnorm_train(linear(h, w2_ref, B2_OFF, H2), G2_OFF, H2))  # (B, 256)
    h = leaky_relu(batchnorm_train(linear(h, w3_ref, B3_OFF, H3), G3_OFF, H3))  # (B, 512)
    h = leaky_relu(batchnorm_train(linear(h, w4_ref, B4_OFF, H4), G4_OFF, H4))  # (B, 1024)

    out = jnp.tanh(linear(h, w5_ref, B5_OFF, IMG_PROD))              # (B, 64)
    o_ref[...] = out.astype(o_ref.dtype)


# ----- wrapper ----------------------------------------------------------------
@jax.jit
def generator_forward(noise, labels, params):
    """noise: (G, B, LATENT_DIM) f32, labels: (G, B) int32.

    Each of the G groups is an independent Generator forward pass of batch B
    (BatchNorm statistics are computed per group).  Returns (G, B, C, H, W).
    """
    G, B, _ = noise.shape
    labels3 = labels.reshape(G, B, 1).astype(jnp.int32)

    def const_spec(shape):
        return pl.BlockSpec(shape, lambda g, _s=shape: (0,) * len(_s))

    in_specs = [
        pl.BlockSpec((None, B, LATENT_DIM), lambda g: (g, 0, 0)),   # noise (per group)
        pl.BlockSpec((None, B, 1),          lambda g: (g, 0, 0)),   # labels (per group)
        const_spec((N_CLASSES, N_CLASSES)),                         # emb table
        const_spec((N_CLASSES, H1)),                                # w1e (emb rows)
        const_spec((LATENT_DIM, H1)),                               # w1n (noise rows)
        const_spec((H1, H2)),
        const_spec((H2, H3)),
        const_spec((H3, H4)),
        const_spec((H4, IMG_PROD)),
        const_spec((1, BIAS_TOT)),                                  # packed biases
        const_spec((1, BN_TOT)),                                    # packed gammas
        const_spec((1, BN_TOT)),                                    # packed betas
    ]
    out_specs = pl.BlockSpec((None, B, IMG_PROD), lambda g: (g, 0, 0))

    args = (noise, labels3, params["emb"],
            params["w1e"], params["w1n"],
            params["w2"], params["w3"], params["w4"], params["w5"],
            params["bias"], params["gamma"], params["beta"])

    # Advisory cost estimate for XLA's scheduler.
    param_bytes = sum(int(np.prod(a.shape)) * a.dtype.itemsize for a in args[2:])
    io_bytes = (int(np.prod(noise.shape)) * 4 + int(np.prod(labels3.shape)) * 4
                + G * B * IMG_PROD * 4)
    flops = 2 * G * B * (N_CLASSES * N_CLASSES + D_IN * H1 + H1 * H2
                         + H2 * H3 + H3 * H4 + H4 * IMG_PROD)
    transcendentals = G * (B * IMG_PROD + (H2 + H3 + H4))

    flat = pl.pallas_call(
        generator_kernel,
        out_shape=jax.ShapeDtypeStruct((G, B, IMG_PROD), jnp.float32),
        grid=(G,),
        in_specs=in_specs,
        out_specs=out_specs,
        compiler_params=pltpu.CompilerParams(
            dimension_semantics=("parallel",),
            vmem_limit_bytes=8 * 1024 * 1024),
        cost_estimate=pl.CostEstimate(flops=flops,
                                      transcendentals=transcendentals,
                                      bytes_accessed=param_bytes + io_bytes),
    )(*args)

    return flat.reshape(G, B, *IMG_SHAPE)


# ----- deterministic parameter init ------------------------------------------
def init_params(key):
    ks = jax.random.split(key, 11)

    def lin(kw, kb, din, dout):
        bound = 1.0 / np.sqrt(din)
        w = jax.random.uniform(kw, (din, dout), jnp.float32, -bound, bound)
        b = jax.random.uniform(kb, (dout,), jnp.float32, -bound, bound)
        # Weights live in HBM as bf16 (halves weight DMA bytes); biases stay f32.
        return w.astype(jnp.bfloat16), b

    p = {}
    p["emb"] = jax.random.normal(ks[0], (N_CLASSES, N_CLASSES), jnp.float32)

    w1, b1 = lin(ks[1], ks[2], D_IN, H1)        # Linear(12, 128)
    p["w1e"] = w1[:N_CLASSES]                   # rows multiplying the embedding
    p["w1n"] = w1[N_CLASSES:]                   # rows multiplying the noise
    p["w2"], b2 = lin(ks[3], ks[4], H1, H2)
    p["w3"], b3 = lin(ks[5], ks[6], H2, H3)
    p["w4"], b4 = lin(ks[7], ks[8], H3, H4)
    p["w5"], b5 = lin(ks[9], ks[10], H4, IMG_PROD)   # no 128-column pad (rev-3)

    # Packed f32 slabs (static 128-aligned offsets inside the kernel).
    p["bias"] = jnp.concatenate([b1, b2, b3, b4, b5]).reshape(1, BIAS_TOT)
    # BatchNorm affine params (PyTorch default gamma=1, beta=0), f32.
    p["gamma"] = jnp.ones((1, BN_TOT), jnp.float32)
    p["beta"] = jnp.zeros((1, BN_TOT), jnp.float32)
    return p


# ----- pure-JAX reference (same bf16-weight numerics, per-group BN) -----------
def reference_forward(noise, labels, p):
    w1_full = jnp.concatenate([p["w1e"], p["w1n"]], axis=0)       # (12, 128) bf16
    b1 = p["bias"][:, B1_OFF:B1_OFF + H1]
    b2 = p["bias"][:, B2_OFF:B2_OFF + H2]
    b3 = p["bias"][:, B3_OFF:B3_OFF + H3]
    b4 = p["bias"][:, B4_OFF:B4_OFF + H4]
    b5 = p["bias"][:, B5_OFF:B5_OFF + IMG_PROD]
    g2, g3, g4 = (p["gamma"][:, G2_OFF:G2_OFF + H2],
                  p["gamma"][:, G3_OFF:G3_OFF + H3],
                  p["gamma"][:, G4_OFF:G4_OFF + H4])
    be2, be3, be4 = (p["beta"][:, G2_OFF:G2_OFF + H2],
                     p["beta"][:, G3_OFF:G3_OFF + H3],
                     p["beta"][:, G4_OFF:G4_OFF + H4])

    def lin(h, w, b):
        return jnp.dot(h.astype(jnp.bfloat16), w,
                       preferred_element_type=jnp.float32) + b

    def bn(x, g, be):
        m = x.mean(0, keepdims=True)
        v = ((x - m) ** 2).mean(0, keepdims=True)
        return (x - m) * jax.lax.rsqrt(v + BN_EPS) * g + be

    lrelu = lambda x: jnp.where(x > 0, x, 0.2 * x)

    def one_group(nz, lb):
        emb = jnp.take(p["emb"], lb, axis=0)                      # (B, C)
        x = jnp.concatenate([emb, nz], axis=-1)                   # torch.cat((emb, noise), -1)
        h = lrelu(lin(x, w1_full, b1))
        h = lrelu(bn(lin(h, p["w2"], b2), g2, be2))
        h = lrelu(bn(lin(h, p["w3"], b3), g3, be3))
        h = lrelu(bn(lin(h, p["w4"], b4), g4, be4))
        return jnp.tanh(lin(h, p["w5"], b5))

    out = jax.vmap(one_group)(noise, labels)                      # (G, B, 64)
    return out.reshape(noise.shape[0], noise.shape[1], *IMG_SHAPE)


if __name__ == "__main__":
    key = jax.random.PRNGKey(0)
    kp, kn, kl = jax.random.split(key, 3)

    G, B = 2, 8            # G independent generator requests of batch B each
    params = init_params(kp)
    noise = jax.random.normal(kn, (G, B, LATENT_DIM), jnp.float32)
    labels = jax.random.randint(kl, (G, B), 0, N_CLASSES, jnp.int32)

    img = jax.block_until_ready(generator_forward(noise, labels, params))
    ref = jax.block_until_ready(reference_forward(noise, labels, params))

    assert img.shape == (G, B, *IMG_SHAPE)
    # bf16 weight path + split first matmul -> slightly looser tolerance than pure-f32.
    np.testing.assert_allclose(np.asarray(img), np.asarray(ref), atol=5e-3, rtol=5e-3)

    print("KERNEL_OK")
</pallas_src>

<mosaic_0001>
module attributes {stable_mosaic.version = 11 : i64} {
  func.func @generator_kernel(%arg0: i32, %arg1: memref<1x8x8xf32, #tpu.memory_space<vmem>>, %arg2: memref<1x8x1xi32, #tpu.memory_space<vmem>>, %arg3: memref<4x4xf32, #tpu.memory_space<vmem>>, %arg4: memref<4x128xbf16, #tpu.memory_space<vmem>>, %arg5: memref<8x128xbf16, #tpu.memory_space<vmem>>, %arg6: memref<128x256xbf16, #tpu.memory_space<vmem>>, %arg7: memref<256x512xbf16, #tpu.memory_space<vmem>>, %arg8: memref<512x1024xbf16, #tpu.memory_space<vmem>>, %arg9: memref<1024x64xbf16, #tpu.memory_space<vmem>>, %arg10: memref<1x1984xf32, #tpu.memory_space<vmem>>, %arg11: memref<1x1792xf32, #tpu.memory_space<vmem>>, %arg12: memref<1x1792xf32, #tpu.memory_space<vmem>>, %arg13: memref<1x8x64xf32, #tpu.memory_space<vmem>>) attributes {dimension_semantics = [#tpu.dimension_semantics<parallel>], iteration_bounds = array<i64: 2>, scalar_prefetch = 0 : i64, scratch_operands = 0 : i64, tpu.core_type = #tpu.core_type<tc>, window_params = [{transform_indices = @transform_0, window_bounds = array<i64: 1, 8, 8>}, {transform_indices = @transform_1, window_bounds = array<i64: 1, 8, 1>}, {pipeline_mode = #tpu.pipeline_mode<synchronous>, transform_indices = @transform_2, window_bounds = array<i64: 4, 4>}, {pipeline_mode = #tpu.pipeline_mode<synchronous>, transform_indices = @transform_3, window_bounds = array<i64: 4, 128>}, {pipeline_mode = #tpu.pipeline_mode<synchronous>, transform_indices = @transform_4, window_bounds = array<i64: 8, 128>}, {pipeline_mode = #tpu.pipeline_mode<synchronous>, transform_indices = @transform_5, window_bounds = array<i64: 128, 256>}, {pipeline_mode = #tpu.pipeline_mode<synchronous>, transform_indices = @transform_6, window_bounds = array<i64: 256, 512>}, {pipeline_mode = #tpu.pipeline_mode<synchronous>, transform_indices = @transform_7, window_bounds = array<i64: 512, 1024>}, {pipeline_mode = #tpu.pipeline_mode<synchronous>, transform_indices = @transform_8, window_bounds = array<i64: 1024, 64>}, {pipeline_mode = #tpu.pipeline_mode<synchronous>, transform_indices = @transform_9, window_bounds = array<i64: 1, 1984>}, {pipeline_mode = #tpu.pipeline_mode<synchronous>, transform_indices = @transform_10, window_bounds = array<i64: 1, 1792>}, {pipeline_mode = #tpu.pipeline_mode<synchronous>, transform_indices = @transform_11, window_bounds = array<i64: 1, 1792>}, {transform_indices = @transform_12, window_bounds = array<i64: 1, 8, 64>}]} {
    %c0 = arith.constant 0 : index
    %c0_0 = arith.constant 0 : index
    %c0_1 = arith.constant 0 : index
    %0 = vector.load %arg2[%c0, %c0_0, %c0_1] : memref<1x8x1xi32, #tpu.memory_space<vmem>>, vector<1x8x1xi32>
    %1 = vector.shape_cast %0 : vector<1x8x1xi32> to vector<8x1xi32>
    %2 = tpu.iota {dimensions = array<i32: 1>} : vector<8x4xi32>
    %3 = vector.broadcast %1 : vector<8x1xi32> to vector<8x4xi32>
    %4 = arith.cmpi eq, %3, %2 : vector<8x4xi32>
    %5 = arith.extui %4 : vector<8x4xi1> to vector<8x4xi32>
    %6 = arith.sitofp %5 : vector<8x4xi32> to vector<8x4xf32>
    %c0_2 = arith.constant 0 : index
    %c0_3 = arith.constant 0 : index
    %7 = vector.load %arg3[%c0_2, %c0_3] : memref<4x4xf32, #tpu.memory_space<vmem>>, vector<4x4xf32>
    %cst = arith.constant dense<0.000000e+00> : vector<8x4xf32>
    %8 = tpu.matmul %6, %7, %cst {dimension_numbers = #tpu.dot_dimension_numbers<[1], [0], [0], [1], [0, 0, 1, 1], [], []>} : vector<8x4xf32>, vector<4x4xf32>, vector<8x4xf32> -> vector<8x4xf32>
    %c0_4 = arith.constant 0 : index
    %c0_5 = arith.constant 0 : index
    %c0_6 = arith.constant 0 : index
    %9 = vector.load %arg1[%c0_4, %c0_5, %c0_6] : memref<1x8x8xf32, #tpu.memory_space<vmem>>, vector<1x8x8xf32>
    %10 = vector.shape_cast %9 : vector<1x8x8xf32> to vector<8x8xf32>
    %11 = arith.truncf %8 : vector<8x4xf32> to vector<8x4xbf16>
    %c0_7 = arith.constant 0 : index
    %c0_8 = arith.constant 0 : index
    %12 = vector.load %arg4[%c0_7, %c0_8] : memref<4x128xbf16, #tpu.memory_space<vmem>>, vector<4x128xbf16>
    %cst_9 = arith.constant dense<0.000000e+00> : vector<8x128xf32>
    %13 = tpu.matmul %11, %12, %cst_9 {dimension_numbers = #tpu.dot_dimension_numbers<[1], [0], [0], [1], [0, 0, 1, 1], [], []>} : vector<8x4xbf16>, vector<4x128xbf16>, vector<8x128xf32> -> vector<8x128xf32>
    %14 = arith.truncf %10 : vector<8x8xf32> to vector<8x8xbf16>
    %c0_10 = arith.constant 0 : index
    %c0_11 = arith.constant 0 : index
    %15 = vector.load %arg5[%c0_10, %c0_11] : memref<8x128xbf16, #tpu.memory_space<vmem>>, vector<8x128xbf16>
    %cst_12 = arith.constant dense<0.000000e+00> : vector<8x128xf32>
    %16 = tpu.matmul %14, %15, %cst_12 {dimension_numbers = #tpu.dot_dimension_numbers<[1], [0], [0], [1], [0, 0, 1, 1], [], []>} : vector<8x8xbf16>, vector<8x128xbf16>, vector<8x128xf32> -> vector<8x128xf32>
    %17 = arith.addf %13, %16 : vector<8x128xf32>
    %c0_13 = arith.constant 0 : index
    %c0_14 = arith.constant 0 : index
    %18 = vector.load %arg10[%c0_13, %c0_14] : memref<1x1984xf32, #tpu.memory_space<vmem>>, vector<1x128xf32>
    %19 = vector.broadcast %18 : vector<1x128xf32> to vector<8x128xf32>
    %20 = arith.addf %17, %19 : vector<8x128xf32>
    %cst_15 = arith.constant 0.000000e+00 : f32
    %21 = vector.broadcast %cst_15 : f32 to vector<8x128xf32>
    %22 = arith.cmpf ogt, %20, %21 : vector<8x128xf32>
    %cst_16 = arith.constant 2.000000e-01 : f32
    %23 = vector.broadcast %cst_16 : f32 to vector<8x128xf32>
    %24 = arith.mulf %23, %20 : vector<8x128xf32>
    %25 = arith.select %22, %20, %24 : vector<8x128xi1>, vector<8x128xf32>
    %26 = arith.truncf %25 : vector<8x128xf32> to vector<8x128xbf16>
    %c0_17 = arith.constant 0 : index
    %c0_18 = arith.constant 0 : index
    %27 = vector.load %arg6[%c0_17, %c0_18] : memref<128x256xbf16, #tpu.memory_space<vmem>>, vector<128x256xbf16>
    %cst_19 = arith.constant dense<0.000000e+00> : vector<8x256xf32>
    %28 = tpu.matmul %26, %27, %cst_19 {dimension_numbers = #tpu.dot_dimension_numbers<[1], [0], [0], [1], [0, 0, 1, 1], [], []>} : vector<8x128xbf16>, vector<128x256xbf16>, vector<8x256xf32> -> vector<8x256xf32>
    %c0_20 = arith.constant 0 : index
    %c128 = arith.constant 128 : index
    %29 = vector.load %arg10[%c0_20, %c128] : memref<1x1984xf32, #tpu.memory_space<vmem>>, vector<1x256xf32>
    %30 = vector.broadcast %29 : vector<1x256xf32> to vector<8x256xf32>
    %31 = arith.addf %28, %30 : vector<8x256xf32>
    %cst_21 = arith.constant dense<0.000000e+00> : vector<256xf32>
    %32 = vector.multi_reduction <add>, %31, %cst_21 [0] : vector<8x256xf32> to vector<256xf32>
    %33 = vector.shape_cast %32 : vector<256xf32> to vector<1x256xf32>
    %cst_22 = arith.constant 8.000000e+00 : f32
    %34 = vector.broadcast %cst_22 : f32 to vector<1x256xf32>
    %35 = arith.divf %33, %34 : vector<1x256xf32>
    %36 = vector.broadcast %35 : vector<1x256xf32> to vector<8x256xf32>
    %37 = arith.subf %31, %36 : vector<8x256xf32>
    %38 = arith.mulf %37, %37 : vector<8x256xf32>
    %cst_23 = arith.constant dense<0.000000e+00> : vector<256xf32>
    %39 = vector.multi_reduction <add>, %38, %cst_23 [0] : vector<8x256xf32> to vector<256xf32>
    %40 = vector.shape_cast %39 : vector<256xf32> to vector<1x256xf32>
    %cst_24 = arith.constant 8.000000e+00 : f32
    %41 = vector.broadcast %cst_24 : f32 to vector<1x256xf32>
    %42 = arith.divf %40, %41 : vector<1x256xf32>
    %43 = vector.broadcast %35 : vector<1x256xf32> to vector<8x256xf32>
    %44 = arith.subf %31, %43 : vector<8x256xf32>
    %cst_25 = arith.constant 8.000000e-01 : f32
    %45 = vector.broadcast %cst_25 : f32 to vector<1x256xf32>
    %46 = arith.addf %42, %45 : vector<1x256xf32>
    %47 = math.rsqrt %46 : vector<1x256xf32>
    %48 = vector.broadcast %47 : vector<1x256xf32> to vector<8x256xf32>
    %49 = arith.mulf %44, %48 : vector<8x256xf32>
    %c0_26 = arith.constant 0 : index
    %c0_27 = arith.constant 0 : index
    %50 = vector.load %arg11[%c0_26, %c0_27] : memref<1x1792xf32, #tpu.memory_space<vmem>>, vector<1x256xf32>
    %51 = vector.broadcast %50 : vector<1x256xf32> to vector<8x256xf32>
    %52 = arith.mulf %49, %51 : vector<8x256xf32>
    %c0_28 = arith.constant 0 : index
    %c0_29 = arith.constant 0 : index
    %53 = vector.load %arg12[%c0_28, %c0_29] : memref<1x1792xf32, #tpu.memory_space<vmem>>, vector<1x256xf32>
    %54 = vector.broadcast %53 : vector<1x256xf32> to vector<8x256xf32>
    %55 = arith.addf %52, %54 : vector<8x256xf32>
    %cst_30 = arith.constant 0.000000e+00 : f32
    %56 = vector.broadcast %cst_30 : f32 to vector<8x256xf32>
    %57 = arith.cmpf ogt, %55, %56 : vector<8x256xf32>
    %cst_31 = arith.constant 2.000000e-01 : f32
    %58 = vector.broadcast %cst_31 : f32 to vector<8x256xf32>
    %59 = arith.mulf %58, %55 : vector<8x256xf32>
    %60 = arith.select %57, %55, %59 : vector<8x256xi1>, vector<8x256xf32>
    %61 = arith.truncf %60 : vector<8x256xf32> to vector<8x256xbf16>
    %c0_32 = arith.constant 0 : index
    %c0_33 = arith.constant 0 : index
    %62 = vector.load %arg7[%c0_32, %c0_33] : memref<256x512xbf16, #tpu.memory_space<vmem>>, vector<256x512xbf16>
    %cst_34 = arith.constant dense<0.000000e+00> : vector<8x512xf32>
    %63 = tpu.matmul %61, %62, %cst_34 {dimension_numbers = #tpu.dot_dimension_numbers<[1], [0], [0], [1], [0, 0, 1, 1], [], []>} : vector<8x256xbf16>, vector<256x512xbf16>, vector<8x512xf32> -> vector<8x512xf32>
    %c0_35 = arith.constant 0 : index
    %c384 = arith.constant 384 : index
    %64 = vector.load %arg10[%c0_35, %c384] : memref<1x1984xf32, #tpu.memory_space<vmem>>, vector<1x512xf32>
    %65 = vector.broadcast %64 : vector<1x512xf32> to vector<8x512xf32>
    %66 = arith.addf %63, %65 : vector<8x512xf32>
    %cst_36 = arith.constant dense<0.000000e+00> : vector<512xf32>
    %67 = vector.multi_reduction <add>, %66, %cst_36 [0] : vector<8x512xf32> to vector<512xf32>
    %68 = vector.shape_cast %67 : vector<512xf32> to vector<1x512xf32>
    %cst_37 = arith.constant 8.000000e+00 : f32
    %69 = vector.broadcast %cst_37 : f32 to vector<1x512xf32>
    %70 = arith.divf %68, %69 : vector<1x512xf32>
    %71 = vector.broadcast %70 : vector<1x512xf32> to vector<8x512xf32>
    %72 = arith.subf %66, %71 : vector<8x512xf32>
    %73 = arith.mulf %72, %72 : vector<8x512xf32>
    %cst_38 = arith.constant dense<0.000000e+00> : vector<512xf32>
    %74 = vector.multi_reduction <add>, %73, %cst_38 [0] : vector<8x512xf32> to vector<512xf32>
    %75 = vector.shape_cast %74 : vector<512xf32> to vector<1x512xf32>
    %cst_39 = arith.constant 8.000000e+00 : f32
    %76 = vector.broadcast %cst_39 : f32 to vector<1x512xf32>
    %77 = arith.divf %75, %76 : vector<1x512xf32>
    %78 = vector.broadcast %70 : vector<1x512xf32> to vector<8x512xf32>
    %79 = arith.subf %66, %78 : vector<8x512xf32>
    %cst_40 = arith.constant 8.000000e-01 : f32
    %80 = vector.broadcast %cst_40 : f32 to vector<1x512xf32>
    %81 = arith.addf %77, %80 : vector<1x512xf32>
    %82 = math.rsqrt %81 : vector<1x512xf32>
    %83 = vector.broadcast %82 : vector<1x512xf32> to vector<8x512xf32>
    %84 = arith.mulf %79, %83 : vector<8x512xf32>
    %c0_41 = arith.constant 0 : index
    %c256 = arith.constant 256 : index
    %85 = vector.load %arg11[%c0_41, %c256] : memref<1x1792xf32, #tpu.memory_space<vmem>>, vector<1x512xf32>
    %86 = vector.broadcast %85 : vector<1x512xf32> to vector<8x512xf32>
    %87 = arith.mulf %84, %86 : vector<8x512xf32>
    %c0_42 = arith.constant 0 : index
    %c256_43 = arith.constant 256 : index
    %88 = vector.load %arg12[%c0_42, %c256_43] : memref<1x1792xf32, #tpu.memory_space<vmem>>, vector<1x512xf32>
    %89 = vector.broadcast %88 : vector<1x512xf32> to vector<8x512xf32>
    %90 = arith.addf %87, %89 : vector<8x512xf32>
    %cst_44 = arith.constant 0.000000e+00 : f32
    %91 = vector.broadcast %cst_44 : f32 to vector<8x512xf32>
    %92 = arith.cmpf ogt, %90, %91 : vector<8x512xf32>
    %cst_45 = arith.constant 2.000000e-01 : f32
    %93 = vector.broadcast %cst_45 : f32 to vector<8x512xf32>
    %94 = arith.mulf %93, %90 : vector<8x512xf32>
    %95 = arith.select %92, %90, %94 : vector<8x512xi1>, vector<8x512xf32>
    %96 = arith.truncf %95 : vector<8x512xf32> to vector<8x512xbf16>
    %c0_46 = arith.constant 0 : index
    %c0_47 = arith.constant 0 : index
    %97 = vector.load %arg8[%c0_46, %c0_47] : memref<512x1024xbf16, #tpu.memory_space<vmem>>, vector<512x1024xbf16>
    %cst_48 = arith.constant dense<0.000000e+00> : vector<8x1024xf32>
    %98 = tpu.matmul %96, %97, %cst_48 {dimension_numbers = #tpu.dot_dimension_numbers<[1], [0], [0], [1], [0, 0, 1, 1], [], []>} : vector<8x512xbf16>, vector<512x1024xbf16>, vector<8x1024xf32> -> vector<8x1024xf32>
    %c0_49 = arith.constant 0 : index
    %c896 = arith.constant 896 : index
    %99 = vector.load %arg10[%c0_49, %c896] : memref<1x1984xf32, #tpu.memory_space<vmem>>, vector<1x1024xf32>
    %100 = vector.broadcast %99 : vector<1x1024xf32> to vector<8x1024xf32>
    %101 = arith.addf %98, %100 : vector<8x1024xf32>
    %cst_50 = arith.constant dense<0.000000e+00> : vector<1024xf32>
    %102 = vector.multi_reduction <add>, %101, %cst_50 [0] : vector<8x1024xf32> to vector<1024xf32>
    %103 = vector.shape_cast %102 : vector<1024xf32> to vector<1x1024xf32>
    %cst_51 = arith.constant 8.000000e+00 : f32
    %104 = vector.broadcast %cst_51 : f32 to vector<1x1024xf32>
    %105 = arith.divf %103, %104 : vector<1x1024xf32>
    %106 = vector.broadcast %105 : vector<1x1024xf32> to vector<8x1024xf32>
    %107 = arith.subf %101, %106 : vector<8x1024xf32>
    %108 = arith.mulf %107, %107 : vector<8x1024xf32>
    %cst_52 = arith.constant dense<0.000000e+00> : vector<1024xf32>
    %109 = vector.multi_reduction <add>, %108, %cst_52 [0] : vector<8x1024xf32> to vector<1024xf32>
    %110 = vector.shape_cast %109 : vector<1024xf32> to vector<1x1024xf32>
    %cst_53 = arith.constant 8.000000e+00 : f32
    %111 = vector.broadcast %cst_53 : f32 to vector<1x1024xf32>
    %112 = arith.divf %110, %111 : vector<1x1024xf32>
    %113 = vector.broadcast %105 : vector<1x1024xf32> to vector<8x1024xf32>
    %114 = arith.subf %101, %113 : vector<8x1024xf32>
    %cst_54 = arith.constant 8.000000e-01 : f32
    %115 = vector.broadcast %cst_54 : f32 to vector<1x1024xf32>
    %116 = arith.addf %112, %115 : vector<1x1024xf32>
    %117 = math.rsqrt %116 : vector<1x1024xf32>
    %118 = vector.broadcast %117 : vector<1x1024xf32> to vector<8x1024xf32>
    %119 = arith.mulf %114, %118 : vector<8x1024xf32>
    %c0_55 = arith.constant 0 : index
    %c768 = arith.constant 768 : index
    %120 = vector.load %arg11[%c0_55, %c768] : memref<1x1792xf32, #tpu.memory_space<vmem>>, vector<1x1024xf32>
    %121 = vector.broadcast %120 : vector<1x1024xf32> to vector<8x1024xf32>
    %122 = arith.mulf %119, %121 : vector<8x1024xf32>
    %c0_56 = arith.constant 0 : index
    %c768_57 = arith.constant 768 : index
    %123 = vector.load %arg12[%c0_56, %c768_57] : memref<1x1792xf32, #tpu.memory_space<vmem>>, vector<1x1024xf32>
    %124 = vector.broadcast %123 : vector<1x1024xf32> to vector<8x1024xf32>
    %125 = arith.addf %122, %124 : vector<8x1024xf32>
    %cst_58 = arith.constant 0.000000e+00 : f32
    %126 = vector.broadcast %cst_58 : f32 to vector<8x1024xf32>
    %127 = arith.cmpf ogt, %125, %126 : vector<8x1024xf32>
    %cst_59 = arith.constant 2.000000e-01 : f32
    %128 = vector.broadcast %cst_59 : f32 to vector<8x1024xf32>
    %129 = arith.mulf %128, %125 : vector<8x1024xf32>
    %130 = arith.select %127, %125, %129 : vector<8x1024xi1>, vector<8x1024xf32>
    %131 = arith.truncf %130 : vector<8x1024xf32> to vector<8x1024xbf16>
    %c0_60 = arith.constant 0 : index
    %c0_61 = arith.constant 0 : index
    %132 = vector.load %arg9[%c0_60, %c0_61] : memref<1024x64xbf16, #tpu.memory_space<vmem>>, vector<1024x64xbf16>
    %cst_62 = arith.constant dense<0.000000e+00> : vector<8x64xf32>
    %133 = tpu.matmul %131, %132, %cst_62 {dimension_numbers = #tpu.dot_dimension_numbers<[1], [0], [0], [1], [0, 0, 1, 1], [], []>} : vector<8x1024xbf16>, vector<1024x64xbf16>, vector<8x64xf32> -> vector<8x64xf32>
    %c0_63 = arith.constant 0 : index
    %c1920 = arith.constant 1920 : index
    %134 = vector.load %arg10[%c0_63, %c1920] : memref<1x1984xf32, #tpu.memory_space<vmem>>, vector<1x64xf32>
    %135 = vector.broadcast %134 : vector<1x64xf32> to vector<8x64xf32>
    %136 = arith.addf %133, %135 : vector<8x64xf32>
    %137 = math.tanh %136 : vector<8x64xf32>
    %c0_64 = arith.constant 0 : index
    %c0_65 = arith.constant 0 : index
    %c0_66 = arith.constant 0 : index
    %138 = vector.load %arg13[%c0_64, %c0_65, %c0_66] : memref<1x8x64xf32, #tpu.memory_space<vmem>>, vector<1x8x64xf32>
    %139 = vector.shape_cast %138 : vector<1x8x64xf32> to vector<8x64xf32>
    %140 = vector.shape_cast %137 : vector<8x64xf32> to vector<1x8x64xf32>
    tpu.vector_store %arg13[%c0_64, %c0_65, %c0_66], %140 {strides = array<i32>} : memref<1x8x64xf32, #tpu.memory_space<vmem>>, vector<1x8x64xf32>,
    return
  }
  func.func @transform_0(%arg0: i32) -> (i32, i32, i32) {
    %c0_i32 = arith.constant 0 : i32
    %c0_i32_0 = arith.constant 0 : i32
    %c0_i32_1 = arith.constant 0 : i32
    return %arg0, %c0_i32, %c0_i32_0 : i32, i32, i32
  }
  func.func @transform_1(%arg0: i32) -> (i32, i32, i32) {
    %c0_i32 = arith.constant 0 : i32
    %c0_i32_0 = arith.constant 0 : i32
    %c0_i32_1 = arith.constant 0 : i32
    return %arg0, %c0_i32, %c0_i32_0 : i32, i32, i32
  }
  func.func @transform_2(%arg0: i32) -> (i32, i32) {
    %c0_i32 = arith.constant 0 : i32
    %c0_i32_0 = arith.constant 0 : i32
    %c0_i32_1 = arith.constant 0 : i32
    return %c0_i32, %c0_i32_0 : i32, i32
  }
  func.func @transform_3(%arg0: i32) -> (i32, i32) {
    %c0_i32 = arith.constant 0 : i32
    %c0_i32_0 = arith.constant 0 : i32
    %c0_i32_1 = arith.constant 0 : i32
    return %c0_i32, %c0_i32_0 : i32, i32
  }
  func.func @transform_4(%arg0: i32) -> (i32, i32) {
    %c0_i32 = arith.constant 0 : i32
    %c0_i32_0 = arith.constant 0 : i32
    %c0_i32_1 = arith.constant 0 : i32
    return %c0_i32, %c0_i32_0 : i32, i32
  }
  func.func @transform_5(%arg0: i32) -> (i32, i32) {
    %c0_i32 = arith.constant 0 : i32
    %c0_i32_0 = arith.constant 0 : i32
    %c0_i32_1 = arith.constant 0 : i32
    return %c0_i32, %c0_i32_0 : i32, i32
  }
  func.func @transform_6(%arg0: i32) -> (i32, i32) {
    %c0_i32 = arith.constant 0 : i32
    %c0_i32_0 = arith.constant 0 : i32
    %c0_i32_1 = arith.constant 0 : i32
    return %c0_i32, %c0_i32_0 : i32, i32
  }
  func.func @transform_7(%arg0: i32) -> (i32, i32) {
    %c0_i32 = arith.constant 0 : i32
    %c0_i32_0 = arith.constant 0 : i32
    %c0_i32_1 = arith.constant 0 : i32
    return %c0_i32, %c0_i32_0 : i32, i32
  }
  func.func @transform_8(%arg0: i32) -> (i32, i32) {
    %c0_i32 = arith.constant 0 : i32
    %c0_i32_0 = arith.constant 0 : i32
    %c0_i32_1 = arith.constant 0 : i32
    return %c0_i32, %c0_i32_0 : i32, i32
  }
  func.func @transform_9(%arg0: i32) -> (i32, i32) {
    %c0_i32 = arith.constant 0 : i32
    %c0_i32_0 = arith.constant 0 : i32
    %c0_i32_1 = arith.constant 0 : i32
    return %c0_i32, %c0_i32_0 : i32, i32
  }
  func.func @transform_10(%arg0: i32) -> (i32, i32) {
    %c0_i32 = arith.constant 0 : i32
    %c0_i32_0 = arith.constant 0 : i32
    %c0_i32_1 = arith.constant 0 : i32
    return %c0_i32, %c0_i32_0 : i32, i32
  }
  func.func @transform_11(%arg0: i32) -> (i32, i32) {
    %c0_i32 = arith.constant 0 : i32
    %c0_i32_0 = arith.constant 0 : i32
    %c0_i32_1 = arith.constant 0 : i32
    return %c0_i32, %c0_i32_0 : i32, i32
  }
  func.func @transform_12(%arg0: i32) -> (i32, i32, i32) {
    %c0_i32 = arith.constant 0 : i32
    %c0_i32_0 = arith.constant 0 : i32
    %c0_i32_1 = arith.constant 0 : i32
    return %arg0, %c0_i32, %c0_i32_0 : i32, i32, i32
  }
}

</mosaic_0001>

<llo_original>
// kernel: generator_forward.1
$region0: #{generator_forward.1}
  #allocation0 [shape = 'u32[]', space=smem, size = 0x4, offset = 0x4, fixed_abs, tag = 'smem constant byte address 0x4 - core index']
  #allocation1 [shape = 'u32[72,128]{1,0:T(1,128)}', space=vmem, size = 0x9000, scoped, tag = 'internal scratch']
  %s0 = inlined_call_operand.vmem [shape: f32[2,8,8], index: 0, kind: input, shape index: {}]
  %s1 = inlined_call_operand.vmem [shape: s32[2,8,1], index: 1, kind: input, shape index: {}]
  %s2 = inlined_call_operand.vmem [shape: f32[4,4], index: 2, kind: input, shape index: {}]
  %s3 = inlined_call_operand.vmem [shape: bf16[4,128], index: 3, kind: input, shape index: {}]
  %s4 = inlined_call_operand.vmem [shape: bf16[8,128], index: 4, kind: input, shape index: {}]
  %s5 = inlined_call_operand.vmem [shape: bf16[128,256], index: 5, kind: input, shape index: {}]
  %s6 = inlined_call_operand.vmem [shape: bf16[256,512], index: 6, kind: input, shape index: {}]
  %s7 = inlined_call_operand.hbm [shape: bf16[512,1024], index: 7, kind: input, shape index: {}]
  %s8 = inlined_call_operand.vmem [shape: bf16[1024,64], index: 8, kind: input, shape index: {}]
  %s9 = inlined_call_operand.vmem [shape: f32[1,1984], index: 9, kind: input, shape index: {}]
  %s10 = inlined_call_operand.vmem [shape: f32[1,1792], index: 10, kind: input, shape index: {}]
  %s11 = inlined_call_operand.vmem [shape: f32[1,1792], index: 11, kind: input, shape index: {}]
  %s12 = inlined_call_operand.vmem [shape: f32[2,8,64], index: 12, kind: output, shape index: {}]
  %s13 = sld [smem:[#allocation0]]
  $region85: #{generator_forward.1} parent=0
    _
  %s15 = ssub.s32 1, %s13
  %s16 = scalar_select 0, %s15, %s13
  $region1: #{generator_forward.1} parent=0
    #allocation2 [shape = 'u8[1048576]{0}', space=vmem, size = 0x100000, scoped, tag = 'input window, operand 7, single buffered']
    #allocation3 [shape = 's32[2]{0}', space=sflag, size = 0x8, scoped, tag = 'scoped memory for generator_forward.1']
    %17 = vsyncpa [#allocation3], 0
    loop: start=0, step=1, limit=4
    $region2: #{generator_forward.1} parent=1 // loop_pre_header
      _
    $region3: #{generator_forward.1} parent=1 // loop_header
      %s19 = sphi 0, %s23
      %p20 = scmp.ge.s32.totalorder %s19, 4
      %s29 = sphi 0, %s31
      %s32 = sphi 0, %s29
      %s33 = sphi 0, %s32
      %s49 = sphi 0, %s33
      %s55 = sphi 0, %s57
      %s58 = sphi 0, %s55
      %s59 = sphi 0, %s58
      %s75 = sphi 0, %s59
      %s79 = sphi 0, %s79
      %s81 = sphi 0, %s79
      %s82 = sphi 0, %s81
      %s96 = sphi 0, %s82
      %s100 = sphi 0, %s100
      %s102 = sphi 0, %s100
      %s103 = sphi 0, %s102
      %s117 = sphi 0, %s103
      %s121 = sphi 0, %s121
      %s123 = sphi 0, %s121
      %s124 = sphi 0, %s123
      %s138 = sphi 0, %s124
      %s142 = sphi 0, %s142
      %s144 = sphi 0, %s142
      %s145 = sphi 0, %s144
      %s159 = sphi 0, %s145
      %s163 = sphi 0, %s163
      %s165 = sphi 0, %s163
      %s166 = sphi 0, %s165
      %s180 = sphi 0, %s166
      %s184 = sphi 0, %s184
      %s186 = sphi 0, %s184
      %s187 = sphi 0, %s186
      %s201 = sphi 0, %s187
      %s205 = sphi 0, %s205
      %s207 = sphi 0, %s205
      %s208 = sphi 0, %s207
      %s222 = sphi 0, %s208
      %s226 = sphi 0, %s226
      %s228 = sphi 0, %s226
      %s229 = sphi 0, %s228
      %s243 = sphi 0, %s229
      %s247 = sphi 0, %s247
      %s249 = sphi 0, %s247
      %s250 = sphi 0, %s249
      %s264 = sphi 0, %s250
      %s268 = sphi 0, %s268
      %s270 = sphi 0, %s268
      %s271 = sphi 0, %s270
      %s285 = sphi 0, %s271
      %s291 = sphi 0, %s293
      %s294 = sphi 0, %s291
      %s295 = sphi 0, %s294
      %s311 = sphi 0, %s295
    $region4: #{generator_forward.1} parent=1 // loop_header_branch
      %22 = sbr.rel (%p20) target = $region8
    $region5: #{generator_forward.1} parent=1 // loop_body
      %s24 = ssub.s32 %s19, 1
      %s25 = ssub.s32 %s19, 2
      %s26 = sadd.s32 %s19, 1
      %s27 = ssub.s32 %s19, %s26
      %p28 = scmp.eq.s32.totalorder %s27, 0
      %s30 = sadd.s32 %s29, 1
      %s31 = scalar_select %p28, %s29, %s30
      %p34 = pneg %p28
      %p35 = scmp.eq.s32.totalorder %s19, 1
      %p36 = por %p34, %p35
      %p37 = scmp.ne.s32.totalorder %s29, %s32
      %p38 = scmp.eq.s32.totalorder %s19, 0
      %p39 = por %p37, %p38
      %p40 = scmp.ne.s32.totalorder %s29, %s32
      %p41 = scmp.eq.s32.totalorder %s24, 1
      %p42 = por %p40, %p41
      %p43 = scmp.ne.s32.totalorder %s32, %s33
      %p44 = scmp.eq.s32.totalorder %s24, 0
      %p45 = por %p43, %p44
      %p46 = scmp.ne.s32.totalorder %s32, %s33
      %p47 = scmp.eq.s32.totalorder %s25, 1
      %p48 = por %p46, %p47
      %p50 = scmp.ne.s32.totalorder %s33, %s49
      %p51 = scmp.eq.s32.totalorder %s25, 0
      %p52 = por %p50, %p51
      %s53 = ssub.s32 %s19, %s26
      %p54 = scmp.eq.s32.totalorder %s53, 0
      %s56 = sadd.s32 %s55, 1
      %s57 = scalar_select %p54, %s55, %s56
      %p60 = pneg %p54
      %p61 = scmp.eq.s32.totalorder %s19, 1
      %p62 = por %p60, %p61
      %p63 = scmp.ne.s32.totalorder %s55, %s58
      %p64 = scmp.eq.s32.totalorder %s19, 0
      %p65 = por %p63, %p64
      %p66 = scmp.ne.s32.totalorder %s55, %s58
      %p67 = scmp.eq.s32.totalorder %s24, 1
      %p68 = por %p66, %p67
      %p69 = scmp.ne.s32.totalorder %s58, %s59
      %p70 = scmp.eq.s32.totalorder %s24, 0
      %p71 = por %p69, %p70
      %p72 = scmp.ne.s32.totalorder %s58, %s59
      %p73 = scmp.eq.s32.totalorder %s25, 1
      %p74 = por %p72, %p73
      %p76 = scmp.ne.s32.totalorder %s59, %s75
      %p77 = scmp.eq.s32.totalorder %s25, 0
      %p78 = por %p76, %p77
      %s80 = sadd.s32 %s79, 1
      %p83 = scmp.eq.s32.totalorder %s19, 1
      %p84 = scmp.ne.s32.totalorder %s79, %s81
      %p85 = scmp.eq.s32.totalorder %s19, 0
      %p86 = por %p84, %p85
      %p87 = scmp.ne.s32.totalorder %s79, %s81
      %p88 = scmp.eq.s32.totalorder %s24, 1
      %p89 = por %p87, %p88
      %p90 = scmp.ne.s32.totalorder %s81, %s82
      %p91 = scmp.eq.s32.totalorder %s24, 0
      %p92 = por %p90, %p91
      %p93 = scmp.ne.s32.totalorder %s81, %s82
      %p94 = scmp.eq.s32.totalorder %s25, 1
      %p95 = por %p93, %p94
      %p97 = scmp.ne.s32.totalorder %s82, %s96
      %p98 = scmp.eq.s32.totalorder %s25, 0
      %p99 = por %p97, %p98
      %s101 = sadd.s32 %s100, 1
      %p104 = scmp.eq.s32.totalorder %s19, 1
      %p105 = scmp.ne.s32.totalorder %s100, %s102
      %p106 = scmp.eq.s32.totalorder %s19, 0
      %p107 = por %p105, %p106
      %p108 = scmp.ne.s32.totalorder %s100, %s102
      %p109 = scmp.eq.s32.totalorder %s24, 1
      %p110 = por %p108, %p109
      %p111 = scmp.ne.s32.totalorder %s102, %s103
      %p112 = scmp.eq.s32.totalorder %s24, 0
      %p113 = por %p111, %p112
      %p114 = scmp.ne.s32.totalorder %s102, %s103
      %p115 = scmp.eq.s32.totalorder %s25, 1
      %p116 = por %p114, %p115
      %p118 = scmp.ne.s32.totalorder %s103, %s117
      %p119 = scmp.eq.s32.totalorder %s25, 0
      %p120 = por %p118, %p119
      %s122 = sadd.s32 %s121, 1
      %p125 = scmp.eq.s32.totalorder %s19, 1
      %p126 = scmp.ne.s32.totalorder %s121, %s123
      %p127 = scmp.eq.s32.totalorder %s19, 0
      %p128 = por %p126, %p127
      %p129 = scmp.ne.s32.totalorder %s121, %s123
      %p130 = scmp.eq.s32.totalorder %s24, 1
      %p131 = por %p129, %p130
      %p132 = scmp.ne.s32.totalorder %s123, %s124
      %p133 = scmp.eq.s32.totalorder %s24, 0
      %p134 = por %p132, %p133
      %p135 = scmp.ne.s32.totalorder %s123, %s124
      %p136 = scmp.eq.s32.totalorder %s25, 1
      %p137 = por %p135, %p136
      %p139 = scmp.ne.s32.totalorder %s124, %s138
      %p140 = scmp.eq.s32.totalorder %s25, 0
      %p141 = por %p139, %p140
      %s143 = sadd.s32 %s142, 1
      %p146 = scmp.eq.s32.totalorder %s19, 1
      %p147 = scmp.ne.s32.totalorder %s142, %s144
      %p148 = scmp.eq.s32.totalorder %s19, 0
      %p149 = por %p147, %p148
      %p150 = scmp.ne.s32.totalorder %s142, %s144
      %p151 = scmp.eq.s32.totalorder %s24, 1
      %p152 = por %p150, %p151
      %p153 = scmp.ne.s32.totalorder %s144, %s145
      %p154 = scmp.eq.s32.totalorder %s24, 0
      %p155 = por %p153, %p154
      %p156 = scmp.ne.s32.totalorder %s144, %s145
      %p157 = scmp.eq.s32.totalorder %s25, 1
      %p158 = por %p156, %p157
      %p160 = scmp.ne.s32.totalorder %s145, %s159
      %p161 = scmp.eq.s32.totalorder %s25, 0
      %p162 = por %p160, %p161
      %s164 = sadd.s32 %s163, 1
      %p167 = scmp.eq.s32.totalorder %s19, 1
      %p168 = scmp.ne.s32.totalorder %s163, %s165
      %p169 = scmp.eq.s32.totalorder %s19, 0
      %p170 = por %p168, %p169
      %p171 = scmp.ne.s32.totalorder %s163, %s165
      %p172 = scmp.eq.s32.totalorder %s24, 1
      %p173 = por %p171, %p172
      %p174 = scmp.ne.s32.totalorder %s165, %s166
      %p175 = scmp.eq.s32.totalorder %s24, 0
      %p176 = por %p174, %p175
      %p177 = scmp.ne.s32.totalorder %s165, %s166
      %p178 = scmp.eq.s32.totalorder %s25, 1
      %p179 = por %p177, %p178
      %p181 = scmp.ne.s32.totalorder %s166, %s180
      %p182 = scmp.eq.s32.totalorder %s25, 0
      %p183 = por %p181, %p182
      %s185 = sadd.s32 %s184, 1
      %p188 = scmp.eq.s32.totalorder %s19, 1
      %p189 = scmp.ne.s32.totalorder %s184, %s186
      %p190 = scmp.eq.s32.totalorder %s19, 0
      %p191 = por %p189, %p190
      %p192 = scmp.ne.s32.totalorder %s184, %s186
      %p193 = scmp.eq.s32.totalorder %s24, 1
      %p194 = por %p192, %p193
      %p195 = scmp.ne.s32.totalorder %s186, %s187
      %p196 = scmp.eq.s32.totalorder %s24, 0
      %p197 = por %p195, %p196
      %p198 = scmp.ne.s32.totalorder %s186, %s187
      %p199 = scmp.eq.s32.totalorder %s25, 1
      %p200 = por %p198, %p199
      %p202 = scmp.ne.s32.totalorder %s187, %s201
      %p203 = scmp.eq.s32.totalorder %s25, 0
      %p204 = por %p202, %p203
      %s206 = sadd.s32 %s205, 1
      %p209 = scmp.eq.s32.totalorder %s19, 1
      %p210 = scmp.ne.s32.totalorder %s205, %s207
      %p211 = scmp.eq.s32.totalorder %s19, 0
      %p212 = por %p210, %p211
      %p213 = scmp.ne.s32.totalorder %s205, %s207
      %p214 = scmp.eq.s32.totalorder %s24, 1
      %p215 = por %p213, %p214
      %p216 = scmp.ne.s32.totalorder %s207, %s208
      %p217 = scmp.eq.s32.totalorder %s24, 0
      %p218 = por %p216, %p217
      %p219 = scmp.ne.s32.totalorder %s207, %s208
      %p220 = scmp.eq.s32.totalorder %s25, 1
      %p221 = por %p219, %p220
      %p223 = scmp.ne.s32.totalorder %s208, %s222
      %p224 = scmp.eq.s32.totalorder %s25, 0
      %p225 = por %p223, %p224
      %s227 = sadd.s32 %s226, 1
      %p230 = scmp.eq.s32.totalorder %s19, 1
      %p231 = scmp.ne.s32.totalorder %s226, %s228
      %p232 = scmp.eq.s32.totalorder %s19, 0
      %p233 = por %p231, %p232
      %p234 = scmp.ne.s32.totalorder %s226, %s228
      %p235 = scmp.eq.s32.totalorder %s24, 1
      %p236 = por %p234, %p235
      %p237 = scmp.ne.s32.totalorder %s228, %s229
      %p238 = scmp.eq.s32.totalorder %s24, 0
      %p239 = por %p237, %p238
      %p240 = scmp.ne.s32.totalorder %s228, %s229
      %p241 = scmp.eq.s32.totalorder %s25, 1
      %p242 = por %p240, %p241
      %p244 = scmp.ne.s32.totalorder %s229, %s243
      %p245 = scmp.eq.s32.totalorder %s25, 0
      %p246 = por %p244, %p245
      %s248 = sadd.s32 %s247, 1
      %p251 = scmp.eq.s32.totalorder %s19, 1
      %p252 = scmp.ne.s32.totalorder %s247, %s249
      %p253 = scmp.eq.s32.totalorder %s19, 0
      %p254 = por %p252, %p253
      %p255 = scmp.ne.s32.totalorder %s247, %s249
      %p256 = scmp.eq.s32.totalorder %s24, 1
      %p257 = por %p255, %p256
      %p258 = scmp.ne.s32.totalorder %s249, %s250
      %p259 = scmp.eq.s32.totalorder %s24, 0
      %p260 = por %p258, %p259
      %p261 = scmp.ne.s32.totalorder %s249, %s250
      %p262 = scmp.eq.s32.totalorder %s25, 1
      %p263 = por %p261, %p262
      %p265 = scmp.ne.s32.totalorder %s250, %s264
      %p266 = scmp.eq.s32.totalorder %s25, 0
      %p267 = por %p265, %p266
      %s269 = sadd.s32 %s268, 1
      %p272 = scmp.eq.s32.totalorder %s19, 1
      %p273 = scmp.ne.s32.totalorder %s268, %s270
      %p274 = scmp.eq.s32.totalorder %s19, 0
      %p275 = por %p273, %p274
      %p276 = scmp.ne.s32.totalorder %s268, %s270
      %p277 = scmp.eq.s32.totalorder %s24, 1
      %p278 = por %p276, %p277
      %p279 = scmp.ne.s32.totalorder %s270, %s271
      %p280 = scmp.eq.s32.totalorder %s24, 0
      %p281 = por %p279, %p280
      %p282 = scmp.ne.s32.totalorder %s270, %s271
      %p283 = scmp.eq.s32.totalorder %s25, 1
      %p284 = por %p282, %p283
      %p286 = scmp.ne.s32.totalorder %s271, %s285
      %p287 = scmp.eq.s32.totalorder %s25, 0
      %p288 = por %p286, %p287
      %s289 = ssub.s32 %s19, %s26
      %p290 = scmp.eq.s32.totalorder %s289, 0
      %s292 = sadd.s32 %s291, 1
      %s293 = scalar_select %p290, %s291, %s292
      %p296 = pneg %p290
      %p297 = scmp.eq.s32.totalorder %s19, 1
      %p298 = por %p296, %p297
      %p299 = scmp.ne.s32.totalorder %s291, %s294
      %p300 = scmp.eq.s32.totalorder %s19, 0
      %p301 = por %p299, %p300
      %p302 = scmp.ne.s32.totalorder %s291, %s294
      %p303 = scmp.eq.s32.totalorder %s24, 1
      %p304 = por %p302, %p303
      %p305 = scmp.ne.s32.totalorder %s294, %s295
      %p306 = scmp.eq.s32.totalorder %s24, 0
      %p307 = por %p305, %p306
      %p308 = scmp.ne.s32.totalorder %s294, %s295
      %p309 = scmp.eq.s32.totalorder %s25, 1
      %p310 = por %p308, %p309
      %p312 = scmp.ne.s32.totalorder %s295, %s311
      %p313 = scmp.eq.s32.totalorder %s25, 0
      %p314 = por %p312, %p313
      %p315 = scmp.le.s32.totalorder 1, %s19
      %p316 = scmp.lt.s32.totalorder %s19, 3
      %p317 = pnand %p315, %p316
      %p318 = pneg %p317
      // Predicated region
      $region9: #{generator_forward.1} parent=5 // pred_check
        _
      $region10: #{generator_forward.1} parent=5 // pred_check_branch
        %320 = sbr.rel (%p317) target = $region12
      $region11: #{generator_forward.1} parent=5 // pred_region
        %s321 = ssub.s32 %s19, 1
        // Predicated region
        $region13: #{generator_forward.1} parent=11 // pred_check
          %p322 = pneg %p92
        $region14: #{generator_forward.1} parent=11 // pred_check_branch
          %324 = sbr.rel (%p322) target = $region16
        $region15: #{generator_forward.1} parent=11 // pred_region
          _
        $region16: #{generator_forward.1} parent=11 // pred_fallthru
          _
        // Predicated region
        $region17: #{generator_forward.1} parent=11 // pred_check
          %p325 = pneg %p113
        $region18: #{generator_forward.1} parent=11 // pred_check_branch
          %327 = sbr.rel (%p325) target = $region20
        $region19: #{generator_forward.1} parent=11 // pred_region
          _
        $region20: #{generator_forward.1} parent=11 // pred_fallthru
          _
        // Predicated region
        $region21: #{generator_forward.1} parent=11 // pred_check
          %p328 = pneg %p134
        $region22: #{generator_forward.1} parent=11 // pred_check_branch
          %330 = sbr.rel (%p328) target = $region24
        $region23: #{generator_forward.1} parent=11 // pred_region
          _
        $region24: #{generator_forward.1} parent=11 // pred_fallthru
          _
        // Predicated region
        $region25: #{generator_forward.1} parent=11 // pred_check
          %p331 = pneg %p155
        $region26: #{generator_forward.1} parent=11 // pred_check_branch
          %333 = sbr.rel (%p331) target = $region28
        $region27: #{generator_forward.1} parent=11 // pred_region
          _
        $region28: #{generator_forward.1} parent=11 // pred_fallthru
          _
        // Predicated region
        $region29: #{generator_forward.1} parent=11 // pred_check
          %p334 = pneg %p176
        $region30: #{generator_forward.1} parent=11 // pred_check_branch
          %336 = sbr.rel (%p334) target = $region32
        $region31: #{generator_forward.1} parent=11 // pred_region
          _
        $region32: #{generator_forward.1} parent=11 // pred_fallthru
          _
        // Predicated region
        $region33: #{generator_forward.1} parent=11 // pred_check
          %p337 = pneg %p197
        $region34: #{generator_forward.1} parent=11 // pred_check_branch
          %339 = sbr.rel (%p337) target = $region36
        $region35: #{generator_forward.1} parent=11 // pred_region
          %341 = vsyncadd [#allocation3], 0
          %s342 = sshll.u32 %s7, 4
          %s343 = int_to_ptr.hbm [resolvable:$true] %s342
          %s344 = sshll.u32 [#allocation2], 4
          %s345 = int_to_ptr.vmem [resolvable:$true] %s344
          %350 = dma.hbm_to_vmem [thread:$0]  %s343, 32768, %s345, [#allocation3], 512, 512, 32
        $region36: #{generator_forward.1} parent=11 // pred_fallthru
          _
        // Predicated region
        $region37: #{generator_forward.1} parent=11 // pred_check
          %p351 = pneg %p218
        $region38: #{generator_forward.1} parent=11 // pred_check_branch
          %353 = sbr.rel (%p351) target = $region40
        $region39: #{generator_forward.1} parent=11 // pred_region
          _
        $region40: #{generator_forward.1} parent=11 // pred_fallthru
          _
        // Predicated region
        $region41: #{generator_forward.1} parent=11 // pred_check
          %p354 = pneg %p239
        $region42: #{generator_forward.1} parent=11 // pred_check_branch
          %356 = sbr.rel (%p354) target = $region44
        $region43: #{generator_forward.1} parent=11 // pred_region
          _
        $region44: #{generator_forward.1} parent=11 // pred_fallthru
          _
        // Predicated region
        $region45: #{generator_forward.1} parent=11 // pred_check
          %p357 = pneg %p260
        $region46: #{generator_forward.1} parent=11 // pred_check_branch
          %359 = sbr.rel (%p357) target = $region48
        $region47: #{generator_forward.1} parent=11 // pred_region
          _
        $region48: #{generator_forward.1} parent=11 // pred_fallthru
          _
        // Predicated region
        $region49: #{generator_forward.1} parent=11 // pred_check
          %p360 = pneg %p281
        $region50: #{generator_forward.1} parent=11 // pred_check_branch
          %362 = sbr.rel (%p360) target = $region52
        $region51: #{generator_forward.1} parent=11 // pred_region
          _
        $region52: #{generator_forward.1} parent=11 // pred_fallthru
          _
      $region12: #{generator_forward.1} parent=5 // pred_fallthru
        _
      %p363 = scmp.lt.s32.totalorder %s19, 2
      // Predicated region
      $region53: #{generator_forward.1} parent=5 // pred_check
        %p364 = pneg %p363
      $region54: #{generator_forward.1} parent=5 // pred_check_branch
        %366 = sbr.rel (%p364) target = $region56
      $region55: #{generator_forward.1} parent=5 // pred_region
        // Predicated region
        $region57: #{generator_forward.1} parent=55 // pred_check
          %p367 = pneg %p39
        $region58: #{generator_forward.1} parent=55 // pred_check_branch
          %369 = sbr.rel (%p367) target = $region60
        $region59: #{generator_forward.1} parent=55 // pred_region
          %p370 = scmp.lt.s32.totalorder %s19, 1
          %s371 = scalar_select %p370, %s19, 1
          %s372 = smul.addr %s371, 8
          %s373 = scalar_lea.vmem %s0, %s372
        $region60: #{generator_forward.1} parent=55 // pred_fallthru
          _
        // Predicated region
        $region61: #{generator_forward.1} parent=55 // pred_check
          %p374 = pneg %p65
        $region62: #{generator_forward.1} parent=55 // pred_check_branch
          %376 = sbr.rel (%p374) target = $region64
        $region63: #{generator_forward.1} parent=55 // pred_region
          %p377 = scmp.lt.s32.totalorder %s19, 1
          %s378 = scalar_select %p377, %s19, 1
          %s379 = smul.addr %s378, 8
          %s380 = scalar_lea.vmem %s1, %s379
        $region64: #{generator_forward.1} parent=55 // pred_fallthru
          _
      $region56: #{generator_forward.1} parent=5 // pred_fallthru
        _
      %p381 = scmp.le.s32.totalorder 1, %s19
      %p382 = scmp.lt.s32.totalorder %s19, 3
      %p383 = pnand %p381, %p382
      %p384 = pneg %p383
      // Predicated region
      $region65: #{generator_forward.1} parent=5 // pred_check
        _
      $region66: #{generator_forward.1} parent=5 // pred_check_branch
        %386 = sbr.rel (%p383) target = $region68
      $region67: #{generator_forward.1} parent=5 // pred_region
        %s387 = ssub.s32 %s19, 1
        // Predicated region
        $region69: #{generator_forward.1} parent=67 // pred_check
          %p388 = pneg %p197
        $region70: #{generator_forward.1} parent=67 // pred_check_branch
          %390 = sbr.rel (%p388) target = $region72
        $region71: #{generator_forward.1} parent=67 // pred_region
          %392 = dma.done [#allocation3], 32768
        $region72: #{generator_forward.1} parent=67 // pred_fallthru
          _
        %p393 = scmp.lt.s32.totalorder %s24, 1
        %s394 = scalar_select %p393, %s24, 1
        %s395 = smul.addr %s394, 8
        %s396 = scalar_lea.vmem %s0, %s395
        %p397 = pneg %p45
        %p398 = pneg %p42
        %p399 = scmp.lt.s32.totalorder %s24, 1
        %s400 = scalar_select %p399, %s24, 1
        %s401 = smul.addr %s400, 8
        %s402 = scalar_lea.vmem %s1, %s401
        %p403 = pneg %p71
        %p404 = pneg %p68
        %p405 = pneg %p92
        %p406 = pneg %p89
        %p407 = pneg %p113
        %p408 = pneg %p110
        %p409 = pneg %p134
        %p410 = pneg %p131
        %p411 = pneg %p155
        %p412 = pneg %p152
        %p413 = pneg %p176
        %p414 = pneg %p173
        %p415 = pneg %p197
        %p416 = pneg %p194
        %p417 = pneg %p218
        %p418 = pneg %p215
        %p419 = pneg %p239
        %p420 = pneg %p236
        %p421 = pneg %p260
        %p422 = pneg %p257
        %p423 = pneg %p281
        %p424 = pneg %p278
        %p425 = pneg %p307
        %p426 = pneg %p304
        %p427 = scmp.lt.s32.totalorder %s24, 1
        %s428 = scalar_select %p427, %s24, 1
        %s429 = smul.addr %s428, 8
        %s430 = scalar_lea.vmem %s12, %s429
        %p431 = scmp.lt.s32.totalorder %s24, 1
        %s432 = scalar_select %p431, %s24, 1
        %s433 = smul.addr %s432, 8
        %s434 = scalar_lea.vmem %s0, %s433
        %p435 = scmp.lt.s32.totalorder %s24, 1
        %s436 = scalar_select %p435, %s24, 1
        %s437 = smul.addr %s436, 8
        %s438 = scalar_lea.vmem %s1, %s437
        %p439 = scmp.lt.s32.totalorder %s24, 1
        %s440 = scalar_select %p439, %s24, 1
        %s441 = smul.addr %s440, 8
        %s442 = scalar_lea.vmem %s12, %s441
        %v444 = vld [vmem:[%s438] sm:$0xff]
        %v445 = vlaneseq
        %v446 = vand.u32 %v445, 127
        %447 = vset.pattern.permute.xlu0 0
        %448 = vperm.xlu0 %447, %v444
        %v449 = vpop.permute.xlu0 %448
        %vm450 = vcmp.eq.s32.totalorder %v449, %v446
        %v451 = vsel %vm450, 1, 0
        %v452 = vcvt.s32.f32 %v451
        %v453 = vld [vmem:[%s2] sm:$0xf]
        %vm454 = vcmask 31744
        %v456 = vsel %vm454, %v452, 0
        %vm458 = vcmask 1043456
        %v460 = vsel %vm458, %v453, 0
        %462 = vmatpush.msra.mxu0 0.0
        %463 = vmatpush.msra.mxu0 0.0
        %464 = vmatpush.msra.mxu0 0.0
        %465 = vmatpush.msra.mxu0 0.0
        %466 = vmatpush.msra.mxu0 0.0
        %467 = vmatpush.msra.mxu0 0.0
        %468 = vmatpush.msra.mxu0 0.0
        %469 = vmatpush.msra.mxu0 0.0
        %470 = vmatpush.msra.mxu0 0.0
        %471 = vmatpush.msra.mxu0 0.0
        %472 = vmatpush.msra.mxu0 0.0
        %473 = vmatpush.msra.mxu0 0.0
        %474 = vmatpush.msra.mxu0 0.0
        %475 = vmatpush.msra.mxu0 0.0
        %476 = vmatpush.msra.mxu0 0.0
        %477 = vmatpush.msra.mxu0 %v460
        %478 = vmatmul.f32.gmra.mxu0 %v456
        %v479 = vpop.f32.mrf.mxu0
        %v480 = vadd.f32 0.0, %v479
        %481 = vdwg.mxu0
        %v482 = vld [vmem:[%s434] sm:$0xff]
        %v483 = vpack.c.bf16 %v480, %v480
        %v484 = vld [vmem:[%s3] sm:$0x3]
        %v485 = vpack.c.bf16 %v482, %v482
        %v486 = vld [vmem:[%s4] sm:$0xf]
        %vm487 = vcmask 64512
        %v489 = vsel %vm487, %v485, 0
        %v492 = vsel %vm458, %v486, 0
        %494 = vmatpush.bf16.msra.mxu0 0
        %495 = vmatpush.bf16.msra.mxu0 0
        %496 = vmatpush.bf16.msra.mxu0 0
        %497 = vmatpush.bf16.msra.mxu0 0
        %498 = vmatpush.bf16.msra.mxu0 0
        %499 = vmatpush.bf16.msra.mxu0 0
        %500 = vmatpush.bf16.msra.mxu0 0
        %501 = vmatpush.bf16.msra.mxu0 %v492
        %502 = vmatmul.bf16.gmra.mxu0 %v489
        %v503 = vpop.f32.mrf.mxu0
        %v504 = vadd.f32 0.0, %v503
        %v505 = vpop.f32.mrf.mxu0
        %506 = vdwg.mxu0
        %v508 = vsel %vm454, %v483, 0
        %vm510 = vcmask 1041408
        %v512 = vsel %vm510, %v484, 0
        %514 = vmatpush.bf16.msra.mxu0 0
        %515 = vmatpush.bf16.msra.mxu0 0
        %516 = vmatpush.bf16.msra.mxu0 0
        %517 = vmatpush.bf16.msra.mxu0 0
        %518 = vmatpush.bf16.msra.mxu0 0
        %519 = vmatpush.bf16.msra.mxu0 0
        %520 = vmatpush.bf16.msra.mxu0 0
        %521 = vmatpush.bf16.msra.mxu0 %v512
        %522 = vmatmul.bf16.gmra.mxu0 %v508
        %v523 = vpop.f32.mrf.mxu0
        %v524 = vadd.f32 %v504, %v523
        %v525 = vpop.f32.mrf.mxu0
        %526 = vdwg.mxu0
        %v527 = vld [vmem:[%s9] sm:$0x1]
        %v529 = vperm.slane %v527, 0
        %v531 = vadd.f32 %v524, %v529
        %vm532 = vcmp.gt.f32.partialorder %v531, 0.0
        %v533 = vmul.f32 %v531, 0.2
        %v534 = vsel %vm532, %v531, %v533
        %v535 = vpack.c.bf16 %v534, %v534
        %v536 = vld [vmem:[%s5] sm:$0xff]
        %v537 = vld [vmem:[%s5 + $0x8] sm:$0xff]
        %v538 = vld [vmem:[%s5 + $0x10] sm:$0xff]
        %v539 = vld [vmem:[%s5 + $0x18] sm:$0xff]
        %v540 = vld [vmem:[%s5 + $0x20] sm:$0xff]
        %v541 = vld [vmem:[%s5 + $0x28] sm:$0xff]
        %v542 = vld [vmem:[%s5 + $0x30] sm:$0xff]
        %v543 = vld [vmem:[%s5 + $0x38] sm:$0xff]
        %v544 = vld [vmem:[%s5 + $0x40] sm:$0xff]
        %v545 = vld [vmem:[%s5 + $0x48] sm:$0xff]
        %v546 = vld [vmem:[%s5 + $0x50] sm:$0xff]
        %v547 = vld [vmem:[%s5 + $0x58] sm:$0xff]
        %v548 = vld [vmem:[%s5 + $0x60] sm:$0xff]
        %v549 = vld [vmem:[%s5 + $0x68] sm:$0xff]
        %v550 = vld [vmem:[%s5 + $0x70] sm:$0xff]
        %v551 = vld [vmem:[%s5 + $0x78] sm:$0xff]
        %v552 = vld [vmem:[%s9 + $0x1] sm:$0x3]
        %v554 = vperm.slane %v552, 0
        %v555 = vperm.slane %v552, 1
        %v574 = vunpack.c.l.b16 %v536
        %v575 = vunpack.c.h.b16 %v536
        %v576 = vunpack.c.l.b16 %v537
        %v577 = vunpack.c.h.b16 %v537
        %v578 = vunpack.c.l.b16 %v538
        %v579 = vunpack.c.h.b16 %v538
        %v580 = vunpack.c.l.b16 %v539
        %v581 = vunpack.c.h.b16 %v539
        %v582 = vunpack.c.l.b16 %v540
        %v583 = vunpack.c.h.b16 %v540
        %v584 = vunpack.c.l.b16 %v541
        %v585 = vunpack.c.h.b16 %v541
        %v586 = vunpack.c.l.b16 %v542
        %v587 = vunpack.c.h.b16 %v542
        %v588 = vunpack.c.l.b16 %v543
        %v589 = vunpack.c.h.b16 %v543
        %v590 = vunpack.c.l.b16 %v544
        %v591 = vunpack.c.h.b16 %v544
        %v592 = vunpack.c.l.b16 %v545
        %v593 = vunpack.c.h.b16 %v545
        %v594 = vunpack.c.l.b16 %v546
        %v595 = vunpack.c.h.b16 %v546
        %v596 = vunpack.c.l.b16 %v547
        %v597 = vunpack.c.h.b16 %v547
        %v598 = vunpack.c.l.b16 %v548
        %v599 = vunpack.c.h.b16 %v548
        %v600 = vunpack.c.l.b16 %v549
        %v601 = vunpack.c.h.b16 %v549
        %v602 = vunpack.c.l.b16 %v550
        %v603 = vunpack.c.h.b16 %v550
        %v604 = vunpack.c.l.b16 %v551
        %v605 = vunpack.c.h.b16 %v551
        %v606 = vpack.c.b16 %v576, %v574
        %v607 = vpack.c.b16 %v577, %v575
        %v608 = vpack.c.b16 %v580, %v578
        %v609 = vpack.c.b16 %v581, %v579
        %v610 = vpack.c.b16 %v584, %v582
        %v611 = vpack.c.b16 %v585, %v583
        %v612 = vpack.c.b16 %v588, %v586
        %v613 = vpack.c.b16 %v589, %v587
        %v614 = vpack.c.b16 %v592, %v590
        %v615 = vpack.c.b16 %v593, %v591
        %v616 = vpack.c.b16 %v596, %v594
        %v617 = vpack.c.b16 %v597, %v595
        %v618 = vpack.c.b16 %v600, %v598
        %v619 = vpack.c.b16 %v601, %v599
        %v620 = vpack.c.b16 %v604, %v602
        %v621 = vpack.c.b16 %v605, %v603
        %638 = vmatpush.bf16.msra.mxu0 %v620
        %639 = vmatpush.bf16.msra.mxu0 %v618
        %640 = vmatpush.bf16.msra.mxu0 %v616
        %641 = vmatpush.bf16.msra.mxu0 %v614
        %642 = vmatpush.bf16.msra.mxu0 %v612
        %643 = vmatpush.bf16.msra.mxu0 %v610
        %644 = vmatpush.bf16.msra.mxu0 %v608
        %645 = vmatpush.bf16.msra.mxu0 %v606
        %646 = vmatmul.bf16.gmra.mxu0 %v535
        %v647 = vpop.f32.mrf.mxu0
        %v648 = vadd.f32 %v554, %v647
        %v649 = vpop.f32.mrf.mxu0
        %650 = vdwg.mxu0
        %651 = vmatpush.bf16.msra.mxu0 %v621
        %652 = vmatpush.bf16.msra.mxu0 %v619
        %653 = vmatpush.bf16.msra.mxu0 %v617
        %654 = vmatpush.bf16.msra.mxu0 %v615
        %655 = vmatpush.bf16.msra.mxu0 %v613
        %656 = vmatpush.bf16.msra.mxu0 %v611
        %657 = vmatpush.bf16.msra.mxu0 %v609
        %658 = vmatpush.bf16.msra.mxu0 %v607
        %659 = vmatmul.bf16.gmra.mxu0 %v535
        %v660 = vpop.f32.mrf.mxu0
        %v661 = vadd.f32 %v555, %v660
        %v662 = vpop.f32.mrf.mxu0
        %663 = vdwg.mxu0
        %v664 = vrot.slane %v648, 4
        %v665 = vadd.f32 %v648, %v664
        %v666 = vrot.slane %v665, 2
        %v667 = vadd.f32 %v665, %v666
        %v668 = vrot.slane %v667, 1
        %v669 = vadd.f32 %v667, %v668
        %v670 = vrot.slane %v661, 4
        %v671 = vadd.f32 %v661, %v670
        %v672 = vrot.slane %v671, 2
        %v673 = vadd.f32 %v671, %v672
        %v674 = vrot.slane %v673, 1
        %v675 = vadd.f32 %v673, %v674
        %v676 = vrcp.pop 8.0
        %v677 = vmul.f32 8.0, %v676
        %v678 = vsub.f32 1.0, %v677
        %v679 = vmul.f32 %v676, %v678
        %v680 = vadd.f32 %v676, %v679
        %vm681 = vweird.f32 %v676
        %v682 = vsel %vm681, %v676, %v680
        %v683 = vmul.f32 %v669, %v682
        %v684 = vmul.f32 %v675, %v682
        %v685 = vsub.f32 %v648, %v683
        %v686 = vsub.f32 %v661, %v684
        %v687 = vmul.f32 %v685, %v685
        %v688 = vmul.f32 %v686, %v686
        %v689 = vrot.slane %v687, 4
        %v690 = vadd.f32 %v687, %v689
        %v691 = vrot.slane %v690, 2
        %v692 = vadd.f32 %v690, %v691
        %v693 = vrot.slane %v692, 1
        %v694 = vadd.f32 %v692, %v693
        %v695 = vrot.slane %v688, 4
        %v696 = vadd.f32 %v688, %v695
        %v697 = vrot.slane %v696, 2
        %v698 = vadd.f32 %v696, %v697
        %v699 = vrot.slane %v698, 1
        %v700 = vadd.f32 %v698, %v699
        %v701 = vmul.f32 %v694, %v682
        %v702 = vmul.f32 %v700, %v682
        %v703 = vadd.f32 %v701, 0.8
        %v704 = vadd.f32 %v702, 0.8
        %v705 = vrsqrt.pop %v703
        %v706 = vmul.f32 %v705, %v703
        %v707 = vmul.f32 %v706, %v705
        %v708 = vmul.f32 0.5, %v707
        %v709 = vsub.f32 1.5, %v708
        %v710 = vmul.f32 %v705, %v709
        %vm711 = vweird.f32 %v703
        %vm712 = vweird.f32 %v705
        %vm713 = vmor %vm711, %vm712
        %v714 = vsel %vm713, %v705, %v710
        %v715 = vrsqrt.pop %v704
        %v716 = vmul.f32 %v715, %v704
        %v717 = vmul.f32 %v716, %v715
        %v718 = vmul.f32 0.5, %v717
        %v719 = vsub.f32 1.5, %v718
        %v720 = vmul.f32 %v715, %v719
        %vm721 = vweird.f32 %v704
        %vm722 = vweird.f32 %v715
        %vm723 = vmor %vm721, %vm722
        %v724 = vsel %vm723, %v715, %v720
        %v725 = vmul.f32 %v685, %v714
        %v726 = vmul.f32 %v686, %v724
        %v727 = vld [vmem:[%s10] sm:$0x3]
        %v729 = vperm.slane %v727, 0
        %v730 = vperm.slane %v727, 1
        %v733 = vmul.f32 %v725, %v729
        %v734 = vmul.f32 %v726, %v730
        %v735 = vld [vmem:[%s11] sm:$0x3]
        %v737 = vperm.slane %v735, 0
        %v738 = vperm.slane %v735, 1
        %v741 = vadd.f32 %v733, %v737
        %v742 = vadd.f32 %v734, %v738
        %vm743 = vcmp.gt.f32.partialorder %v741, 0.0
        %vm744 = vcmp.gt.f32.partialorder %v742, 0.0
        %v745 = vmul.f32 %v741, 0.2
        %v746 = vmul.f32 %v742, 0.2
        %v747 = vsel %vm743, %v741, %v745
        %v748 = vsel %vm744, %v742, %v746
        %v749 = vpack.c.bf16 %v747, %v747
        %v750 = vpack.c.bf16 %v748, %v748
        %v751 = vld [vmem:[%s6] sm:$0xff]
        %v752 = vld [vmem:[%s6 + $0x8] sm:$0xff]
        %v753 = vld [vmem:[%s6 + $0x10] sm:$0xff]
        %v754 = vld [vmem:[%s6 + $0x18] sm:$0xff]
        %v755 = vld [vmem:[%s6 + $0x20] sm:$0xff]
        %v756 = vld [vmem:[%s6 + $0x28] sm:$0xff]
        %v757 = vld [vmem:[%s6 + $0x30] sm:$0xff]
        %v758 = vld [vmem:[%s6 + $0x38] sm:$0xff]
        %v759 = vld [vmem:[%s6 + $0x40] sm:$0xff]
        %v760 = vld [vmem:[%s6 + $0x48] sm:$0xff]
        %v761 = vld [vmem:[%s6 + $0x50] sm:$0xff]
        %v762 = vld [vmem:[%s6 + $0x58] sm:$0xff]
        %v763 = vld [vmem:[%s6 + $0x60] sm:$0xff]
        %v764 = vld [vmem:[%s6 + $0x68] sm:$0xff]
        %v765 = vld [vmem:[%s6 + $0x70] sm:$0xff]
        %v766 = vld [vmem:[%s6 + $0x78] sm:$0xff]
        %v767 = vld [vmem:[%s6 + $0x80] sm:$0xff]
        %v768 = vld [vmem:[%s6 + $0x88] sm:$0xff]
        %v769 = vld [vmem:[%s6 + $0x90] sm:$0xff]
        %v770 = vld [vmem:[%s6 + $0x98] sm:$0xff]
        %v771 = vld [vmem:[%s6 + $0xa0] sm:$0xff]
        %v772 = vld [vmem:[%s6 + $0xa8] sm:$0xff]
        %v773 = vld [vmem:[%s6 + $0xb0] sm:$0xff]
        %v774 = vld [vmem:[%s6 + $0xb8] sm:$0xff]
        %v775 = vld [vmem:[%s6 + $0xc0] sm:$0xff]
        %v776 = vld [vmem:[%s6 + $0xc8] sm:$0xff]
        %v777 = vld [vmem:[%s6 + $0xd0] sm:$0xff]
        %v778 = vld [vmem:[%s6 + $0xd8] sm:$0xff]
        %v779 = vld [vmem:[%s6 + $0xe0] sm:$0xff]
        %v780 = vld [vmem:[%s6 + $0xe8] sm:$0xff]
        %v781 = vld [vmem:[%s6 + $0xf0] sm:$0xff]
        %v782 = vld [vmem:[%s6 + $0xf8] sm:$0xff]
        %v783 = vld [vmem:[%s6 + $0x100] sm:$0xff]
        %v784 = vld [vmem:[%s6 + $0x108] sm:$0xff]
        %v785 = vld [vmem:[%s6 + $0x110] sm:$0xff]
        %v786 = vld [vmem:[%s6 + $0x118] sm:$0xff]
        %v787 = vld [vmem:[%s6 + $0x120] sm:$0xff]
        %v788 = vld [vmem:[%s6 + $0x128] sm:$0xff]
        %v789 = vld [vmem:[%s6 + $0x130] sm:$0xff]
        %v790 = vld [vmem:[%s6 + $0x138] sm:$0xff]
        %v791 = vld [vmem:[%s6 + $0x140] sm:$0xff]
        %v792 = vld [vmem:[%s6 + $0x148] sm:$0xff]
        %v793 = vld [vmem:[%s6 + $0x150] sm:$0xff]
        %v794 = vld [vmem:[%s6 + $0x158] sm:$0xff]
        %v795 = vld [vmem:[%s6 + $0x160] sm:$0xff]
        %v796 = vld [vmem:[%s6 + $0x168] sm:$0xff]
        %v797 = vld [vmem:[%s6 + $0x170] sm:$0xff]
        %v798 = vld [vmem:[%s6 + $0x178] sm:$0xff]
        %v799 = vld [vmem:[%s6 + $0x180] sm:$0xff]
        %v800 = vld [vmem:[%s6 + $0x188] sm:$0xff]
        %v801 = vld [vmem:[%s6 + $0x190] sm:$0xff]
        %v802 = vld [vmem:[%s6 + $0x198] sm:$0xff]
        %v803 = vld [vmem:[%s6 + $0x1a0] sm:$0xff]
        %v804 = vld [vmem:[%s6 + $0x1a8] sm:$0xff]
        %v805 = vld [vmem:[%s6 + $0x1b0] sm:$0xff]
        %v806 = vld [vmem:[%s6 + $0x1b8] sm:$0xff]
        %v807 = vld [vmem:[%s6 + $0x1c0] sm:$0xff]
        %v808 = vld [vmem:[%s6 + $0x1c8] sm:$0xff]
        %v809 = vld [vmem:[%s6 + $0x1d0] sm:$0xff]
        %v810 = vld [vmem:[%s6 + $0x1d8] sm:$0xff]
        %v811 = vld [vmem:[%s6 + $0x1e0] sm:$0xff]
        %v812 = vld [vmem:[%s6 + $0x1e8] sm:$0xff]
        %v813 = vld [vmem:[%s6 + $0x1f0] sm:$0xff]
        %v814 = vld [vmem:[%s6 + $0x1f8] sm:$0xff]
        %v815 = vld [vmem:[%s9 + $0x3] sm:$0xf]
        %v817 = vperm.slane %v815, 0
        %v818 = vperm.slane %v815, 1
        %v819 = vperm.slane %v815, 2
        %v820 = vperm.slane %v815, 3
        %v889 = vunpack.c.l.b16 %v751
        %v890 = vunpack.c.h.b16 %v751
        %v891 = vunpack.c.l.b16 %v752
        %v892 = vunpack.c.h.b16 %v752
        %v893 = vunpack.c.l.b16 %v753
        %v894 = vunpack.c.h.b16 %v753
        %v895 = vunpack.c.l.b16 %v754
        %v896 = vunpack.c.h.b16 %v754
        %v897 = vunpack.c.l.b16 %v755
        %v898 = vunpack.c.h.b16 %v755
        %v899 = vunpack.c.l.b16 %v756
        %v900 = vunpack.c.h.b16 %v756
        %v901 = vunpack.c.l.b16 %v757
        %v902 = vunpack.c.h.b16 %v757
        %v903 = vunpack.c.l.b16 %v758
        %v904 = vunpack.c.h.b16 %v758
        %v905 = vunpack.c.l.b16 %v759
        %v906 = vunpack.c.h.b16 %v759
        %v907 = vunpack.c.l.b16 %v760
        %v908 = vunpack.c.h.b16 %v760
        %v909 = vunpack.c.l.b16 %v761
        %v910 = vunpack.c.h.b16 %v761
        %v911 = vunpack.c.l.b16 %v762
        %v912 = vunpack.c.h.b16 %v762
        %v913 = vunpack.c.l.b16 %v763
        %v914 = vunpack.c.h.b16 %v763
        %v915 = vunpack.c.l.b16 %v764
        %v916 = vunpack.c.h.b16 %v764
        %v917 = vunpack.c.l.b16 %v765
        %v918 = vunpack.c.h.b16 %v765
        %v919 = vunpack.c.l.b16 %v766
        %v920 = vunpack.c.h.b16 %v766
        %v921 = vunpack.c.l.b16 %v767
        %v922 = vunpack.c.h.b16 %v767
        %v923 = vunpack.c.l.b16 %v768
        %v924 = vunpack.c.h.b16 %v768
        %v925 = vunpack.c.l.b16 %v769
        %v926 = vunpack.c.h.b16 %v769
        %v927 = vunpack.c.l.b16 %v770
        %v928 = vunpack.c.h.b16 %v770
        %v929 = vunpack.c.l.b16 %v771
        %v930 = vunpack.c.h.b16 %v771
        %v931 = vunpack.c.l.b16 %v772
        %v932 = vunpack.c.h.b16 %v772
        %v933 = vunpack.c.l.b16 %v773
        %v934 = vunpack.c.h.b16 %v773
        %v935 = vunpack.c.l.b16 %v774
        %v936 = vunpack.c.h.b16 %v774
        %v937 = vunpack.c.l.b16 %v775
        %v938 = vunpack.c.h.b16 %v775
        %v939 = vunpack.c.l.b16 %v776
        %v940 = vunpack.c.h.b16 %v776
        %v941 = vunpack.c.l.b16 %v777
        %v942 = vunpack.c.h.b16 %v777
        %v943 = vunpack.c.l.b16 %v778
        %v944 = vunpack.c.h.b16 %v778
        %v945 = vunpack.c.l.b16 %v779
        %v946 = vunpack.c.h.b16 %v779
        %v947 = vunpack.c.l.b16 %v780
        %v948 = vunpack.c.h.b16 %v780
        %v949 = vunpack.c.l.b16 %v781
        %v950 = vunpack.c.h.b16 %v781
        %v951 = vunpack.c.l.b16 %v782
        %v952 = vunpack.c.h.b16 %v782
        %v953 = vunpack.c.l.b16 %v783
        %v954 = vunpack.c.h.b16 %v783
        %v955 = vunpack.c.l.b16 %v784
        %v956 = vunpack.c.h.b16 %v784
        %v957 = vunpack.c.l.b16 %v785
        %v958 = vunpack.c.h.b16 %v785
        %v959 = vunpack.c.l.b16 %v786
        %v960 = vunpack.c.h.b16 %v786
        %v961 = vunpack.c.l.b16 %v787
        %v962 = vunpack.c.h.b16 %v787
        %v963 = vunpack.c.l.b16 %v788
        %v964 = vunpack.c.h.b16 %v788
        %v965 = vunpack.c.l.b16 %v789
        %v966 = vunpack.c.h.b16 %v789
        %v967 = vunpack.c.l.b16 %v790
        %v968 = vunpack.c.h.b16 %v790
        %v969 = vunpack.c.l.b16 %v791
        %v970 = vunpack.c.h.b16 %v791
        %v971 = vunpack.c.l.b16 %v792
        %v972 = vunpack.c.h.b16 %v792
        %v973 = vunpack.c.l.b16 %v793
        %v974 = vunpack.c.h.b16 %v793
        %v975 = vunpack.c.l.b16 %v794
        %v976 = vunpack.c.h.b16 %v794
        %v977 = vunpack.c.l.b16 %v795
        %v978 = vunpack.c.h.b16 %v795
        %v979 = vunpack.c.l.b16 %v796
        %v980 = vunpack.c.h.b16 %v796
        %v981 = vunpack.c.l.b16 %v797
        %v982 = vunpack.c.h.b16 %v797
        %v983 = vunpack.c.l.b16 %v798
        %v984 = vunpack.c.h.b16 %v798
        %v985 = vunpack.c.l.b16 %v799
        %v986 = vunpack.c.h.b16 %v799
        %v987 = vunpack.c.l.b16 %v800
        %v988 = vunpack.c.h.b16 %v800
        %v989 = vunpack.c.l.b16 %v801
        %v990 = vunpack.c.h.b16 %v801
        %v991 = vunpack.c.l.b16 %v802
        %v992 = vunpack.c.h.b16 %v802
        %v993 = vunpack.c.l.b16 %v803
        %v994 = vunpack.c.h.b16 %v803
        %v995 = vunpack.c.l.b16 %v804
        %v996 = vunpack.c.h.b16 %v804
        %v997 = vunpack.c.l.b16 %v805
        %v998 = vunpack.c.h.b16 %v805
        %v999 = vunpack.c.l.b16 %v806
        %v1000 = vunpack.c.h.b16 %v806
        %v1001 = vunpack.c.l.b16 %v807
        %v1002 = vunpack.c.h.b16 %v807
        %v1003 = vunpack.c.l.b16 %v808
        %v1004 = vunpack.c.h.b16 %v808
        %v1005 = vunpack.c.l.b16 %v809
        %v1006 = vunpack.c.h.b16 %v809
        %v1007 = vunpack.c.l.b16 %v810
        %v1008 = vunpack.c.h.b16 %v810
        %v1009 = vunpack.c.l.b16 %v811
        %v1010 = vunpack.c.h.b16 %v811
        %v1011 = vunpack.c.l.b16 %v812
        %v1012 = vunpack.c.h.b16 %v812
        %v1013 = vunpack.c.l.b16 %v813
        %v1014 = vunpack.c.h.b16 %v813
        %v1015 = vunpack.c.l.b16 %v814
        %v1016 = vunpack.c.h.b16 %v814
        %v1017 = vpack.c.b16 %v893, %v889
        %v1018 = vpack.c.b16 %v894, %v890
        %v1019 = vpack.c.b16 %v895, %v891
        %v1020 = vpack.c.b16 %v896, %v892
        %v1021 = vpack.c.b16 %v901, %v897
        %v1022 = vpack.c.b16 %v902, %v898
        %v1023 = vpack.c.b16 %v903, %v899
        %v1024 = vpack.c.b16 %v904, %v900
        %v1025 = vpack.c.b16 %v909, %v905
        %v1026 = vpack.c.b16 %v910, %v906
        %v1027 = vpack.c.b16 %v911, %v907
        %v1028 = vpack.c.b16 %v912, %v908
        %v1029 = vpack.c.b16 %v917, %v913
        %v1030 = vpack.c.b16 %v918, %v914
        %v1031 = vpack.c.b16 %v919, %v915
        %v1032 = vpack.c.b16 %v920, %v916
        %v1033 = vpack.c.b16 %v925, %v921
        %v1034 = vpack.c.b16 %v926, %v922
        %v1035 = vpack.c.b16 %v927, %v923
        %v1036 = vpack.c.b16 %v928, %v924
        %v1037 = vpack.c.b16 %v933, %v929
        %v1038 = vpack.c.b16 %v934, %v930
        %v1039 = vpack.c.b16 %v935, %v931
        %v1040 = vpack.c.b16 %v936, %v932
        %v1041 = vpack.c.b16 %v941, %v937
        %v1042 = vpack.c.b16 %v942, %v938
        %v1043 = vpack.c.b16 %v943, %v939
        %v1044 = vpack.c.b16 %v944, %v940
        %v1045 = vpack.c.b16 %v949, %v945
        %v1046 = vpack.c.b16 %v950, %v946
        %v1047 = vpack.c.b16 %v951, %v947
        %v1048 = vpack.c.b16 %v952, %v948
        %v1049 = vpack.c.b16 %v957, %v953
        %v1050 = vpack.c.b16 %v958, %v954
        %v1051 = vpack.c.b16 %v959, %v955
        %v1052 = vpack.c.b16 %v960, %v956
        %v1053 = vpack.c.b16 %v965, %v961
        %v1054 = vpack.c.b16 %v966, %v962
        %v1055 = vpack.c.b16 %v967, %v963
        %v1056 = vpack.c.b16 %v968, %v964
        %v1057 = vpack.c.b16 %v973, %v969
        %v1058 = vpack.c.b16 %v974, %v970
        %v1059 = vpack.c.b16 %v975, %v971
        %v1060 = vpack.c.b16 %v976, %v972
        %v1061 = vpack.c.b16 %v981, %v977
        %v1062 = vpack.c.b16 %v982, %v978
        %v1063 = vpack.c.b16 %v983, %v979
        %v1064 = vpack.c.b16 %v984, %v980
        %v1065 = vpack.c.b16 %v989, %v985
        %v1066 = vpack.c.b16 %v990, %v986
        %v1067 = vpack.c.b16 %v991, %v987
        %v1068 = vpack.c.b16 %v992, %v988
        %v1069 = vpack.c.b16 %v997, %v993
        %v1070 = vpack.c.b16 %v998, %v994
        %v1071 = vpack.c.b16 %v999, %v995
        %v1072 = vpack.c.b16 %v1000, %v996
        %v1073 = vpack.c.b16 %v1005, %v1001
        %v1074 = vpack.c.b16 %v1006, %v1002
        %v1075 = vpack.c.b16 %v1007, %v1003
        %v1076 = vpack.c.b16 %v1008, %v1004
        %v1077 = vpack.c.b16 %v1013, %v1009
        %v1078 = vpack.c.b16 %v1014, %v1010
        %v1079 = vpack.c.b16 %v1015, %v1011
        %v1080 = vpack.c.b16 %v1016, %v1012
        %1145 = vmatpush.bf16.msra.mxu0 %v1045
        %1146 = vmatpush.bf16.msra.mxu0 %v1041
        %1147 = vmatpush.bf16.msra.mxu0 %v1037
        %1148 = vmatpush.bf16.msra.mxu0 %v1033
        %1149 = vmatpush.bf16.msra.mxu0 %v1029
        %1150 = vmatpush.bf16.msra.mxu0 %v1025
        %1151 = vmatpush.bf16.msra.mxu0 %v1021
        %1152 = vmatpush.bf16.msra.mxu0 %v1017
        %1153 = vmatmul.bf16.gmra.mxu0 %v749
        %v1154 = vpop.f32.mrf.mxu0
        %v1155 = vadd.f32 %v817, %v1154
        %v1156 = vpop.f32.mrf.mxu0
        %1157 = vdwg.mxu0
        %1158 = vmatpush.bf16.msra.mxu0 %v1077
        %1159 = vmatpush.bf16.msra.mxu0 %v1073
        %1160 = vmatpush.bf16.msra.mxu0 %v1069
        %1161 = vmatpush.bf16.msra.mxu0 %v1065
        %1162 = vmatpush.bf16.msra.mxu0 %v1061
        %1163 = vmatpush.bf16.msra.mxu0 %v1057
        %1164 = vmatpush.bf16.msra.mxu0 %v1053
        %1165 = vmatpush.bf16.msra.mxu0 %v1049
        %1166 = vmatmul.bf16.gmra.mxu0 %v750
        %v1167 = vpop.f32.mrf.mxu0
        %v1168 = vadd.f32 %v1155, %v1167
        %v1169 = vpop.f32.mrf.mxu0
        %1170 = vdwg.mxu0
        %1171 = vmatpush.bf16.msra.mxu0 %v1046
        %1172 = vmatpush.bf16.msra.mxu0 %v1042
        %1173 = vmatpush.bf16.msra.mxu0 %v1038
        %1174 = vmatpush.bf16.msra.mxu0 %v1034
        %1175 = vmatpush.bf16.msra.mxu0 %v1030
        %1176 = vmatpush.bf16.msra.mxu0 %v1026
        %1177 = vmatpush.bf16.msra.mxu0 %v1022
        %1178 = vmatpush.bf16.msra.mxu0 %v1018
        %1179 = vmatmul.bf16.gmra.mxu0 %v749
        %v1180 = vpop.f32.mrf.mxu0
        %v1181 = vadd.f32 %v818, %v1180
        %v1182 = vpop.f32.mrf.mxu0
        %1183 = vdwg.mxu0
        %1184 = vmatpush.bf16.msra.mxu0 %v1078
        %1185 = vmatpush.bf16.msra.mxu0 %v1074
        %1186 = vmatpush.bf16.msra.mxu0 %v1070
        %1187 = vmatpush.bf16.msra.mxu0 %v1066
        %1188 = vmatpush.bf16.msra.mxu0 %v1062
        %1189 = vmatpush.bf16.msra.mxu0 %v1058
        %1190 = vmatpush.bf16.msra.mxu0 %v1054
        %1191 = vmatpush.bf16.msra.mxu0 %v1050
        %1192 = vmatmul.bf16.gmra.mxu0 %v750
        %v1193 = vpop.f32.mrf.mxu0
        %v1194 = vadd.f32 %v1181, %v1193
        %v1195 = vpop.f32.mrf.mxu0
        %1196 = vdwg.mxu0
        %1197 = vmatpush.bf16.msra.mxu0 %v1047
        %1198 = vmatpush.bf16.msra.mxu0 %v1043
        %1199 = vmatpush.bf16.msra.mxu0 %v1039
        %1200 = vmatpush.bf16.msra.mxu0 %v1035
        %1201 = vmatpush.bf16.msra.mxu0 %v1031
        %1202 = vmatpush.bf16.msra.mxu0 %v1027
        %1203 = vmatpush.bf16.msra.mxu0 %v1023
        %1204 = vmatpush.bf16.msra.mxu0 %v1019
        %1205 = vmatmul.bf16.gmra.mxu0 %v749
        %v1206 = vpop.f32.mrf.mxu0
        %v1207 = vadd.f32 %v819, %v1206
        %v1208 = vpop.f32.mrf.mxu0
        %1209 = vdwg.mxu0
        %1210 = vmatpush.bf16.msra.mxu0 %v1079
        %1211 = vmatpush.bf16.msra.mxu0 %v1075
        %1212 = vmatpush.bf16.msra.mxu0 %v1071
        %1213 = vmatpush.bf16.msra.mxu0 %v1067
        %1214 = vmatpush.bf16.msra.mxu0 %v1063
        %1215 = vmatpush.bf16.msra.mxu0 %v1059
        %1216 = vmatpush.bf16.msra.mxu0 %v1055
        %1217 = vmatpush.bf16.msra.mxu0 %v1051
        %1218 = vmatmul.bf16.gmra.mxu0 %v750
        %v1219 = vpop.f32.mrf.mxu0
        %v1220 = vadd.f32 %v1207, %v1219
        %v1221 = vpop.f32.mrf.mxu0
        %1222 = vdwg.mxu0
        %1223 = vmatpush.bf16.msra.mxu0 %v1048
        %1224 = vmatpush.bf16.msra.mxu0 %v1044
        %1225 = vmatpush.bf16.msra.mxu0 %v1040
        %1226 = vmatpush.bf16.msra.mxu0 %v1036
        %1227 = vmatpush.bf16.msra.mxu0 %v1032
        %1228 = vmatpush.bf16.msra.mxu0 %v1028
        %1229 = vmatpush.bf16.msra.mxu0 %v1024
        %1230 = vmatpush.bf16.msra.mxu0 %v1020
        %1231 = vmatmul.bf16.gmra.mxu0 %v749
        %v1232 = vpop.f32.mrf.mxu0
        %v1233 = vadd.f32 %v820, %v1232
        %v1234 = vpop.f32.mrf.mxu0
        %1235 = vdwg.mxu0
        %1236 = vmatpush.bf16.msra.mxu0 %v1080
        %1237 = vmatpush.bf16.msra.mxu0 %v1076
        %1238 = vmatpush.bf16.msra.mxu0 %v1072
        %1239 = vmatpush.bf16.msra.mxu0 %v1068
        %1240 = vmatpush.bf16.msra.mxu0 %v1064
        %1241 = vmatpush.bf16.msra.mxu0 %v1060
        %1242 = vmatpush.bf16.msra.mxu0 %v1056
        %1243 = vmatpush.bf16.msra.mxu0 %v1052
        %1244 = vmatmul.bf16.gmra.mxu0 %v750
        %v1245 = vpop.f32.mrf.mxu0
        %v1246 = vadd.f32 %v1233, %v1245
        %v1247 = vpop.f32.mrf.mxu0
        %1248 = vdwg.mxu0
        %v1249 = vrot.slane %v1168, 4
        %v1250 = vadd.f32 %v1168, %v1249
        %v1251 = vrot.slane %v1250, 2
        %v1252 = vadd.f32 %v1250, %v1251
        %v1253 = vrot.slane %v1252, 1
        %v1254 = vadd.f32 %v1252, %v1253
        %v1255 = vrot.slane %v1194, 4
        %v1256 = vadd.f32 %v1194, %v1255
        %v1257 = vrot.slane %v1256, 2
        %v1258 = vadd.f32 %v1256, %v1257
        %v1259 = vrot.slane %v1258, 1
        %v1260 = vadd.f32 %v1258, %v1259
        %v1261 = vrot.slane %v1220, 4
        %v1262 = vadd.f32 %v1220, %v1261
        %v1263 = vrot.slane %v1262, 2
        %v1264 = vadd.f32 %v1262, %v1263
        %v1265 = vrot.slane %v1264, 1
        %v1266 = vadd.f32 %v1264, %v1265
        %v1267 = vrot.slane %v1246, 4
        %v1268 = vadd.f32 %v1246, %v1267
        %v1269 = vrot.slane %v1268, 2
        %v1270 = vadd.f32 %v1268, %v1269
        %v1271 = vrot.slane %v1270, 1
        %v1272 = vadd.f32 %v1270, %v1271
        %v1273 = vmul.f32 %v1254, %v682
        %v1274 = vmul.f32 %v1260, %v682
        %v1275 = vmul.f32 %v1266, %v682
        %v1276 = vmul.f32 %v1272, %v682
        %v1277 = vsub.f32 %v1168, %v1273
        %v1278 = vsub.f32 %v1194, %v1274
        %v1279 = vsub.f32 %v1220, %v1275
        %v1280 = vsub.f32 %v1246, %v1276
        %v1281 = vmul.f32 %v1277, %v1277
        %v1282 = vmul.f32 %v1278, %v1278
        %v1283 = vmul.f32 %v1279, %v1279
        %v1284 = vmul.f32 %v1280, %v1280
        %v1285 = vrot.slane %v1281, 4
        %v1286 = vadd.f32 %v1281, %v1285
        %v1287 = vrot.slane %v1286, 2
        %v1288 = vadd.f32 %v1286, %v1287
        %v1289 = vrot.slane %v1288, 1
        %v1290 = vadd.f32 %v1288, %v1289
        %v1291 = vrot.slane %v1282, 4
        %v1292 = vadd.f32 %v1282, %v1291
        %v1293 = vrot.slane %v1292, 2
        %v1294 = vadd.f32 %v1292, %v1293
        %v1295 = vrot.slane %v1294, 1
        %v1296 = vadd.f32 %v1294, %v1295
        %v1297 = vrot.slane %v1283, 4
        %v1298 = vadd.f32 %v1283, %v1297
        %v1299 = vrot.slane %v1298, 2
        %v1300 = vadd.f32 %v1298, %v1299
        %v1301 = vrot.slane %v1300, 1
        %v1302 = vadd.f32 %v1300, %v1301
        %v1303 = vrot.slane %v1284, 4
        %v1304 = vadd.f32 %v1284, %v1303
        %v1305 = vrot.slane %v1304, 2
        %v1306 = vadd.f32 %v1304, %v1305
        %v1307 = vrot.slane %v1306, 1
        %v1308 = vadd.f32 %v1306, %v1307
        %v1309 = vmul.f32 %v1290, %v682
        %v1310 = vmul.f32 %v1296, %v682
        %v1311 = vmul.f32 %v1302, %v682
        %v1312 = vmul.f32 %v1308, %v682
        %v1313 = vadd.f32 %v1309, 0.8
        %v1314 = vadd.f32 %v1310, 0.8
        %v1315 = vadd.f32 %v1311, 0.8
        %v1316 = vadd.f32 %v1312, 0.8
        %v1317 = vrsqrt.pop %v1313
        %v1318 = vmul.f32 %v1317, %v1313
        %v1319 = vmul.f32 %v1318, %v1317
        %v1320 = vmul.f32 0.5, %v1319
        %v1321 = vsub.f32 1.5, %v1320
        %v1322 = vmul.f32 %v1317, %v1321
        %vm1323 = vweird.f32 %v1313
        %vm1324 = vweird.f32 %v1317
        %vm1325 = vmor %vm1323, %vm1324
        %v1326 = vsel %vm1325, %v1317, %v1322
        %v1327 = vrsqrt.pop %v1314
        %v1328 = vmul.f32 %v1327, %v1314
        %v1329 = vmul.f32 %v1328, %v1327
        %v1330 = vmul.f32 0.5, %v1329
        %v1331 = vsub.f32 1.5, %v1330
        %v1332 = vmul.f32 %v1327, %v1331
        %vm1333 = vweird.f32 %v1314
        %vm1334 = vweird.f32 %v1327
        %vm1335 = vmor %vm1333, %vm1334
        %v1336 = vsel %vm1335, %v1327, %v1332
        %v1337 = vrsqrt.pop %v1315
        %v1338 = vmul.f32 %v1337, %v1315
        %v1339 = vmul.f32 %v1338, %v1337
        %v1340 = vmul.f32 0.5, %v1339
        %v1341 = vsub.f32 1.5, %v1340
        %v1342 = vmul.f32 %v1337, %v1341
        %vm1343 = vweird.f32 %v1315
        %vm1344 = vweird.f32 %v1337
        %vm1345 = vmor %vm1343, %vm1344
        %v1346 = vsel %vm1345, %v1337, %v1342
        %v1347 = vrsqrt.pop %v1316
        %v1348 = vmul.f32 %v1347, %v1316
        %v1349 = vmul.f32 %v1348, %v1347
        %v1350 = vmul.f32 0.5, %v1349
        %v1351 = vsub.f32 1.5, %v1350
        %v1352 = vmul.f32 %v1347, %v1351
        %vm1353 = vweird.f32 %v1316
        %vm1354 = vweird.f32 %v1347
        %vm1355 = vmor %vm1353, %vm1354
        %v1356 = vsel %vm1355, %v1347, %v1352
        %v1357 = vmul.f32 %v1277, %v1326
        %v1358 = vmul.f32 %v1278, %v1336
        %v1359 = vmul.f32 %v1279, %v1346
        %v1360 = vmul.f32 %v1280, %v1356
        %v1361 = vld [vmem:[%s10 + $0x2] sm:$0xf]
        %v1363 = vperm.slane %v1361, 0
        %v1364 = vperm.slane %v1361, 1
        %v1365 = vperm.slane %v1361, 2
        %v1366 = vperm.slane %v1361, 3
        %v1371 = vmul.f32 %v1357, %v1363
        %v1372 = vmul.f32 %v1358, %v1364
        %v1373 = vmul.f32 %v1359, %v1365
        %v1374 = vmul.f32 %v1360, %v1366
        %v1375 = vld [vmem:[%s11 + $0x2] sm:$0xf]
        %v1377 = vperm.slane %v1375, 0
        %v1378 = vperm.slane %v1375, 1
        %v1379 = vperm.slane %v1375, 2
        %v1380 = vperm.slane %v1375, 3
        %v1385 = vadd.f32 %v1371, %v1377
        %v1386 = vadd.f32 %v1372, %v1378
        %v1387 = vadd.f32 %v1373, %v1379
        %v1388 = vadd.f32 %v1374, %v1380
        %vm1389 = vcmp.gt.f32.partialorder %v1385, 0.0
        %vm1390 = vcmp.gt.f32.partialorder %v1386, 0.0
        %vm1391 = vcmp.gt.f32.partialorder %v1387, 0.0
        %vm1392 = vcmp.gt.f32.partialorder %v1388, 0.0
        %v1393 = vmul.f32 %v1385, 0.2
        %v1394 = vmul.f32 %v1386, 0.2
        %v1395 = vmul.f32 %v1387, 0.2
        %v1396 = vmul.f32 %v1388, 0.2
        %v1397 = vsel %vm1389, %v1385, %v1393
        %v1398 = vsel %vm1390, %v1386, %v1394
        %v1399 = vsel %vm1391, %v1387, %v1395
        %v1400 = vsel %vm1392, %v1388, %v1396
        %v1401 = vpack.c.bf16 %v1397, %v1397
        %v1402 = vpack.c.bf16 %v1398, %v1398
        %v1403 = vpack.c.bf16 %v1399, %v1399
        %v1404 = vpack.c.bf16 %v1400, %v1400
        %v1405 = vld [vmem:[#allocation2] sm:$0xff]
        %v1406 = vld [vmem:[#allocation2 + $0x8] sm:$0xff]
        %v1407 = vld [vmem:[#allocation2 + $0x10] sm:$0xff]
        %v1408 = vld [vmem:[#allocation2 + $0x18] sm:$0xff]
        %v1409 = vld [vmem:[#allocation2 + $0x20] sm:$0xff]
        %v1410 = vld [vmem:[#allocation2 + $0x28] sm:$0xff]
        %v1411 = vld [vmem:[#allocation2 + $0x30] sm:$0xff]
        %v1412 = vld [vmem:[#allocation2 + $0x38] sm:$0xff]
        %v1413 = vld [vmem:[#allocation2 + $0x40] sm:$0xff]
        %v1414 = vld [vmem:[#allocation2 + $0x48] sm:$0xff]
        %v1415 = vld [vmem:[#allocation2 + $0x50] sm:$0xff]
        %v1416 = vld [vmem:[#allocation2 + $0x58] sm:$0xff]
        %v1417 = vld [vmem:[#allocation2 + $0x60] sm:$0xff]
        %v1418 = vld [vmem:[#allocation2 + $0x68] sm:$0xff]
        %v1419 = vld [vmem:[#allocation2 + $0x70] sm:$0xff]
        %v1420 = vld [vmem:[#allocation2 + $0x78] sm:$0xff]
        %v1421 = vld [vmem:[#allocation2 + $0x80] sm:$0xff]
        %v1422 = vld [vmem:[#allocation2 + $0x88] sm:$0xff]
        %v1423 = vld [vmem:[#allocation2 + $0x90] sm:$0xff]
        %v1424 = vld [vmem:[#allocation2 + $0x98] sm:$0xff]
        %v1425 = vld [vmem:[#allocation2 + $0xa0] sm:$0xff]
        %v1426 = vld [vmem:[#allocation2 + $0xa8] sm:$0xff]
        %v1427 = vld [vmem:[#allocation2 + $0xb0] sm:$0xff]
        %v1428 = vld [vmem:[#allocation2 + $0xb8] sm:$0xff]
        %v1429 = vld [vmem:[#allocation2 + $0xc0] sm:$0xff]
        %v1430 = vld [vmem:[#allocation2 + $0xc8] sm:$0xff]
        %v1431 = vld [vmem:[#allocation2 + $0xd0] sm:$0xff]
        %v1432 = vld [vmem:[#allocation2 + $0xd8] sm:$0xff]
        %v1433 = vld [vmem:[#allocation2 + $0xe0] sm:$0xff]
        %v1434 = vld [vmem:[#allocation2 + $0xe8] sm:$0xff]
        %v1435 = vld [vmem:[#allocation2 + $0xf0] sm:$0xff]
        %v1436 = vld [vmem:[#allocation2 + $0xf8] sm:$0xff]
        %v1437 = vld [vmem:[#allocation2 + $0x100] sm:$0xff]
        %v1438 = vld [vmem:[#allocation2 + $0x108] sm:$0xff]
        %v1439 = vld [vmem:[#allocation2 + $0x110] sm:$0xff]
        %v1440 = vld [vmem:[#allocation2 + $0x118] sm:$0xff]
        %v1441 = vld [vmem:[#allocation2 + $0x120] sm:$0xff]
        %v1442 = vld [vmem:[#allocation2 + $0x128] sm:$0xff]
        %v1443 = vld [vmem:[#allocation2 + $0x130] sm:$0xff]
        %v1444 = vld [vmem:[#allocation2 + $0x138] sm:$0xff]
        %v1445 = vld [vmem:[#allocation2 + $0x140] sm:$0xff]
        %v1446 = vld [vmem:[#allocation2 + $0x148] sm:$0xff]
        %v1447 = vld [vmem:[#allocation2 + $0x150] sm:$0xff]
        %v1448 = vld [vmem:[#allocation2 + $0x158] sm:$0xff]
        %v1449 = vld [vmem:[#allocation2 + $0x160] sm:$0xff]
        %v1450 = vld [vmem:[#allocation2 + $0x168] sm:$0xff]
        %v1451 = vld [vmem:[#allocation2 + $0x170] sm:$0xff]
        %v1452 = vld [vmem:[#allocation2 + $0x178] sm:$0xff]
        %v1453 = vld [vmem:[#allocation2 + $0x180] sm:$0xff]
        %v1454 = vld [vmem:[#allocation2 + $0x188] sm:$0xff]
        %v1455 = vld [vmem:[#allocation2 + $0x190] sm:$0xff]
        %v1456 = vld [vmem:[#allocation2 + $0x198] sm:$0xff]
        %v1457 = vld [vmem:[#allocation2 + $0x1a0] sm:$0xff]
        %v1458 = vld [vmem:[#allocation2 + $0x1a8] sm:$0xff]
        %v1459 = vld [vmem:[#allocation2 + $0x1b0] sm:$0xff]
        %v1460 = vld [vmem:[#allocation2 + $0x1b8] sm:$0xff]
        %v1461 = vld [vmem:[#allocation2 + $0x1c0] sm:$0xff]
        %v1462 = vld [vmem:[#allocation2 + $0x1c8] sm:$0xff]
        %v1463 = vld [vmem:[#allocation2 + $0x1d0] sm:$0xff]
        %v1464 = vld [vmem:[#allocation2 + $0x1d8] sm:$0xff]
        %v1465 = vld [vmem:[#allocation2 + $0x1e0] sm:$0xff]
        %v1466 = vld [vmem:[#allocation2 + $0x1e8] sm:$0xff]
        %v1467 = vld [vmem:[#allocation2 + $0x1f0] sm:$0xff]
        %v1468 = vld [vmem:[#allocation2 + $0x1f8] sm:$0xff]
        %v1469 = vld [vmem:[#allocation2 + $0x200] sm:$0xff]
        %v1470 = vld [vmem:[#allocation2 + $0x208] sm:$0xff]
        %v1471 = vld [vmem:[#allocation2 + $0x210] sm:$0xff]
        %v1472 = vld [vmem:[#allocation2 + $0x218] sm:$0xff]
        %v1473 = vld [vmem:[#allocation2 + $0x220] sm:$0xff]
        %v1474 = vld [vmem:[#allocation2 + $0x228] sm:$0xff]
        %v1475 = vld [vmem:[#allocation2 + $0x230] sm:$0xff]
        %v1476 = vld [vmem:[#allocation2 + $0x238] sm:$0xff]
        %v1477 = vld [vmem:[#allocation2 + $0x240] sm:$0xff]
        %v1478 = vld [vmem:[#allocation2 + $0x248] sm:$0xff]
        %v1479 = vld [vmem:[#allocation2 + $0x250] sm:$0xff]
        %v1480 = vld [vmem:[#allocation2 + $0x258] sm:$0xff]
        %v1481 = vld [vmem:[#allocation2 + $0x260] sm:$0xff]
        %v1482 = vld [vmem:[#allocation2 + $0x268] sm:$0xff]
        %v1483 = vld [vmem:[#allocation2 + $0x270] sm:$0xff]
        %v1484 = vld [vmem:[#allocation2 + $0x278] sm:$0xff]
        %v1485 = vld [vmem:[#allocation2 + $0x280] sm:$0xff]
        %v1486 = vld [vmem:[#allocation2 + $0x288] sm:$0xff]
        %v1487 = vld [vmem:[#allocation2 + $0x290] sm:$0xff]
        %v1488 = vld [vmem:[#allocation2 + $0x298] sm:$0xff]
        %v1489 = vld [vmem:[#allocation2 + $0x2a0] sm:$0xff]
        %v1490 = vld [vmem:[#allocation2 + $0x2a8] sm:$0xff]
        %v1491 = vld [vmem:[#allocation2 + $0x2b0] sm:$0xff]
        %v1492 = vld [vmem:[#allocation2 + $0x2b8] sm:$0xff]
        %v1493 = vld [vmem:[#allocation2 + $0x2c0] sm:$0xff]
        %v1494 = vld [vmem:[#allocation2 + $0x2c8] sm:$0xff]
        %v1495 = vld [vmem:[#allocation2 + $0x2d0] sm:$0xff]
        %v1496 = vld [vmem:[#allocation2 + $0x2d8] sm:$0xff]
        %v1497 = vld [vmem:[#allocation2 + $0x2e0] sm:$0xff]
        %v1498 = vld [vmem:[#allocation2 + $0x2e8] sm:$0xff]
        %v1499 = vld [vmem:[#allocation2 + $0x2f0] sm:$0xff]
        %v1500 = vld [vmem:[#allocation2 + $0x2f8] sm:$0xff]
        %v1501 = vld [vmem:[#allocation2 + $0x300] sm:$0xff]
        %v1502 = vld [vmem:[#allocation2 + $0x308] sm:$0xff]
        %v1503 = vld [vmem:[#allocation2 + $0x310] sm:$0xff]
        %v1504 = vld [vmem:[#allocation2 + $0x318] sm:$0xff]
        %v1505 = vld [vmem:[#allocation2 + $0x320] sm:$0xff]
        %v1506 = vld [vmem:[#allocation2 + $0x328] sm:$0xff]
        %v1507 = vld [vmem:[#allocation2 + $0x330] sm:$0xff]
        %v1508 = vld [vmem:[#allocation2 + $0x338] sm:$0xff]
        %v1509 = vld [vmem:[#allocation2 + $0x340] sm:$0xff]
        %v1510 = vld [vmem:[#allocation2 + $0x348] sm:$0xff]
        %v1511 = vld [vmem:[#allocation2 + $0x350] sm:$0xff]
        %v1512 = vld [vmem:[#allocation2 + $0x358] sm:$0xff]
        %v1513 = vld [vmem:[#allocation2 + $0x360] sm:$0xff]
        %v1514 = vld [vmem:[#allocation2 + $0x368] sm:$0xff]
        %v1515 = vld [vmem:[#allocation2 + $0x370] sm:$0xff]
        %v1516 = vld [vmem:[#allocation2 + $0x378] sm:$0xff]
        %v1517 = vld [vmem:[#allocation2 + $0x380] sm:$0xff]
        %v1518 = vld [vmem:[#allocation2 + $0x388] sm:$0xff]
        %v1519 = vld [vmem:[#allocation2 + $0x390] sm:$0xff]
        %v1520 = vld [vmem:[#allocation2 + $0x398] sm:$0xff]
        %v1521 = vld [vmem:[#allocation2 + $0x3a0] sm:$0xff]
        %v1522 = vld [vmem:[#allocation2 + $0x3a8] sm:$0xff]
        %v1523 = vld [vmem:[#allocation2 + $0x3b0] sm:$0xff]
        %v1524 = vld [vmem:[#allocation2 + $0x3b8] sm:$0xff]
        %v1525 = vld [vmem:[#allocation2 + $0x3c0] sm:$0xff]
        %v1526 = vld [vmem:[#allocation2 + $0x3c8] sm:$0xff]
        %v1527 = vld [vmem:[#allocation2 + $0x3d0] sm:$0xff]
        %v1528 = vld [vmem:[#allocation2 + $0x3d8] sm:$0xff]
        %v1529 = vld [vmem:[#allocation2 + $0x3e0] sm:$0xff]
        %v1530 = vld [vmem:[#allocation2 + $0x3e8] sm:$0xff]
        %v1531 = vld [vmem:[#allocation2 + $0x3f0] sm:$0xff]
        %v1532 = vld [vmem:[#allocation2 + $0x3f8] sm:$0xff]
        %v1533 = vld [vmem:[#allocation2 + $0x400] sm:$0xff]
        %v1534 = vld [vmem:[#allocation2 + $0x408] sm:$0xff]
        %v1535 = vld [vmem:[#allocation2 + $0x410] sm:$0xff]
        %v1536 = vld [vmem:[#allocation2 + $0x418] sm:$0xff]
        %v1537 = vld [vmem:[#allocation2 + $0x420] sm:$0xff]
        %v1538 = vld [vmem:[#allocation2 + $0x428] sm:$0xff]
        %v1539 = vld [vmem:[#allocation2 + $0x430] sm:$0xff]
        %v1540 = vld [vmem:[#allocation2 + $0x438] sm:$0xff]
        %v1541 = vld [vmem:[#allocation2 + $0x440] sm:$0xff]
        %v1542 = vld [vmem:[#allocation2 + $0x448] sm:$0xff]
        %v1543 = vld [vmem:[#allocation2 + $0x450] sm:$0xff]
        %v1544 = vld [vmem:[#allocation2 + $0x458] sm:$0xff]
        %v1545 = vld [vmem:[#allocation2 + $0x460] sm:$0xff]
        %v1546 = vld [vmem:[#allocation2 + $0x468] sm:$0xff]
        %v1547 = vld [vmem:[#allocation2 + $0x470] sm:$0xff]
        %v1548 = vld [vmem:[#allocation2 + $0x478] sm:$0xff]
        %v1549 = vld [vmem:[#allocation2 + $0x480] sm:$0xff]
        %v1550 = vld [vmem:[#allocation2 + $0x488] sm:$0xff]
        %v1551 = vld [vmem:[#allocation2 + $0x490] sm:$0xff]
        %v1552 = vld [vmem:[#allocation2 + $0x498] sm:$0xff]
        %v1553 = vld [vmem:[#allocation2 + $0x4a0] sm:$0xff]
        %v1554 = vld [vmem:[#allocation2 + $0x4a8] sm:$0xff]
        %v1555 = vld [vmem:[#allocation2 + $0x4b0] sm:$0xff]
        %v1556 = vld [vmem:[#allocation2 + $0x4b8] sm:$0xff]
        %v1557 = vld [vmem:[#allocation2 + $0x4c0] sm:$0xff]
        %v1558 = vld [vmem:[#allocation2 + $0x4c8] sm:$0xff]
        %v1559 = vld [vmem:[#allocation2 + $0x4d0] sm:$0xff]
        %v1560 = vld [vmem:[#allocation2 + $0x4d8] sm:$0xff]
        %v1561 = vld [vmem:[#allocation2 + $0x4e0] sm:$0xff]
        %v1562 = vld [vmem:[#allocation2 + $0x4e8] sm:$0xff]
        %v1563 = vld [vmem:[#allocation2 + $0x4f0] sm:$0xff]
        %v1564 = vld [vmem:[#allocation2 + $0x4f8] sm:$0xff]
        %v1565 = vld [vmem:[#allocation2 + $0x500] sm:$0xff]
        %v1566 = vld [vmem:[#allocation2 + $0x508] sm:$0xff]
        %v1567 = vld [vmem:[#allocation2 + $0x510] sm:$0xff]
        %v1568 = vld [vmem:[#allocation2 + $0x518] sm:$0xff]
        %v1569 = vld [vmem:[#allocation2 + $0x520] sm:$0xff]
        %v1570 = vld [vmem:[#allocation2 + $0x528] sm:$0xff]
        %v1571 = vld [vmem:[#allocation2 + $0x530] sm:$0xff]
        %v1572 = vld [vmem:[#allocation2 + $0x538] sm:$0xff]
        %v1573 = vld [vmem:[#allocation2 + $0x540] sm:$0xff]
        %v1574 = vld [vmem:[#allocation2 + $0x548] sm:$0xff]
        %v1575 = vld [vmem:[#allocation2 + $0x550] sm:$0xff]
        %v1576 = vld [vmem:[#allocation2 + $0x558] sm:$0xff]
        %v1577 = vld [vmem:[#allocation2 + $0x560] sm:$0xff]
        %v1578 = vld [vmem:[#allocation2 + $0x568] sm:$0xff]
        %v1579 = vld [vmem:[#allocation2 + $0x570] sm:$0xff]
        %v1580 = vld [vmem:[#allocation2 + $0x578] sm:$0xff]
        %v1581 = vld [vmem:[#allocation2 + $0x580] sm:$0xff]
        %v1582 = vld [vmem:[#allocation2 + $0x588] sm:$0xff]
        %v1583 = vld [vmem:[#allocation2 + $0x590] sm:$0xff]
        %v1584 = vld [vmem:[#allocation2 + $0x598] sm:$0xff]
        %v1585 = vld [vmem:[#allocation2 + $0x5a0] sm:$0xff]
        %v1586 = vld [vmem:[#allocation2 + $0x5a8] sm:$0xff]
        %v1587 = vld [vmem:[#allocation2 + $0x5b0] sm:$0xff]
        %v1588 = vld [vmem:[#allocation2 + $0x5b8] sm:$0xff]
        %v1589 = vld [vmem:[#allocation2 + $0x5c0] sm:$0xff]
        %v1590 = vld [vmem:[#allocation2 + $0x5c8] sm:$0xff]
        %v1591 = vld [vmem:[#allocation2 + $0x5d0] sm:$0xff]
        %v1592 = vld [vmem:[#allocation2 + $0x5d8] sm:$0xff]
        %v1593 = vld [vmem:[#allocation2 + $0x5e0] sm:$0xff]
        %v1594 = vld [vmem:[#allocation2 + $0x5e8] sm:$0xff]
        %v1595 = vld [vmem:[#allocation2 + $0x5f0] sm:$0xff]
        %v1596 = vld [vmem:[#allocation2 + $0x5f8] sm:$0xff]
        %v1597 = vld [vmem:[#allocation2 + $0x600] sm:$0xff]
        %v1598 = vld [vmem:[#allocation2 + $0x608] sm:$0xff]
        %v1599 = vld [vmem:[#allocation2 + $0x610] sm:$0xff]
        %v1600 = vld [vmem:[#allocation2 + $0x618] sm:$0xff]
        %v1601 = vld [vmem:[#allocation2 + $0x620] sm:$0xff]
        %v1602 = vld [vmem:[#allocation2 + $0x628] sm:$0xff]
        %v1603 = vld [vmem:[#allocation2 + $0x630] sm:$0xff]
        %v1604 = vld [vmem:[#allocation2 + $0x638] sm:$0xff]
        %v1605 = vld [vmem:[#allocation2 + $0x640] sm:$0xff]
        %v1606 = vld [vmem:[#allocation2 + $0x648] sm:$0xff]
        %v1607 = vld [vmem:[#allocation2 + $0x650] sm:$0xff]
        %v1608 = vld [vmem:[#allocation2 + $0x658] sm:$0xff]
        %v1609 = vld [vmem:[#allocation2 + $0x660] sm:$0xff]
        %v1610 = vld [vmem:[#allocation2 + $0x668] sm:$0xff]
        %v1611 = vld [vmem:[#allocation2 + $0x670] sm:$0xff]
        %v1612 = vld [vmem:[#allocation2 + $0x678] sm:$0xff]
        %v1613 = vld [vmem:[#allocation2 + $0x680] sm:$0xff]
        %v1614 = vld [vmem:[#allocation2 + $0x688] sm:$0xff]
        %v1615 = vld [vmem:[#allocation2 + $0x690] sm:$0xff]
        %v1616 = vld [vmem:[#allocation2 + $0x698] sm:$0xff]
        %v1617 = vld [vmem:[#allocation2 + $0x6a0] sm:$0xff]
        %v1618 = vld [vmem:[#allocation2 + $0x6a8] sm:$0xff]
        %v1619 = vld [vmem:[#allocation2 + $0x6b0] sm:$0xff]
        %v1620 = vld [vmem:[#allocation2 + $0x6b8] sm:$0xff]
        %v1621 = vld [vmem:[#allocation2 + $0x6c0] sm:$0xff]
        %v1622 = vld [vmem:[#allocation2 + $0x6c8] sm:$0xff]
        %v1623 = vld [vmem:[#allocation2 + $0x6d0] sm:$0xff]
        %v1624 = vld [vmem:[#allocation2 + $0x6d8] sm:$0xff]
        %v1625 = vld [vmem:[#allocation2 + $0x6e0] sm:$0xff]
        %v1626 = vld [vmem:[#allocation2 + $0x6e8] sm:$0xff]
        %v1627 = vld [vmem:[#allocation2 + $0x6f0] sm:$0xff]
        %v1628 = vld [vmem:[#allocation2 + $0x6f8] sm:$0xff]
        %v1629 = vld [vmem:[#allocation2 + $0x700] sm:$0xff]
        %v1630 = vld [vmem:[#allocation2 + $0x708] sm:$0xff]
        %v1631 = vld [vmem:[#allocation2 + $0x710] sm:$0xff]
        %v1632 = vld [vmem:[#allocation2 + $0x718] sm:$0xff]
        %v1633 = vld [vmem:[#allocation2 + $0x720] sm:$0xff]
        %v1634 = vld [vmem:[#allocation2 + $0x728] sm:$0xff]
        %v1635 = vld [vmem:[#allocation2 + $0x730] sm:$0xff]
        %v1636 = vld [vmem:[#allocation2 + $0x738] sm:$0xff]
        %v1637 = vld [vmem:[#allocation2 + $0x740] sm:$0xff]
        %v1638 = vld [vmem:[#allocation2 + $0x748] sm:$0xff]
        %v1639 = vld [vmem:[#allocation2 + $0x750] sm:$0xff]
        %v1640 = vld [vmem:[#allocation2 + $0x758] sm:$0xff]
        %v1641 = vld [vmem:[#allocation2 + $0x760] sm:$0xff]
        %v1642 = vld [vmem:[#allocation2 + $0x768] sm:$0xff]
        %v1643 = vld [vmem:[#allocation2 + $0x770] sm:$0xff]
        %v1644 = vld [vmem:[#allocation2 + $0x778] sm:$0xff]
        %v1645 = vld [vmem:[#allocation2 + $0x780] sm:$0xff]
        %v1646 = vld [vmem:[#allocation2 + $0x788] sm:$0xff]
        %v1647 = vld [vmem:[#allocation2 + $0x790] sm:$0xff]
        %v1648 = vld [vmem:[#allocation2 + $0x798] sm:$0xff]
        %v1649 = vld [vmem:[#allocation2 + $0x7a0] sm:$0xff]
        %v1650 = vld [vmem:[#allocation2 + $0x7a8] sm:$0xff]
        %v1651 = vld [vmem:[#allocation2 + $0x7b0] sm:$0xff]
        %v1652 = vld [vmem:[#allocation2 + $0x7b8] sm:$0xff]
        %v1653 = vld [vmem:[#allocation2 + $0x7c0] sm:$0xff]
        %v1654 = vld [vmem:[#allocation2 + $0x7c8] sm:$0xff]
        %v1655 = vld [vmem:[#allocation2 + $0x7d0] sm:$0xff]
        %v1656 = vld [vmem:[#allocation2 + $0x7d8] sm:$0xff]
        %v1657 = vld [vmem:[#allocation2 + $0x7e0] sm:$0xff]
        %v1658 = vld [vmem:[#allocation2 + $0x7e8] sm:$0xff]
        %v1659 = vld [vmem:[#allocation2 + $0x7f0] sm:$0xff]
        %v1660 = vld [vmem:[#allocation2 + $0x7f8] sm:$0xff]
        %v1661 = vld [vmem:[%s9 + $0x7] sm:$0xff]
        %v1663 = vperm.slane %v1661, 0
        %v1664 = vperm.slane %v1661, 1
        %v1665 = vperm.slane %v1661, 2
        %v1666 = vperm.slane %v1661, 3
        %v1667 = vperm.slane %v1661, 4
        %v1668 = vperm.slane %v1661, 5
        %v1669 = vperm.slane %v1661, 6
        %v1670 = vperm.slane %v1661, 7
        %v1935 = vunpack.c.l.b16 %v1405
        %v1936 = vunpack.c.h.b16 %v1405
        %v1937 = vunpack.c.l.b16 %v1406
        %v1938 = vunpack.c.h.b16 %v1406
        %v1939 = vunpack.c.l.b16 %v1407
        %v1940 = vunpack.c.h.b16 %v1407
        %v1941 = vunpack.c.l.b16 %v1408
        %v1942 = vunpack.c.h.b16 %v1408
        %v1943 = vunpack.c.l.b16 %v1409
        %v1944 = vunpack.c.h.b16 %v1409
        %v1945 = vunpack.c.l.b16 %v1410
        %v1946 = vunpack.c.h.b16 %v1410
        %v1947 = vunpack.c.l.b16 %v1411
        %v1948 = vunpack.c.h.b16 %v1411
        %v1949 = vunpack.c.l.b16 %v1412
        %v1950 = vunpack.c.h.b16 %v1412
        %v1951 = vunpack.c.l.b16 %v1413
        %v1952 = vunpack.c.h.b16 %v1413
        %v1953 = vunpack.c.l.b16 %v1414
        %v1954 = vunpack.c.h.b16 %v1414
        %v1955 = vunpack.c.l.b16 %v1415
        %v1956 = vunpack.c.h.b16 %v1415
        %v1957 = vunpack.c.l.b16 %v1416
        %v1958 = vunpack.c.h.b16 %v1416
        %v1959 = vunpack.c.l.b16 %v1417
        %v1960 = vunpack.c.h.b16 %v1417
        %v1961 = vunpack.c.l.b16 %v1418
        %v1962 = vunpack.c.h.b16 %v1418
        %v1963 = vunpack.c.l.b16 %v1419
        %v1964 = vunpack.c.h.b16 %v1419
        %v1965 = vunpack.c.l.b16 %v1420
        %v1966 = vunpack.c.h.b16 %v1420
        %v1967 = vunpack.c.l.b16 %v1421
        %v1968 = vunpack.c.h.b16 %v1421
        %v1969 = vunpack.c.l.b16 %v1422
        %v1970 = vunpack.c.h.b16 %v1422
        %v1971 = vunpack.c.l.b16 %v1423
        %v1972 = vunpack.c.h.b16 %v1423
        %v1973 = vunpack.c.l.b16 %v1424
        %v1974 = vunpack.c.h.b16 %v1424
        %v1975 = vunpack.c.l.b16 %v1425
        %v1976 = vunpack.c.h.b16 %v1425
        %v1977 = vunpack.c.l.b16 %v1426
        %v1978 = vunpack.c.h.b16 %v1426
        %v1979 = vunpack.c.l.b16 %v1427
        %v1980 = vunpack.c.h.b16 %v1427
        %v1981 = vunpack.c.l.b16 %v1428
        %v1982 = vunpack.c.h.b16 %v1428
        %v1983 = vunpack.c.l.b16 %v1429
        %v1984 = vunpack.c.h.b16 %v1429
        %v1985 = vunpack.c.l.b16 %v1430
        %v1986 = vunpack.c.h.b16 %v1430
        %v1987 = vunpack.c.l.b16 %v1431
        %v1988 = vunpack.c.h.b16 %v1431
        %v1989 = vunpack.c.l.b16 %v1432
        %v1990 = vunpack.c.h.b16 %v1432
        %v1991 = vunpack.c.l.b16 %v1433
        %v1992 = vunpack.c.h.b16 %v1433
        %v1993 = vunpack.c.l.b16 %v1434
        %v1994 = vunpack.c.h.b16 %v1434
        %v1995 = vunpack.c.l.b16 %v1435
        %v1996 = vunpack.c.h.b16 %v1435
        %v1997 = vunpack.c.l.b16 %v1436
        %v1998 = vunpack.c.h.b16 %v1436
        %v1999 = vunpack.c.l.b16 %v1437
        %v2000 = vunpack.c.h.b16 %v1437
        %v2001 = vunpack.c.l.b16 %v1438
        %v2002 = vunpack.c.h.b16 %v1438
        %v2003 = vunpack.c.l.b16 %v1439
        %v2004 = vunpack.c.h.b16 %v1439
        %v2005 = vunpack.c.l.b16 %v1440
        %v2006 = vunpack.c.h.b16 %v1440
        %v2007 = vunpack.c.l.b16 %v1441
        %v2008 = vunpack.c.h.b16 %v1441
        %v2009 = vunpack.c.l.b16 %v1442
        %v2010 = vunpack.c.h.b16 %v1442
        %v2011 = vunpack.c.l.b16 %v1443
        %v2012 = vunpack.c.h.b16 %v1443
        %v2013 = vunpack.c.l.b16 %v1444
        %v2014 = vunpack.c.h.b16 %v1444
        %v2015 = vunpack.c.l.b16 %v1445
        %v2016 = vunpack.c.h.b16 %v1445
        %v2017 = vunpack.c.l.b16 %v1446
        %v2018 = vunpack.c.h.b16 %v1446
        %v2019 = vunpack.c.l.b16 %v1447
        %v2020 = vunpack.c.h.b16 %v1447
        %v2021 = vunpack.c.l.b16 %v1448
        %v2022 = vunpack.c.h.b16 %v1448
        %v2023 = vunpack.c.l.b16 %v1449
        %v2024 = vunpack.c.h.b16 %v1449
        %v2025 = vunpack.c.l.b16 %v1450
        %v2026 = vunpack.c.h.b16 %v1450
        %v2027 = vunpack.c.l.b16 %v1451
        %v2028 = vunpack.c.h.b16 %v1451
        %v2029 = vunpack.c.l.b16 %v1452
        %v2030 = vunpack.c.h.b16 %v1452
        %v2031 = vunpack.c.l.b16 %v1453
        %v2032 = vunpack.c.h.b16 %v1453
        %v2033 = vunpack.c.l.b16 %v1454
        %v2034 = vunpack.c.h.b16 %v1454
        %v2035 = vunpack.c.l.b16 %v1455
        %v2036 = vunpack.c.h.b16 %v1455
        %v2037 = vunpack.c.l.b16 %v1456
        %v2038 = vunpack.c.h.b16 %v1456
        %v2039 = vunpack.c.l.b16 %v1457
        %v2040 = vunpack.c.h.b16 %v1457
        %v2041 = vunpack.c.l.b16 %v1458
        %v2042 = vunpack.c.h.b16 %v1458
        %v2043 = vunpack.c.l.b16 %v1459
        %v2044 = vunpack.c.h.b16 %v1459
        %v2045 = vunpack.c.l.b16 %v1460
        %v2046 = vunpack.c.h.b16 %v1460
        %v2047 = vunpack.c.l.b16 %v1461
        %v2048 = vunpack.c.h.b16 %v1461
        %v2049 = vunpack.c.l.b16 %v1462
        %v2050 = vunpack.c.h.b16 %v1462
        %v2051 = vunpack.c.l.b16 %v1463
        %v2052 = vunpack.c.h.b16 %v1463
        %v2053 = vunpack.c.l.b16 %v1464
        %v2054 = vunpack.c.h.b16 %v1464
        %v2055 = vunpack.c.l.b16 %v1465
        %v2056 = vunpack.c.h.b16 %v1465
        %v2057 = vunpack.c.l.b16 %v1466
        %v2058 = vunpack.c.h.b16 %v1466
        %v2059 = vunpack.c.l.b16 %v1467
        %v2060 = vunpack.c.h.b16 %v1467
        %v2061 = vunpack.c.l.b16 %v1468
        %v2062 = vunpack.c.h.b16 %v1468
        %v2063 = vunpack.c.l.b16 %v1469
        %v2064 = vunpack.c.h.b16 %v1469
        %v2065 = vunpack.c.l.b16 %v1470
        %v2066 = vunpack.c.h.b16 %v1470
        %v2067 = vunpack.c.l.b16 %v1471
        %v2068 = vunpack.c.h.b16 %v1471
        %v2069 = vunpack.c.l.b16 %v1472
        %v2070 = vunpack.c.h.b16 %v1472
        %v2071 = vunpack.c.l.b16 %v1473
        %v2072 = vunpack.c.h.b16 %v1473
        %v2073 = vunpack.c.l.b16 %v1474
        %v2074 = vunpack.c.h.b16 %v1474
        %v2075 = vunpack.c.l.b16 %v1475
        %v2076 = vunpack.c.h.b16 %v1475
        %v2077 = vunpack.c.l.b16 %v1476
        %v2078 = vunpack.c.h.b16 %v1476
        %v2079 = vunpack.c.l.b16 %v1477
        %v2080 = vunpack.c.h.b16 %v1477
        %v2081 = vunpack.c.l.b16 %v1478
        %v2082 = vunpack.c.h.b16 %v1478
        %v2083 = vunpack.c.l.b16 %v1479
        %v2084 = vunpack.c.h.b16 %v1479
        %v2085 = vunpack.c.l.b16 %v1480
        %v2086 = vunpack.c.h.b16 %v1480
        %v2087 = vunpack.c.l.b16 %v1481
        %v2088 = vunpack.c.h.b16 %v1481
        %v2089 = vunpack.c.l.b16 %v1482
        %v2090 = vunpack.c.h.b16 %v1482
        %v2091 = vunpack.c.l.b16 %v1483
        %v2092 = vunpack.c.h.b16 %v1483
        %v2093 = vunpack.c.l.b16 %v1484
        %v2094 = vunpack.c.h.b16 %v1484
        %v2095 = vunpack.c.l.b16 %v1485
        %v2096 = vunpack.c.h.b16 %v1485
        %v2097 = vunpack.c.l.b16 %v1486
        %v2098 = vunpack.c.h.b16 %v1486
        %v2099 = vunpack.c.l.b16 %v1487
        %v2100 = vunpack.c.h.b16 %v1487
        %v2101 = vunpack.c.l.b16 %v1488
        %v2102 = vunpack.c.h.b16 %v1488
        %v2103 = vunpack.c.l.b16 %v1489
        %v2104 = vunpack.c.h.b16 %v1489
        %v2105 = vunpack.c.l.b16 %v1490
        %v2106 = vunpack.c.h.b16 %v1490
        %v2107 = vunpack.c.l.b16 %v1491
        %v2108 = vunpack.c.h.b16 %v1491
        %v2109 = vunpack.c.l.b16 %v1492
        %v2110 = vunpack.c.h.b16 %v1492
        %v2111 = vunpack.c.l.b16 %v1493
        %v2112 = vunpack.c.h.b16 %v1493
        %v2113 = vunpack.c.l.b16 %v1494
        %v2114 = vunpack.c.h.b16 %v1494
        %v2115 = vunpack.c.l.b16 %v1495
        %v2116 = vunpack.c.h.b16 %v1495
        %v2117 = vunpack.c.l.b16 %v1496
        %v2118 = vunpack.c.h.b16 %v1496
        %v2119 = vunpack.c.l.b16 %v1497
        %v2120 = vunpack.c.h.b16 %v1497
        %v2121 = vunpack.c.l.b16 %v1498
        %v2122 = vunpack.c.h.b16 %v1498
        %v2123 = vunpack.c.l.b16 %v1499
        %v2124 = vunpack.c.h.b16 %v1499
        %v2125 = vunpack.c.l.b16 %v1500
        %v2126 = vunpack.c.h.b16 %v1500
        %v2127 = vunpack.c.l.b16 %v1501
        %v2128 = vunpack.c.h.b16 %v1501
        %v2129 = vunpack.c.l.b16 %v1502
        %v2130 = vunpack.c.h.b16 %v1502
        %v2131 = vunpack.c.l.b16 %v1503
        %v2132 = vunpack.c.h.b16 %v1503
        %v2133 = vunpack.c.l.b16 %v1504
        %v2134 = vunpack.c.h.b16 %v1504
        %v2135 = vunpack.c.l.b16 %v1505
        %v2136 = vunpack.c.h.b16 %v1505
        %v2137 = vunpack.c.l.b16 %v1506
        %v2138 = vunpack.c.h.b16 %v1506
        %v2139 = vunpack.c.l.b16 %v1507
        %v2140 = vunpack.c.h.b16 %v1507
        %v2141 = vunpack.c.l.b16 %v1508
        %v2142 = vunpack.c.h.b16 %v1508
        %v2143 = vunpack.c.l.b16 %v1509
        %v2144 = vunpack.c.h.b16 %v1509
        %v2145 = vunpack.c.l.b16 %v1510
        %v2146 = vunpack.c.h.b16 %v1510
        %v2147 = vunpack.c.l.b16 %v1511
        %v2148 = vunpack.c.h.b16 %v1511
        %v2149 = vunpack.c.l.b16 %v1512
        %v2150 = vunpack.c.h.b16 %v1512
        %v2151 = vunpack.c.l.b16 %v1513
        %v2152 = vunpack.c.h.b16 %v1513
        %v2153 = vunpack.c.l.b16 %v1514
        %v2154 = vunpack.c.h.b16 %v1514
        %v2155 = vunpack.c.l.b16 %v1515
        %v2156 = vunpack.c.h.b16 %v1515
        %v2157 = vunpack.c.l.b16 %v1516
        %v2158 = vunpack.c.h.b16 %v1516
        %v2159 = vunpack.c.l.b16 %v1517
        %v2160 = vunpack.c.h.b16 %v1517
        %v2161 = vunpack.c.l.b16 %v1518
        %v2162 = vunpack.c.h.b16 %v1518
        %v2163 = vunpack.c.l.b16 %v1519
        %v2164 = vunpack.c.h.b16 %v1519
        %v2165 = vunpack.c.l.b16 %v1520
        %v2166 = vunpack.c.h.b16 %v1520
        %v2167 = vunpack.c.l.b16 %v1521
        %v2168 = vunpack.c.h.b16 %v1521
        %v2169 = vunpack.c.l.b16 %v1522
        %v2170 = vunpack.c.h.b16 %v1522
        %v2171 = vunpack.c.l.b16 %v1523
        %v2172 = vunpack.c.h.b16 %v1523
        %v2173 = vunpack.c.l.b16 %v1524
        %v2174 = vunpack.c.h.b16 %v1524
        %v2175 = vunpack.c.l.b16 %v1525
        %v2176 = vunpack.c.h.b16 %v1525
        %v2177 = vunpack.c.l.b16 %v1526
        %v2178 = vunpack.c.h.b16 %v1526
        %v2179 = vunpack.c.l.b16 %v1527
        %v2180 = vunpack.c.h.b16 %v1527
        %v2181 = vunpack.c.l.b16 %v1528
        %v2182 = vunpack.c.h.b16 %v1528
        %v2183 = vunpack.c.l.b16 %v1529
        %v2184 = vunpack.c.h.b16 %v1529
        %v2185 = vunpack.c.l.b16 %v1530
        %v2186 = vunpack.c.h.b16 %v1530
        %v2187 = vunpack.c.l.b16 %v1531
        %v2188 = vunpack.c.h.b16 %v1531
        %v2189 = vunpack.c.l.b16 %v1532
        %v2190 = vunpack.c.h.b16 %v1532
        %v2191 = vunpack.c.l.b16 %v1533
        %v2192 = vunpack.c.h.b16 %v1533
        %v2193 = vunpack.c.l.b16 %v1534
        %v2194 = vunpack.c.h.b16 %v1534
        %v2195 = vunpack.c.l.b16 %v1535
        %v2196 = vunpack.c.h.b16 %v1535
        %v2197 = vunpack.c.l.b16 %v1536
        %v2198 = vunpack.c.h.b16 %v1536
        %v2199 = vunpack.c.l.b16 %v1537
        %v2200 = vunpack.c.h.b16 %v1537
        %v2201 = vunpack.c.l.b16 %v1538
        %v2202 = vunpack.c.h.b16 %v1538
        %v2203 = vunpack.c.l.b16 %v1539
        %v2204 = vunpack.c.h.b16 %v1539
        %v2205 = vunpack.c.l.b16 %v1540
        %v2206 = vunpack.c.h.b16 %v1540
        %v2207 = vunpack.c.l.b16 %v1541
        %v2208 = vunpack.c.h.b16 %v1541
        %v2209 = vunpack.c.l.b16 %v1542
        %v2210 = vunpack.c.h.b16 %v1542
        %v2211 = vunpack.c.l.b16 %v1543
        %v2212 = vunpack.c.h.b16 %v1543
        %v2213 = vunpack.c.l.b16 %v1544
        %v2214 = vunpack.c.h.b16 %v1544
        %v2215 = vunpack.c.l.b16 %v1545
        %v2216 = vunpack.c.h.b16 %v1545
        %v2217 = vunpack.c.l.b16 %v1546
        %v2218 = vunpack.c.h.b16 %v1546
        %v2219 = vunpack.c.l.b16 %v1547
        %v2220 = vunpack.c.h.b16 %v1547
        %v2221 = vunpack.c.l.b16 %v1548
        %v2222 = vunpack.c.h.b16 %v1548
        %v2223 = vunpack.c.l.b16 %v1549
        %v2224 = vunpack.c.h.b16 %v1549
        %v2225 = vunpack.c.l.b16 %v1550
        %v2226 = vunpack.c.h.b16 %v1550
        %v2227 = vunpack.c.l.b16 %v1551
        %v2228 = vunpack.c.h.b16 %v1551
        %v2229 = vunpack.c.l.b16 %v1552
        %v2230 = vunpack.c.h.b16 %v1552
        %v2231 = vunpack.c.l.b16 %v1553
        %v2232 = vunpack.c.h.b16 %v1553
        %v2233 = vunpack.c.l.b16 %v1554
        %v2234 = vunpack.c.h.b16 %v1554
        %v2235 = vunpack.c.l.b16 %v1555
        %v2236 = vunpack.c.h.b16 %v1555
        %v2237 = vunpack.c.l.b16 %v1556
        %v2238 = vunpack.c.h.b16 %v1556
        %v2239 = vunpack.c.l.b16 %v1557
        %v2240 = vunpack.c.h.b16 %v1557
        %v2241 = vunpack.c.l.b16 %v1558
        %v2242 = vunpack.c.h.b16 %v1558
        %v2243 = vunpack.c.l.b16 %v1559
        %v2244 = vunpack.c.h.b16 %v1559
        %v2245 = vunpack.c.l.b16 %v1560
        %v2246 = vunpack.c.h.b16 %v1560
        %v2247 = vunpack.c.l.b16 %v1561
        %v2248 = vunpack.c.h.b16 %v1561
        %v2249 = vunpack.c.l.b16 %v1562
        %v2250 = vunpack.c.h.b16 %v1562
        %v2251 = vunpack.c.l.b16 %v1563
        %v2252 = vunpack.c.h.b16 %v1563
        %v2253 = vunpack.c.l.b16 %v1564
        %v2254 = vunpack.c.h.b16 %v1564
        %v2255 = vunpack.c.l.b16 %v1565
        %v2256 = vunpack.c.h.b16 %v1565
        %v2257 = vunpack.c.l.b16 %v1566
        %v2258 = vunpack.c.h.b16 %v1566
        %v2259 = vunpack.c.l.b16 %v1567
        %v2260 = vunpack.c.h.b16 %v1567
        %v2261 = vunpack.c.l.b16 %v1568
        %v2262 = vunpack.c.h.b16 %v1568
        %v2263 = vunpack.c.l.b16 %v1569
        %v2264 = vunpack.c.h.b16 %v1569
        %v2265 = vunpack.c.l.b16 %v1570
        %v2266 = vunpack.c.h.b16 %v1570
        %v2267 = vunpack.c.l.b16 %v1571
        %v2268 = vunpack.c.h.b16 %v1571
        %v2269 = vunpack.c.l.b16 %v1572
        %v2270 = vunpack.c.h.b16 %v1572
        %v2271 = vunpack.c.l.b16 %v1573
        %v2272 = vunpack.c.h.b16 %v1573
        %v2273 = vunpack.c.l.b16 %v1574
        %v2274 = vunpack.c.h.b16 %v1574
        %v2275 = vunpack.c.l.b16 %v1575
        %v2276 = vunpack.c.h.b16 %v1575
        %v2277 = vunpack.c.l.b16 %v1576
        %v2278 = vunpack.c.h.b16 %v1576
        %v2279 = vunpack.c.l.b16 %v1577
        %v2280 = vunpack.c.h.b16 %v1577
        %v2281 = vunpack.c.l.b16 %v1578
        %v2282 = vunpack.c.h.b16 %v1578
        %v2283 = vunpack.c.l.b16 %v1579
        %v2284 = vunpack.c.h.b16 %v1579
        %v2285 = vunpack.c.l.b16 %v1580
        %v2286 = vunpack.c.h.b16 %v1580
        %v2287 = vunpack.c.l.b16 %v1581
        %v2288 = vunpack.c.h.b16 %v1581
        %v2289 = vunpack.c.l.b16 %v1582
        %v2290 = vunpack.c.h.b16 %v1582
        %v2291 = vunpack.c.l.b16 %v1583
        %v2292 = vunpack.c.h.b16 %v1583
        %v2293 = vunpack.c.l.b16 %v1584
        %v2294 = vunpack.c.h.b16 %v1584
        %v2295 = vunpack.c.l.b16 %v1585
        %v2296 = vunpack.c.h.b16 %v1585
        %v2297 = vunpack.c.l.b16 %v1586
        %v2298 = vunpack.c.h.b16 %v1586
        %v2299 = vunpack.c.l.b16 %v1587
        %v2300 = vunpack.c.h.b16 %v1587
        %v2301 = vunpack.c.l.b16 %v1588
        %v2302 = vunpack.c.h.b16 %v1588
        %v2303 = vunpack.c.l.b16 %v1589
        %v2304 = vunpack.c.h.b16 %v1589
        %v2305 = vunpack.c.l.b16 %v1590
        %v2306 = vunpack.c.h.b16 %v1590
        %v2307 = vunpack.c.l.b16 %v1591
        %v2308 = vunpack.c.h.b16 %v1591
        %v2309 = vunpack.c.l.b16 %v1592
        %v2310 = vunpack.c.h.b16 %v1592
        %v2311 = vunpack.c.l.b16 %v1593
        %v2312 = vunpack.c.h.b16 %v1593
        %v2313 = vunpack.c.l.b16 %v1594
        %v2314 = vunpack.c.h.b16 %v1594
        %v2315 = vunpack.c.l.b16 %v1595
        %v2316 = vunpack.c.h.b16 %v1595
        %v2317 = vunpack.c.l.b16 %v1596
        %v2318 = vunpack.c.h.b16 %v1596
        %v2319 = vunpack.c.l.b16 %v1597
        %v2320 = vunpack.c.h.b16 %v1597
        %v2321 = vunpack.c.l.b16 %v1598
        %v2322 = vunpack.c.h.b16 %v1598
        %v2323 = vunpack.c.l.b16 %v1599
        %v2324 = vunpack.c.h.b16 %v1599
        %v2325 = vunpack.c.l.b16 %v1600
        %v2326 = vunpack.c.h.b16 %v1600
        %v2327 = vunpack.c.l.b16 %v1601
        %v2328 = vunpack.c.h.b16 %v1601
        %v2329 = vunpack.c.l.b16 %v1602
        %v2330 = vunpack.c.h.b16 %v1602
        %v2331 = vunpack.c.l.b16 %v1603
        %v2332 = vunpack.c.h.b16 %v1603
        %v2333 = vunpack.c.l.b16 %v1604
        %v2334 = vunpack.c.h.b16 %v1604
        %v2335 = vunpack.c.l.b16 %v1605
        %v2336 = vunpack.c.h.b16 %v1605
        %v2337 = vunpack.c.l.b16 %v1606
        %v2338 = vunpack.c.h.b16 %v1606
        %v2339 = vunpack.c.l.b16 %v1607
        %v2340 = vunpack.c.h.b16 %v1607
        %v2341 = vunpack.c.l.b16 %v1608
        %v2342 = vunpack.c.h.b16 %v1608
        %v2343 = vunpack.c.l.b16 %v1609
        %v2344 = vunpack.c.h.b16 %v1609
        %v2345 = vunpack.c.l.b16 %v1610
        %v2346 = vunpack.c.h.b16 %v1610
        %v2347 = vunpack.c.l.b16 %v1611
        %v2348 = vunpack.c.h.b16 %v1611
        %v2349 = vunpack.c.l.b16 %v1612
        %v2350 = vunpack.c.h.b16 %v1612
        %v2351 = vunpack.c.l.b16 %v1613
        %v2352 = vunpack.c.h.b16 %v1613
        %v2353 = vunpack.c.l.b16 %v1614
        %v2354 = vunpack.c.h.b16 %v1614
        %v2355 = vunpack.c.l.b16 %v1615
        %v2356 = vunpack.c.h.b16 %v1615
        %v2357 = vunpack.c.l.b16 %v1616
        %v2358 = vunpack.c.h.b16 %v1616
        %v2359 = vunpack.c.l.b16 %v1617
        %v2360 = vunpack.c.h.b16 %v1617
        %v2361 = vunpack.c.l.b16 %v1618
        %v2362 = vunpack.c.h.b16 %v1618
        %v2363 = vunpack.c.l.b16 %v1619
        %v2364 = vunpack.c.h.b16 %v1619
        %v2365 = vunpack.c.l.b16 %v1620
        %v2366 = vunpack.c.h.b16 %v1620
        %v2367 = vunpack.c.l.b16 %v1621
        %v2368 = vunpack.c.h.b16 %v1621
        %v2369 = vunpack.c.l.b16 %v1622
        %v2370 = vunpack.c.h.b16 %v1622
        %v2371 = vunpack.c.l.b16 %v1623
        %v2372 = vunpack.c.h.b16 %v1623
        %v2373 = vunpack.c.l.b16 %v1624
        %v2374 = vunpack.c.h.b16 %v1624
        %v2375 = vunpack.c.l.b16 %v1625
        %v2376 = vunpack.c.h.b16 %v1625
        %v2377 = vunpack.c.l.b16 %v1626
        %v2378 = vunpack.c.h.b16 %v1626
        %v2379 = vunpack.c.l.b16 %v1627
        %v2380 = vunpack.c.h.b16 %v1627
        %v2381 = vunpack.c.l.b16 %v1628
        %v2382 = vunpack.c.h.b16 %v1628
        %v2383 = vunpack.c.l.b16 %v1629
        %v2384 = vunpack.c.h.b16 %v1629
        %v2385 = vunpack.c.l.b16 %v1630
        %v2386 = vunpack.c.h.b16 %v1630
        %v2387 = vunpack.c.l.b16 %v1631
        %v2388 = vunpack.c.h.b16 %v1631
        %v2389 = vunpack.c.l.b16 %v1632
        %v2390 = vunpack.c.h.b16 %v1632
        %v2391 = vunpack.c.l.b16 %v1633
        %v2392 = vunpack.c.h.b16 %v1633
        %v2393 = vunpack.c.l.b16 %v1634
        %v2394 = vunpack.c.h.b16 %v1634
        %v2395 = vunpack.c.l.b16 %v1635
        %v2396 = vunpack.c.h.b16 %v1635
        %v2397 = vunpack.c.l.b16 %v1636
        %v2398 = vunpack.c.h.b16 %v1636
        %v2399 = vunpack.c.l.b16 %v1637
        %v2400 = vunpack.c.h.b16 %v1637
        %v2401 = vunpack.c.l.b16 %v1638
        %v2402 = vunpack.c.h.b16 %v1638
        %v2403 = vunpack.c.l.b16 %v1639
        %v2404 = vunpack.c.h.b16 %v1639
        %v2405 = vunpack.c.l.b16 %v1640
        %v2406 = vunpack.c.h.b16 %v1640
        %v2407 = vunpack.c.l.b16 %v1641
        %v2408 = vunpack.c.h.b16 %v1641
        %v2409 = vunpack.c.l.b16 %v1642
        %v2410 = vunpack.c.h.b16 %v1642
        %v2411 = vunpack.c.l.b16 %v1643
        %v2412 = vunpack.c.h.b16 %v1643
        %v2413 = vunpack.c.l.b16 %v1644
        %v2414 = vunpack.c.h.b16 %v1644
        %v2415 = vunpack.c.l.b16 %v1645
        %v2416 = vunpack.c.h.b16 %v1645
        %v2417 = vunpack.c.l.b16 %v1646
        %v2418 = vunpack.c.h.b16 %v1646
        %v2419 = vunpack.c.l.b16 %v1647
        %v2420 = vunpack.c.h.b16 %v1647
        %v2421 = vunpack.c.l.b16 %v1648
        %v2422 = vunpack.c.h.b16 %v1648
        %v2423 = vunpack.c.l.b16 %v1649
        %v2424 = vunpack.c.h.b16 %v1649
        %v2425 = vunpack.c.l.b16 %v1650
        %v2426 = vunpack.c.h.b16 %v1650
        %v2427 = vunpack.c.l.b16 %v1651
        %v2428 = vunpack.c.h.b16 %v1651
        %v2429 = vunpack.c.l.b16 %v1652
        %v2430 = vunpack.c.h.b16 %v1652
        %v2431 = vunpack.c.l.b16 %v1653
        %v2432 = vunpack.c.h.b16 %v1653
        %v2433 = vunpack.c.l.b16 %v1654
        %v2434 = vunpack.c.h.b16 %v1654
        %v2435 = vunpack.c.l.b16 %v1655
        %v2436 = vunpack.c.h.b16 %v1655
        %v2437 = vunpack.c.l.b16 %v1656
        %v2438 = vunpack.c.h.b16 %v1656
        %v2439 = vunpack.c.l.b16 %v1657
        %v2440 = vunpack.c.h.b16 %v1657
        %v2441 = vunpack.c.l.b16 %v1658
        %v2442 = vunpack.c.h.b16 %v1658
        %v2443 = vunpack.c.l.b16 %v1659
        %v2444 = vunpack.c.h.b16 %v1659
        %v2445 = vunpack.c.l.b16 %v1660
        %v2446 = vunpack.c.h.b16 %v1660
        %v2447 = vpack.c.b16 %v1943, %v1935
        %v2448 = vpack.c.b16 %v1944, %v1936
        %v2449 = vpack.c.b16 %v1945, %v1937
        %v2450 = vpack.c.b16 %v1946, %v1938
        %v2451 = vpack.c.b16 %v1947, %v1939
        %v2452 = vpack.c.b16 %v1948, %v1940
        %v2453 = vpack.c.b16 %v1949, %v1941
        %v2454 = vpack.c.b16 %v1950, %v1942
        %v2455 = vpack.c.b16 %v1959, %v1951
        %v2456 = vpack.c.b16 %v1960, %v1952
        %v2457 = vpack.c.b16 %v1961, %v1953
        %v2458 = vpack.c.b16 %v1962, %v1954
        %v2459 = vpack.c.b16 %v1963, %v1955
        %v2460 = vpack.c.b16 %v1964, %v1956
        %v2461 = vpack.c.b16 %v1965, %v1957
        %v2462 = vpack.c.b16 %v1966, %v1958
        %v2463 = vpack.c.b16 %v1975, %v1967
        %v2464 = vpack.c.b16 %v1976, %v1968
        %v2465 = vpack.c.b16 %v1977, %v1969
        %v2466 = vpack.c.b16 %v1978, %v1970
        %v2467 = vpack.c.b16 %v1979, %v1971
        %v2468 = vpack.c.b16 %v1980, %v1972
        %v2469 = vpack.c.b16 %v1981, %v1973
        %v2470 = vpack.c.b16 %v1982, %v1974
        %v2471 = vpack.c.b16 %v1991, %v1983
        %v2472 = vpack.c.b16 %v1992, %v1984
        %v2473 = vpack.c.b16 %v1993, %v1985
        %v2474 = vpack.c.b16 %v1994, %v1986
        %v2475 = vpack.c.b16 %v1995, %v1987
        %v2476 = vpack.c.b16 %v1996, %v1988
        %v2477 = vpack.c.b16 %v1997, %v1989
        %v2478 = vpack.c.b16 %v1998, %v1990
        %v2479 = vpack.c.b16 %v2007, %v1999
        %v2480 = vpack.c.b16 %v2008, %v2000
        %v2481 = vpack.c.b16 %v2009, %v2001
        %v2482 = vpack.c.b16 %v2010, %v2002
        %v2483 = vpack.c.b16 %v2011, %v2003
        %v2484 = vpack.c.b16 %v2012, %v2004
        %v2485 = vpack.c.b16 %v2013, %v2005
        %v2486 = vpack.c.b16 %v2014, %v2006
        %v2487 = vpack.c.b16 %v2023, %v2015
        %v2488 = vpack.c.b16 %v2024, %v2016
        %v2489 = vpack.c.b16 %v2025, %v2017
        %v2490 = vpack.c.b16 %v2026, %v2018
        %v2491 = vpack.c.b16 %v2027, %v2019
        %v2492 = vpack.c.b16 %v2028, %v2020
        %v2493 = vpack.c.b16 %v2029, %v2021
        %v2494 = vpack.c.b16 %v2030, %v2022
        %v2495 = vpack.c.b16 %v2039, %v2031
        %v2496 = vpack.c.b16 %v2040, %v2032
        %v2497 = vpack.c.b16 %v2041, %v2033
        %v2498 = vpack.c.b16 %v2042, %v2034
        %v2499 = vpack.c.b16 %v2043, %v2035
        %v2500 = vpack.c.b16 %v2044, %v2036
        %v2501 = vpack.c.b16 %v2045, %v2037
        %v2502 = vpack.c.b16 %v2046, %v2038
        %v2503 = vpack.c.b16 %v2055, %v2047
        %v2504 = vpack.c.b16 %v2056, %v2048
        %v2505 = vpack.c.b16 %v2057, %v2049
        %v2506 = vpack.c.b16 %v2058, %v2050
        %v2507 = vpack.c.b16 %v2059, %v2051
        %v2508 = vpack.c.b16 %v2060, %v2052
        %v2509 = vpack.c.b16 %v2061, %v2053
        %v2510 = vpack.c.b16 %v2062, %v2054
        %v2511 = vpack.c.b16 %v2071, %v2063
        %v2512 = vpack.c.b16 %v2072, %v2064
        %v2513 = vpack.c.b16 %v2073, %v2065
        %v2514 = vpack.c.b16 %v2074, %v2066
        %v2515 = vpack.c.b16 %v2075, %v2067
        %v2516 = vpack.c.b16 %v2076, %v2068
        %v2517 = vpack.c.b16 %v2077, %v2069
        %v2518 = vpack.c.b16 %v2078, %v2070
        %v2519 = vpack.c.b16 %v2087, %v2079
        %v2520 = vpack.c.b16 %v2088, %v2080
        %v2521 = vpack.c.b16 %v2089, %v2081
        %v2522 = vpack.c.b16 %v2090, %v2082
        %v2523 = vpack.c.b16 %v2091, %v2083
        %v2524 = vpack.c.b16 %v2092, %v2084
        %v2525 = vpack.c.b16 %v2093, %v2085
        %v2526 = vpack.c.b16 %v2094, %v2086
        %v2527 = vpack.c.b16 %v2103, %v2095
        %v2528 = vpack.c.b16 %v2104, %v2096
        %v2529 = vpack.c.b16 %v2105, %v2097
        %v2530 = vpack.c.b16 %v2106, %v2098
        %v2531 = vpack.c.b16 %v2107, %v2099
        %v2532 = vpack.c.b16 %v2108, %v2100
        %v2533 = vpack.c.b16 %v2109, %v2101
        %v2534 = vpack.c.b16 %v2110, %v2102
        %v2535 = vpack.c.b16 %v2119, %v2111
        %v2536 = vpack.c.b16 %v2120, %v2112
        %v2537 = vpack.c.b16 %v2121, %v2113
        %v2538 = vpack.c.b16 %v2122, %v2114
        %v2539 = vpack.c.b16 %v2123, %v2115
        %v2540 = vpack.c.b16 %v2124, %v2116
        %v2541 = vpack.c.b16 %v2125, %v2117
        %v2542 = vpack.c.b16 %v2126, %v2118
        %v2543 = vpack.c.b16 %v2135, %v2127
        %v2544 = vpack.c.b16 %v2136, %v2128
        %v2545 = vpack.c.b16 %v2137, %v2129
        %v2546 = vpack.c.b16 %v2138, %v2130
        %v2547 = vpack.c.b16 %v2139, %v2131
        %v2548 = vpack.c.b16 %v2140, %v2132
        %v2549 = vpack.c.b16 %v2141, %v2133
        %v2550 = vpack.c.b16 %v2142, %v2134
        %v2551 = vpack.c.b16 %v2151, %v2143
        %v2552 = vpack.c.b16 %v2152, %v2144
        %v2553 = vpack.c.b16 %v2153, %v2145
        %v2554 = vpack.c.b16 %v2154, %v2146
        %v2555 = vpack.c.b16 %v2155, %v2147
        %v2556 = vpack.c.b16 %v2156, %v2148
        %v2557 = vpack.c.b16 %v2157, %v2149
        %v2558 = vpack.c.b16 %v2158, %v2150
        %v2559 = vpack.c.b16 %v2167, %v2159
        %v2560 = vpack.c.b16 %v2168, %v2160
        %v2561 = vpack.c.b16 %v2169, %v2161
        %v2562 = vpack.c.b16 %v2170, %v2162
        %v2563 = vpack.c.b16 %v2171, %v2163
        %v2564 = vpack.c.b16 %v2172, %v2164
        %v2565 = vpack.c.b16 %v2173, %v2165
        %v2566 = vpack.c.b16 %v2174, %v2166
        %v2567 = vpack.c.b16 %v2183, %v2175
        %v2568 = vpack.c.b16 %v2184, %v2176
        %v2569 = vpack.c.b16 %v2185, %v2177
        %v2570 = vpack.c.b16 %v2186, %v2178
        %v2571 = vpack.c.b16 %v2187, %v2179
        %v2572 = vpack.c.b16 %v2188, %v2180
        %v2573 = vpack.c.b16 %v2189, %v2181
        %v2574 = vpack.c.b16 %v2190, %v2182
        %v2575 = vpack.c.b16 %v2199, %v2191
        %v2576 = vpack.c.b16 %v2200, %v2192
        %v2577 = vpack.c.b16 %v2201, %v2193
        %v2578 = vpack.c.b16 %v2202, %v2194
        %v2579 = vpack.c.b16 %v2203, %v2195
        %v2580 = vpack.c.b16 %v2204, %v2196
        %v2581 = vpack.c.b16 %v2205, %v2197
        %v2582 = vpack.c.b16 %v2206, %v2198
        %v2583 = vpack.c.b16 %v2215, %v2207
        %v2584 = vpack.c.b16 %v2216, %v2208
        %v2585 = vpack.c.b16 %v2217, %v2209
        %v2586 = vpack.c.b16 %v2218, %v2210
        %v2587 = vpack.c.b16 %v2219, %v2211
        %v2588 = vpack.c.b16 %v2220, %v2212
        %v2589 = vpack.c.b16 %v2221, %v2213
        %v2590 = vpack.c.b16 %v2222, %v2214
        %v2591 = vpack.c.b16 %v2231, %v2223
        %v2592 = vpack.c.b16 %v2232, %v2224
        %v2593 = vpack.c.b16 %v2233, %v2225
        %v2594 = vpack.c.b16 %v2234, %v2226
        %v2595 = vpack.c.b16 %v2235, %v2227
        %v2596 = vpack.c.b16 %v2236, %v2228
        %v2597 = vpack.c.b16 %v2237, %v2229
        %v2598 = vpack.c.b16 %v2238, %v2230
        %v2599 = vpack.c.b16 %v2247, %v2239
        %v2600 = vpack.c.b16 %v2248, %v2240
        %v2601 = vpack.c.b16 %v2249, %v2241
        %v2602 = vpack.c.b16 %v2250, %v2242
        %v2603 = vpack.c.b16 %v2251, %v2243
        %v2604 = vpack.c.b16 %v2252, %v2244
        %v2605 = vpack.c.b16 %v2253, %v2245
        %v2606 = vpack.c.b16 %v2254, %v2246
        %v2607 = vpack.c.b16 %v2263, %v2255
        %v2608 = vpack.c.b16 %v2264, %v2256
        %v2609 = vpack.c.b16 %v2265, %v2257
        %v2610 = vpack.c.b16 %v2266, %v2258
        %v2611 = vpack.c.b16 %v2267, %v2259
        %v2612 = vpack.c.b16 %v2268, %v2260
        %v2613 = vpack.c.b16 %v2269, %v2261
        %v2614 = vpack.c.b16 %v2270, %v2262
        %v2615 = vpack.c.b16 %v2279, %v2271
        %v2616 = vpack.c.b16 %v2280, %v2272
        %v2617 = vpack.c.b16 %v2281, %v2273
        %v2618 = vpack.c.b16 %v2282, %v2274
        %v2619 = vpack.c.b16 %v2283, %v2275
        %v2620 = vpack.c.b16 %v2284, %v2276
        %v2621 = vpack.c.b16 %v2285, %v2277
        %v2622 = vpack.c.b16 %v2286, %v2278
        %v2623 = vpack.c.b16 %v2295, %v2287
        %v2624 = vpack.c.b16 %v2296, %v2288
        %v2625 = vpack.c.b16 %v2297, %v2289
        %v2626 = vpack.c.b16 %v2298, %v2290
        %v2627 = vpack.c.b16 %v2299, %v2291
        %v2628 = vpack.c.b16 %v2300, %v2292
        %v2629 = vpack.c.b16 %v2301, %v2293
        %v2630 = vpack.c.b16 %v2302, %v2294
        %v2631 = vpack.c.b16 %v2311, %v2303
        %v2632 = vpack.c.b16 %v2312, %v2304
        %v2633 = vpack.c.b16 %v2313, %v2305
        %v2634 = vpack.c.b16 %v2314, %v2306
        %v2635 = vpack.c.b16 %v2315, %v2307
        %v2636 = vpack.c.b16 %v2316, %v2308
        %v2637 = vpack.c.b16 %v2317, %v2309
        %v2638 = vpack.c.b16 %v2318, %v2310
        %v2639 = vpack.c.b16 %v2327, %v2319
        %v2640 = vpack.c.b16 %v2328, %v2320
        %v2641 = vpack.c.b16 %v2329, %v2321
        %v2642 = vpack.c.b16 %v2330, %v2322
        %v2643 = vpack.c.b16 %v2331, %v2323
        %v2644 = vpack.c.b16 %v2332, %v2324
        %v2645 = vpack.c.b16 %v2333, %v2325
        %v2646 = vpack.c.b16 %v2334, %v2326
        %v2647 = vpack.c.b16 %v2343, %v2335
        %v2648 = vpack.c.b16 %v2344, %v2336
        %v2649 = vpack.c.b16 %v2345, %v2337
        %v2650 = vpack.c.b16 %v2346, %v2338
        %v2651 = vpack.c.b16 %v2347, %v2339
        %v2652 = vpack.c.b16 %v2348, %v2340
        %v2653 = vpack.c.b16 %v2349, %v2341
        %v2654 = vpack.c.b16 %v2350, %v2342
        %v2655 = vpack.c.b16 %v2359, %v2351
        %v2656 = vpack.c.b16 %v2360, %v2352
        %v2657 = vpack.c.b16 %v2361, %v2353
        %v2658 = vpack.c.b16 %v2362, %v2354
        %v2659 = vpack.c.b16 %v2363, %v2355
        %v2660 = vpack.c.b16 %v2364, %v2356
        %v2661 = vpack.c.b16 %v2365, %v2357
        %v2662 = vpack.c.b16 %v2366, %v2358
        %v2663 = vpack.c.b16 %v2375, %v2367
        %v2664 = vpack.c.b16 %v2376, %v2368
        %v2665 = vpack.c.b16 %v2377, %v2369
        %v2666 = vpack.c.b16 %v2378, %v2370
        %v2667 = vpack.c.b16 %v2379, %v2371
        %v2668 = vpack.c.b16 %v2380, %v2372
        %v2669 = vpack.c.b16 %v2381, %v2373
        %v2670 = vpack.c.b16 %v2382, %v2374
        %v2671 = vpack.c.b16 %v2391, %v2383
        %v2672 = vpack.c.b16 %v2392, %v2384
        %v2673 = vpack.c.b16 %v2393, %v2385
        %v2674 = vpack.c.b16 %v2394, %v2386
        %v2675 = vpack.c.b16 %v2395, %v2387
        %v2676 = vpack.c.b16 %v2396, %v2388
        %v2677 = vpack.c.b16 %v2397, %v2389
        %v2678 = vpack.c.b16 %v2398, %v2390
        %v2679 = vpack.c.b16 %v2407, %v2399
        %v2680 = vpack.c.b16 %v2408, %v2400
        %v2681 = vpack.c.b16 %v2409, %v2401
        %v2682 = vpack.c.b16 %v2410, %v2402
        %v2683 = vpack.c.b16 %v2411, %v2403
        %v2684 = vpack.c.b16 %v2412, %v2404
        %v2685 = vpack.c.b16 %v2413, %v2405
        %v2686 = vpack.c.b16 %v2414, %v2406
        %v2687 = vpack.c.b16 %v2423, %v2415
        %v2688 = vpack.c.b16 %v2424, %v2416
        %v2689 = vpack.c.b16 %v2425, %v2417
        %v2690 = vpack.c.b16 %v2426, %v2418
        %v2691 = vpack.c.b16 %v2427, %v2419
        %v2692 = vpack.c.b16 %v2428, %v2420
        %v2693 = vpack.c.b16 %v2429, %v2421
        %v2694 = vpack.c.b16 %v2430, %v2422
        %v2695 = vpack.c.b16 %v2439, %v2431
        %v2696 = vpack.c.b16 %v2440, %v2432
        %v2697 = vpack.c.b16 %v2441, %v2433
        %v2698 = vpack.c.b16 %v2442, %v2434
        %v2699 = vpack.c.b16 %v2443, %v2435
        %v2700 = vpack.c.b16 %v2444, %v2436
        %v2701 = vpack.c.b16 %v2445, %v2437
        %v2702 = vpack.c.b16 %v2446, %v2438
        %2959 = vmatpush.bf16.msra.mxu0 %v2503
        %2960 = vmatpush.bf16.msra.mxu0 %v2495
        %2961 = vmatpush.bf16.msra.mxu0 %v2487
        %2962 = vmatpush.bf16.msra.mxu0 %v2479
        %2963 = vmatpush.bf16.msra.mxu0 %v2471
        %2964 = vmatpush.bf16.msra.mxu0 %v2463
        %2965 = vmatpush.bf16.msra.mxu0 %v2455
        %2966 = vmatpush.bf16.msra.mxu0 %v2447
        %2967 = vmatmul.bf16.gmra.mxu0 %v1401
        %v2968 = vpop.f32.mrf.mxu0
        %v2969 = vadd.f32 %v1663, %v2968
        %v2970 = vpop.f32.mrf.mxu0
        %2971 = vdwg.mxu0
        %2972 = vmatpush.bf16.msra.mxu0 %v2567
        %2973 = vmatpush.bf16.msra.mxu0 %v2559
        %2974 = vmatpush.bf16.msra.mxu0 %v2551
        %2975 = vmatpush.bf16.msra.mxu0 %v2543
        %2976 = vmatpush.bf16.msra.mxu0 %v2535
        %2977 = vmatpush.bf16.msra.mxu0 %v2527
        %2978 = vmatpush.bf16.msra.mxu0 %v2519
        %2979 = vmatpush.bf16.msra.mxu0 %v2511
        %2980 = vmatmul.bf16.gmra.mxu0 %v1402
        %v2981 = vpop.f32.mrf.mxu0
        %v2982 = vadd.f32 %v2969, %v2981
        %v2983 = vpop.f32.mrf.mxu0
        %2984 = vdwg.mxu0
        %2985 = vmatpush.bf16.msra.mxu0 %v2631
        %2986 = vmatpush.bf16.msra.mxu0 %v2623
        %2987 = vmatpush.bf16.msra.mxu0 %v2615
        %2988 = vmatpush.bf16.msra.mxu0 %v2607
        %2989 = vmatpush.bf16.msra.mxu0 %v2599
        %2990 = vmatpush.bf16.msra.mxu0 %v2591
        %2991 = vmatpush.bf16.msra.mxu0 %v2583
        %2992 = vmatpush.bf16.msra.mxu0 %v2575
        %2993 = vmatmul.bf16.gmra.mxu0 %v1403
        %v2994 = vpop.f32.mrf.mxu0
        %v2995 = vadd.f32 %v2982, %v2994
        %v2996 = vpop.f32.mrf.mxu0
        %2997 = vdwg.mxu0
        %2998 = vmatpush.bf16.msra.mxu0 %v2695
        %2999 = vmatpush.bf16.msra.mxu0 %v2687
        %3000 = vmatpush.bf16.msra.mxu0 %v2679
        %3001 = vmatpush.bf16.msra.mxu0 %v2671
        %3002 = vmatpush.bf16.msra.mxu0 %v2663
        %3003 = vmatpush.bf16.msra.mxu0 %v2655
        %3004 = vmatpush.bf16.msra.mxu0 %v2647
        %3005 = vmatpush.bf16.msra.mxu0 %v2639
        %3006 = vmatmul.bf16.gmra.mxu0 %v1404
        %v3007 = vpop.f32.mrf.mxu0
        %v3008 = vadd.f32 %v2995, %v3007
        %v3009 = vpop.f32.mrf.mxu0
        %3010 = vdwg.mxu0
        %3011 = vmatpush.bf16.msra.mxu0 %v2504
        %3012 = vmatpush.bf16.msra.mxu0 %v2496
        %3013 = vmatpush.bf16.msra.mxu0 %v2488
        %3014 = vmatpush.bf16.msra.mxu0 %v2480
        %3015 = vmatpush.bf16.msra.mxu0 %v2472
        %3016 = vmatpush.bf16.msra.mxu0 %v2464
        %3017 = vmatpush.bf16.msra.mxu0 %v2456
        %3018 = vmatpush.bf16.msra.mxu0 %v2448
        %3019 = vmatmul.bf16.gmra.mxu0 %v1401
        %v3020 = vpop.f32.mrf.mxu0
        %v3021 = vadd.f32 %v1664, %v3020
        %v3022 = vpop.f32.mrf.mxu0
        %3023 = vdwg.mxu0
        %3024 = vmatpush.bf16.msra.mxu0 %v2568
        %3025 = vmatpush.bf16.msra.mxu0 %v2560
        %3026 = vmatpush.bf16.msra.mxu0 %v2552
        %3027 = vmatpush.bf16.msra.mxu0 %v2544
        %3028 = vmatpush.bf16.msra.mxu0 %v2536
        %3029 = vmatpush.bf16.msra.mxu0 %v2528
        %3030 = vmatpush.bf16.msra.mxu0 %v2520
        %3031 = vmatpush.bf16.msra.mxu0 %v2512
        %3032 = vmatmul.bf16.gmra.mxu0 %v1402
        %v3033 = vpop.f32.mrf.mxu0
        %v3034 = vadd.f32 %v3021, %v3033
        %v3035 = vpop.f32.mrf.mxu0
        %3036 = vdwg.mxu0
        %3037 = vmatpush.bf16.msra.mxu0 %v2632
        %3038 = vmatpush.bf16.msra.mxu0 %v2624
        %3039 = vmatpush.bf16.msra.mxu0 %v2616
        %3040 = vmatpush.bf16.msra.mxu0 %v2608
        %3041 = vmatpush.bf16.msra.mxu0 %v2600
        %3042 = vmatpush.bf16.msra.mxu0 %v2592
        %3043 = vmatpush.bf16.msra.mxu0 %v2584
        %3044 = vmatpush.bf16.msra.mxu0 %v2576
        %3045 = vmatmul.bf16.gmra.mxu0 %v1403
        %v3046 = vpop.f32.mrf.mxu0
        %v3047 = vadd.f32 %v3034, %v3046
        %v3048 = vpop.f32.mrf.mxu0
        %3049 = vdwg.mxu0
        %3050 = vmatpush.bf16.msra.mxu0 %v2696
        %3051 = vmatpush.bf16.msra.mxu0 %v2688
        %3052 = vmatpush.bf16.msra.mxu0 %v2680
        %3053 = vmatpush.bf16.msra.mxu0 %v2672
        %3054 = vmatpush.bf16.msra.mxu0 %v2664
        %3055 = vmatpush.bf16.msra.mxu0 %v2656
        %3056 = vmatpush.bf16.msra.mxu0 %v2648
        %3057 = vmatpush.bf16.msra.mxu0 %v2640
        %3058 = vmatmul.bf16.gmra.mxu0 %v1404
        %v3059 = vpop.f32.mrf.mxu0
        %v3060 = vadd.f32 %v3047, %v3059
        %v3061 = vpop.f32.mrf.mxu0
        %3062 = vdwg.mxu0
        %3063 = vmatpush.bf16.msra.mxu0 %v2505
        %3064 = vmatpush.bf16.msra.mxu0 %v2497
        %3065 = vmatpush.bf16.msra.mxu0 %v2489
        %3066 = vmatpush.bf16.msra.mxu0 %v2481
        %3067 = vmatpush.bf16.msra.mxu0 %v2473
        %3068 = vmatpush.bf16.msra.mxu0 %v2465
        %3069 = vmatpush.bf16.msra.mxu0 %v2457
        %3070 = vmatpush.bf16.msra.mxu0 %v2449
        %3071 = vmatmul.bf16.gmra.mxu0 %v1401
        %v3072 = vpop.f32.mrf.mxu0
        %v3073 = vadd.f32 %v1665, %v3072
        %v3074 = vpop.f32.mrf.mxu0
        %3075 = vdwg.mxu0
        %3076 = vmatpush.bf16.msra.mxu0 %v2569
        %3077 = vmatpush.bf16.msra.mxu0 %v2561
        %3078 = vmatpush.bf16.msra.mxu0 %v2553
        %3079 = vmatpush.bf16.msra.mxu0 %v2545
        %3080 = vmatpush.bf16.msra.mxu0 %v2537
        %3081 = vmatpush.bf16.msra.mxu0 %v2529
        %3082 = vmatpush.bf16.msra.mxu0 %v2521
        %3083 = vmatpush.bf16.msra.mxu0 %v2513
        %3084 = vmatmul.bf16.gmra.mxu0 %v1402
        %v3085 = vpop.f32.mrf.mxu0
        %v3086 = vadd.f32 %v3073, %v3085
        %v3087 = vpop.f32.mrf.mxu0
        %3088 = vdwg.mxu0
        %3089 = vmatpush.bf16.msra.mxu0 %v2633
        %3090 = vmatpush.bf16.msra.mxu0 %v2625
        %3091 = vmatpush.bf16.msra.mxu0 %v2617
        %3092 = vmatpush.bf16.msra.mxu0 %v2609
        %3093 = vmatpush.bf16.msra.mxu0 %v2601
        %3094 = vmatpush.bf16.msra.mxu0 %v2593
        %3095 = vmatpush.bf16.msra.mxu0 %v2585
        %3096 = vmatpush.bf16.msra.mxu0 %v2577
        %3097 = vmatmul.bf16.gmra.mxu0 %v1403
        %v3098 = vpop.f32.mrf.mxu0
        %v3099 = vadd.f32 %v3086, %v3098
        %v3100 = vpop.f32.mrf.mxu0
        %3101 = vdwg.mxu0
        %3102 = vmatpush.bf16.msra.mxu0 %v2697
        %3103 = vmatpush.bf16.msra.mxu0 %v2689
        %3104 = vmatpush.bf16.msra.mxu0 %v2681
        %3105 = vmatpush.bf16.msra.mxu0 %v2673
        %3106 = vmatpush.bf16.msra.mxu0 %v2665
        %3107 = vmatpush.bf16.msra.mxu0 %v2657
        %3108 = vmatpush.bf16.msra.mxu0 %v2649
        %3109 = vmatpush.bf16.msra.mxu0 %v2641
        %3110 = vmatmul.bf16.gmra.mxu0 %v1404
        %v3111 = vpop.f32.mrf.mxu0
        %v3112 = vadd.f32 %v3099, %v3111
        %v3113 = vpop.f32.mrf.mxu0
        %3114 = vdwg.mxu0
        %3115 = vmatpush.bf16.msra.mxu0 %v2506
        %3116 = vmatpush.bf16.msra.mxu0 %v2498
        %3117 = vmatpush.bf16.msra.mxu0 %v2490
        %3118 = vmatpush.bf16.msra.mxu0 %v2482
        %3119 = vmatpush.bf16.msra.mxu0 %v2474
        %3120 = vmatpush.bf16.msra.mxu0 %v2466
        %3121 = vmatpush.bf16.msra.mxu0 %v2458
        %3122 = vmatpush.bf16.msra.mxu0 %v2450
        %3123 = vmatmul.bf16.gmra.mxu0 %v1401
        %v3124 = vpop.f32.mrf.mxu0
        %v3125 = vadd.f32 %v1666, %v3124
        %v3126 = vpop.f32.mrf.mxu0
        %3127 = vdwg.mxu0
        %3128 = vmatpush.bf16.msra.mxu0 %v2570
        %3129 = vmatpush.bf16.msra.mxu0 %v2562
        %3130 = vmatpush.bf16.msra.mxu0 %v2554
        %3131 = vmatpush.bf16.msra.mxu0 %v2546
        %3132 = vmatpush.bf16.msra.mxu0 %v2538
        %3133 = vmatpush.bf16.msra.mxu0 %v2530
        %3134 = vmatpush.bf16.msra.mxu0 %v2522
        %3135 = vmatpush.bf16.msra.mxu0 %v2514
        %3136 = vmatmul.bf16.gmra.mxu0 %v1402
        %v3137 = vpop.f32.mrf.mxu0
        %v3138 = vadd.f32 %v3125, %v3137
        %v3139 = vpop.f32.mrf.mxu0
        %3140 = vdwg.mxu0
        %3141 = vmatpush.bf16.msra.mxu0 %v2634
        %3142 = vmatpush.bf16.msra.mxu0 %v2626
        %3143 = vmatpush.bf16.msra.mxu0 %v2618
        %3144 = vmatpush.bf16.msra.mxu0 %v2610
        %3145 = vmatpush.bf16.msra.mxu0 %v2602
        %3146 = vmatpush.bf16.msra.mxu0 %v2594
        %3147 = vmatpush.bf16.msra.mxu0 %v2586
        %3148 = vmatpush.bf16.msra.mxu0 %v2578
        %3149 = vmatmul.bf16.gmra.mxu0 %v1403
        %v3150 = vpop.f32.mrf.mxu0
        %v3151 = vadd.f32 %v3138, %v3150
        %v3152 = vpop.f32.mrf.mxu0
        %3153 = vdwg.mxu0
        %3154 = vmatpush.bf16.msra.mxu0 %v2698
        %3155 = vmatpush.bf16.msra.mxu0 %v2690
        %3156 = vmatpush.bf16.msra.mxu0 %v2682
        %3157 = vmatpush.bf16.msra.mxu0 %v2674
        %3158 = vmatpush.bf16.msra.mxu0 %v2666
        %3159 = vmatpush.bf16.msra.mxu0 %v2658
        %3160 = vmatpush.bf16.msra.mxu0 %v2650
        %3161 = vmatpush.bf16.msra.mxu0 %v2642
        %3162 = vmatmul.bf16.gmra.mxu0 %v1404
        %v3163 = vpop.f32.mrf.mxu0
        %v3164 = vadd.f32 %v3151, %v3163
        %v3165 = vpop.f32.mrf.mxu0
        %3166 = vdwg.mxu0
        %3167 = vmatpush.bf16.msra.mxu0 %v2507
        %3168 = vmatpush.bf16.msra.mxu0 %v2499
        %3169 = vmatpush.bf16.msra.mxu0 %v2491
        %3170 = vmatpush.bf16.msra.mxu0 %v2483
        %3171 = vmatpush.bf16.msra.mxu0 %v2475
        %3172 = vmatpush.bf16.msra.mxu0 %v2467
        %3173 = vmatpush.bf16.msra.mxu0 %v2459
        %3174 = vmatpush.bf16.msra.mxu0 %v2451
        %3175 = vmatmul.bf16.gmra.mxu0 %v1401
        %v3176 = vpop.f32.mrf.mxu0
        %v3177 = vadd.f32 %v1667, %v3176
        %v3178 = vpop.f32.mrf.mxu0
        %3179 = vdwg.mxu0
        %3180 = vmatpush.bf16.msra.mxu0 %v2571
        %3181 = vmatpush.bf16.msra.mxu0 %v2563
        %3182 = vmatpush.bf16.msra.mxu0 %v2555
        %3183 = vmatpush.bf16.msra.mxu0 %v2547
        %3184 = vmatpush.bf16.msra.mxu0 %v2539
        %3185 = vmatpush.bf16.msra.mxu0 %v2531
        %3186 = vmatpush.bf16.msra.mxu0 %v2523
        %3187 = vmatpush.bf16.msra.mxu0 %v2515
        %3188 = vmatmul.bf16.gmra.mxu0 %v1402
        %v3189 = vpop.f32.mrf.mxu0
        %v3190 = vadd.f32 %v3177, %v3189
        %v3191 = vpop.f32.mrf.mxu0
        %3192 = vdwg.mxu0
        %3193 = vmatpush.bf16.msra.mxu0 %v2635
        %3194 = vmatpush.bf16.msra.mxu0 %v2627
        %3195 = vmatpush.bf16.msra.mxu0 %v2619
        %3196 = vmatpush.bf16.msra.mxu0 %v2611
        %3197 = vmatpush.bf16.msra.mxu0 %v2603
        %3198 = vmatpush.bf16.msra.mxu0 %v2595
        %3199 = vmatpush.bf16.msra.mxu0 %v2587
        %3200 = vmatpush.bf16.msra.mxu0 %v2579
        %3201 = vmatmul.bf16.gmra.mxu0 %v1403
        %v3202 = vpop.f32.mrf.mxu0
        %v3203 = vadd.f32 %v3190, %v3202
        %v3204 = vpop.f32.mrf.mxu0
        %3205 = vdwg.mxu0
        %3206 = vmatpush.bf16.msra.mxu0 %v2699
        %3207 = vmatpush.bf16.msra.mxu0 %v2691
        %3208 = vmatpush.bf16.msra.mxu0 %v2683
        %3209 = vmatpush.bf16.msra.mxu0 %v2675
        %3210 = vmatpush.bf16.msra.mxu0 %v2667
        %3211 = vmatpush.bf16.msra.mxu0 %v2659
        %3212 = vmatpush.bf16.msra.mxu0 %v2651
        %3213 = vmatpush.bf16.msra.mxu0 %v2643
        %3214 = vmatmul.bf16.gmra.mxu0 %v1404
        %v3215 = vpop.f32.mrf.mxu0
        %v3216 = vadd.f32 %v3203, %v3215
        %v3217 = vpop.f32.mrf.mxu0
        %3218 = vdwg.mxu0
        %3219 = vmatpush.bf16.msra.mxu0 %v2508
        %3220 = vmatpush.bf16.msra.mxu0 %v2500
        %3221 = vmatpush.bf16.msra.mxu0 %v2492
        %3222 = vmatpush.bf16.msra.mxu0 %v2484
        %3223 = vmatpush.bf16.msra.mxu0 %v2476
        %3224 = vmatpush.bf16.msra.mxu0 %v2468
        %3225 = vmatpush.bf16.msra.mxu0 %v2460
        %3226 = vmatpush.bf16.msra.mxu0 %v2452
        %3227 = vmatmul.bf16.gmra.mxu0 %v1401
        %v3228 = vpop.f32.mrf.mxu0
        %v3229 = vadd.f32 %v1668, %v3228
        %v3230 = vpop.f32.mrf.mxu0
        %3231 = vdwg.mxu0
        %3232 = vmatpush.bf16.msra.mxu0 %v2572
        %3233 = vmatpush.bf16.msra.mxu0 %v2564
        %3234 = vmatpush.bf16.msra.mxu0 %v2556
        %3235 = vmatpush.bf16.msra.mxu0 %v2548
        %3236 = vmatpush.bf16.msra.mxu0 %v2540
        %3237 = vmatpush.bf16.msra.mxu0 %v2532
        %3238 = vmatpush.bf16.msra.mxu0 %v2524
        %3239 = vmatpush.bf16.msra.mxu0 %v2516
        %3240 = vmatmul.bf16.gmra.mxu0 %v1402
        %v3241 = vpop.f32.mrf.mxu0
        %v3242 = vadd.f32 %v3229, %v3241
        %v3243 = vpop.f32.mrf.mxu0
        %3244 = vdwg.mxu0
        %3245 = vmatpush.bf16.msra.mxu0 %v2636
        %3246 = vmatpush.bf16.msra.mxu0 %v2628
        %3247 = vmatpush.bf16.msra.mxu0 %v2620
        %3248 = vmatpush.bf16.msra.mxu0 %v2612
        %3249 = vmatpush.bf16.msra.mxu0 %v2604
        %3250 = vmatpush.bf16.msra.mxu0 %v2596
        %3251 = vmatpush.bf16.msra.mxu0 %v2588
        %3252 = vmatpush.bf16.msra.mxu0 %v2580
        %3253 = vmatmul.bf16.gmra.mxu0 %v1403
        %v3254 = vpop.f32.mrf.mxu0
        %v3255 = vadd.f32 %v3242, %v3254
        %v3256 = vpop.f32.mrf.mxu0
        %3257 = vdwg.mxu0
        %3258 = vmatpush.bf16.msra.mxu0 %v2700
        %3259 = vmatpush.bf16.msra.mxu0 %v2692
        %3260 = vmatpush.bf16.msra.mxu0 %v2684
        %3261 = vmatpush.bf16.msra.mxu0 %v2676
        %3262 = vmatpush.bf16.msra.mxu0 %v2668
        %3263 = vmatpush.bf16.msra.mxu0 %v2660
        %3264 = vmatpush.bf16.msra.mxu0 %v2652
        %3265 = vmatpush.bf16.msra.mxu0 %v2644
        %3266 = vmatmul.bf16.gmra.mxu0 %v1404
        %v3267 = vpop.f32.mrf.mxu0
        %v3268 = vadd.f32 %v3255, %v3267
        %v3269 = vpop.f32.mrf.mxu0
        %3270 = vdwg.mxu0
        %3271 = vmatpush.bf16.msra.mxu0 %v2509
        %3272 = vmatpush.bf16.msra.mxu0 %v2501
        %3273 = vmatpush.bf16.msra.mxu0 %v2493
        %3274 = vmatpush.bf16.msra.mxu0 %v2485
        %3275 = vmatpush.bf16.msra.mxu0 %v2477
        %3276 = vmatpush.bf16.msra.mxu0 %v2469
        %3277 = vmatpush.bf16.msra.mxu0 %v2461
        %3278 = vmatpush.bf16.msra.mxu0 %v2453
        %3279 = vmatmul.bf16.gmra.mxu0 %v1401
        %v3280 = vpop.f32.mrf.mxu0
        %v3281 = vadd.f32 %v1669, %v3280
        %v3282 = vpop.f32.mrf.mxu0
        %3283 = vdwg.mxu0
        %3284 = vmatpush.bf16.msra.mxu0 %v2573
        %3285 = vmatpush.bf16.msra.mxu0 %v2565
        %3286 = vmatpush.bf16.msra.mxu0 %v2557
        %3287 = vmatpush.bf16.msra.mxu0 %v2549
        %3288 = vmatpush.bf16.msra.mxu0 %v2541
        %3289 = vmatpush.bf16.msra.mxu0 %v2533
        %3290 = vmatpush.bf16.msra.mxu0 %v2525
        %3291 = vmatpush.bf16.msra.mxu0 %v2517
        %3292 = vmatmul.bf16.gmra.mxu0 %v1402
        %v3293 = vpop.f32.mrf.mxu0
        %v3294 = vadd.f32 %v3281, %v3293
        %v3295 = vpop.f32.mrf.mxu0
        %3296 = vdwg.mxu0
        %3297 = vmatpush.bf16.msra.mxu0 %v2637
        %3298 = vmatpush.bf16.msra.mxu0 %v2629
        %3299 = vmatpush.bf16.msra.mxu0 %v2621
        %3300 = vmatpush.bf16.msra.mxu0 %v2613
        %3301 = vmatpush.bf16.msra.mxu0 %v2605
        %3302 = vmatpush.bf16.msra.mxu0 %v2597
        %3303 = vmatpush.bf16.msra.mxu0 %v2589
        %3304 = vmatpush.bf16.msra.mxu0 %v2581
        %3305 = vmatmul.bf16.gmra.mxu0 %v1403
        %v3306 = vpop.f32.mrf.mxu0
        %v3307 = vadd.f32 %v3294, %v3306
        %v3308 = vpop.f32.mrf.mxu0
        %3309 = vdwg.mxu0
        %3310 = vmatpush.bf16.msra.mxu0 %v2701
        %3311 = vmatpush.bf16.msra.mxu0 %v2693
        %3312 = vmatpush.bf16.msra.mxu0 %v2685
        %3313 = vmatpush.bf16.msra.mxu0 %v2677
        %3314 = vmatpush.bf16.msra.mxu0 %v2669
        %3315 = vmatpush.bf16.msra.mxu0 %v2661
        %3316 = vmatpush.bf16.msra.mxu0 %v2653
        %3317 = vmatpush.bf16.msra.mxu0 %v2645
        %3318 = vmatmul.bf16.gmra.mxu0 %v1404
        %v3319 = vpop.f32.mrf.mxu0
        %v3320 = vadd.f32 %v3307, %v3319
        %v3321 = vpop.f32.mrf.mxu0
        %3322 = vdwg.mxu0
        %3323 = vmatpush.bf16.msra.mxu0 %v2510
        %3324 = vmatpush.bf16.msra.mxu0 %v2502
        %3325 = vmatpush.bf16.msra.mxu0 %v2494
        %3326 = vmatpush.bf16.msra.mxu0 %v2486
        %3327 = vmatpush.bf16.msra.mxu0 %v2478
        %3328 = vmatpush.bf16.msra.mxu0 %v2470
        %3329 = vmatpush.bf16.msra.mxu0 %v2462
        %3330 = vmatpush.bf16.msra.mxu0 %v2454
        %3331 = vmatmul.bf16.gmra.mxu0 %v1401
        %v3332 = vpop.f32.mrf.mxu0
        %v3333 = vadd.f32 %v1670, %v3332
        %v3334 = vpop.f32.mrf.mxu0
        %3335 = vdwg.mxu0
        %3336 = vmatpush.bf16.msra.mxu0 %v2574
        %3337 = vmatpush.bf16.msra.mxu0 %v2566
        %3338 = vmatpush.bf16.msra.mxu0 %v2558
        %3339 = vmatpush.bf16.msra.mxu0 %v2550
        %3340 = vmatpush.bf16.msra.mxu0 %v2542
        %3341 = vmatpush.bf16.msra.mxu0 %v2534
        %3342 = vmatpush.bf16.msra.mxu0 %v2526
        %3343 = vmatpush.bf16.msra.mxu0 %v2518
        %3344 = vmatmul.bf16.gmra.mxu0 %v1402
        %v3345 = vpop.f32.mrf.mxu0
        %v3346 = vadd.f32 %v3333, %v3345
        %v3347 = vpop.f32.mrf.mxu0
        %3348 = vdwg.mxu0
        %3349 = vmatpush.bf16.msra.mxu0 %v2638
        %3350 = vmatpush.bf16.msra.mxu0 %v2630
        %3351 = vmatpush.bf16.msra.mxu0 %v2622
        %3352 = vmatpush.bf16.msra.mxu0 %v2614
        %3353 = vmatpush.bf16.msra.mxu0 %v2606
        %3354 = vmatpush.bf16.msra.mxu0 %v2598
        %3355 = vmatpush.bf16.msra.mxu0 %v2590
        %3356 = vmatpush.bf16.msra.mxu0 %v2582
        %3357 = vmatmul.bf16.gmra.mxu0 %v1403
        %v3358 = vpop.f32.mrf.mxu0
        %v3359 = vadd.f32 %v3346, %v3358
        %v3360 = vpop.f32.mrf.mxu0
        %3361 = vdwg.mxu0
        %3362 = vmatpush.bf16.msra.mxu0 %v2702
        %3363 = vmatpush.bf16.msra.mxu0 %v2694
        %3364 = vmatpush.bf16.msra.mxu0 %v2686
        %3365 = vmatpush.bf16.msra.mxu0 %v2678
        %3366 = vmatpush.bf16.msra.mxu0 %v2670
        %3367 = vmatpush.bf16.msra.mxu0 %v2662
        %3368 = vmatpush.bf16.msra.mxu0 %v2654
        %3369 = vmatpush.bf16.msra.mxu0 %v2646
        %3370 = vmatmul.bf16.gmra.mxu0 %v1404
        %v3371 = vpop.f32.mrf.mxu0
        %v3372 = vadd.f32 %v3359, %v3371
        %v3373 = vpop.f32.mrf.mxu0
        %3374 = vdwg.mxu0
        %v3375 = vrot.slane %v3008, 4
        %v3376 = vadd.f32 %v3008, %v3375
        %v3377 = vrot.slane %v3376, 2
        %v3378 = vadd.f32 %v3376, %v3377
        %v3379 = vrot.slane %v3378, 1
        %v3380 = vadd.f32 %v3378, %v3379
        %v3381 = vrot.slane %v3060, 4
        %v3382 = vadd.f32 %v3060, %v3381
        %v3383 = vrot.slane %v3382, 2
        %v3384 = vadd.f32 %v3382, %v3383
        %v3385 = vrot.slane %v3384, 1
        %v3386 = vadd.f32 %v3384, %v3385
        %v3387 = vrot.slane %v3112, 4
        %v3388 = vadd.f32 %v3112, %v3387
        %v3389 = vrot.slane %v3388, 2
        %v3390 = vadd.f32 %v3388, %v3389
        %v3391 = vrot.slane %v3390, 1
        %v3392 = vadd.f32 %v3390, %v3391
        %v3393 = vrot.slane %v3164, 4
        %v3394 = vadd.f32 %v3164, %v3393
        %v3395 = vrot.slane %v3394, 2
        %v3396 = vadd.f32 %v3394, %v3395
        %v3397 = vrot.slane %v3396, 1
        %v3398 = vadd.f32 %v3396, %v3397
        %v3399 = vrot.slane %v3216, 4
        %v3400 = vadd.f32 %v3216, %v3399
        %v3401 = vrot.slane %v3400, 2
        %v3402 = vadd.f32 %v3400, %v3401
        %v3403 = vrot.slane %v3402, 1
        %v3404 = vadd.f32 %v3402, %v3403
        %v3405 = vrot.slane %v3268, 4
        %v3406 = vadd.f32 %v3268, %v3405
        %v3407 = vrot.slane %v3406, 2
        %v3408 = vadd.f32 %v3406, %v3407
        %v3409 = vrot.slane %v3408, 1
        %v3410 = vadd.f32 %v3408, %v3409
        %v3411 = vrot.slane %v3320, 4
        %v3412 = vadd.f32 %v3320, %v3411
        %v3413 = vrot.slane %v3412, 2
        %v3414 = vadd.f32 %v3412, %v3413
        %v3415 = vrot.slane %v3414, 1
        %v3416 = vadd.f32 %v3414, %v3415
        %v3417 = vrot.slane %v3372, 4
        %v3418 = vadd.f32 %v3372, %v3417
        %v3419 = vrot.slane %v3418, 2
        %v3420 = vadd.f32 %v3418, %v3419
        %v3421 = vrot.slane %v3420, 1
        %v3422 = vadd.f32 %v3420, %v3421
        %v3423 = vmul.f32 %v3380, %v682
        %v3424 = vmul.f32 %v3386, %v682
        %v3425 = vmul.f32 %v3392, %v682
        %v3426 = vmul.f32 %v3398, %v682
        %v3427 = vmul.f32 %v3404, %v682
        %v3428 = vmul.f32 %v3410, %v682
        %v3429 = vmul.f32 %v3416, %v682
        %v3430 = vmul.f32 %v3422, %v682
        %v3431 = vsub.f32 %v3008, %v3423
        %v3432 = vsub.f32 %v3060, %v3424
        %v3433 = vsub.f32 %v3112, %v3425
        %v3434 = vsub.f32 %v3164, %v3426
        %v3435 = vsub.f32 %v3216, %v3427
        %v3436 = vsub.f32 %v3268, %v3428
        %v3437 = vsub.f32 %v3320, %v3429
        %v3438 = vsub.f32 %v3372, %v3430
        %v3439 = vmul.f32 %v3431, %v3431
        %v3440 = vmul.f32 %v3432, %v3432
        %v3441 = vmul.f32 %v3433, %v3433
        %v3442 = vmul.f32 %v3434, %v3434
        %v3443 = vmul.f32 %v3435, %v3435
        %v3444 = vmul.f32 %v3436, %v3436
        %v3445 = vmul.f32 %v3437, %v3437
        %v3446 = vmul.f32 %v3438, %v3438
        %v3447 = vrot.slane %v3439, 4
        %v3448 = vadd.f32 %v3439, %v3447
        %v3449 = vrot.slane %v3448, 2
        %v3450 = vadd.f32 %v3448, %v3449
        %v3451 = vrot.slane %v3450, 1
        %v3452 = vadd.f32 %v3450, %v3451
        %v3453 = vrot.slane %v3440, 4
        %v3454 = vadd.f32 %v3440, %v3453
        %v3455 = vrot.slane %v3454, 2
        %v3456 = vadd.f32 %v3454, %v3455
        %v3457 = vrot.slane %v3456, 1
        %v3458 = vadd.f32 %v3456, %v3457
        %v3459 = vrot.slane %v3441, 4
        %v3460 = vadd.f32 %v3441, %v3459
        %v3461 = vrot.slane %v3460, 2
        %v3462 = vadd.f32 %v3460, %v3461
        %v3463 = vrot.slane %v3462, 1
        %v3464 = vadd.f32 %v3462, %v3463
        %v3465 = vrot.slane %v3442, 4
        %v3466 = vadd.f32 %v3442, %v3465
        %v3467 = vrot.slane %v3466, 2
        %v3468 = vadd.f32 %v3466, %v3467
        %v3469 = vrot.slane %v3468, 1
        %v3470 = vadd.f32 %v3468, %v3469
        %v3471 = vrot.slane %v3443, 4
        %v3472 = vadd.f32 %v3443, %v3471
        %v3473 = vrot.slane %v3472, 2
        %v3474 = vadd.f32 %v3472, %v3473
        %v3475 = vrot.slane %v3474, 1
        %v3476 = vadd.f32 %v3474, %v3475
        %v3477 = vrot.slane %v3444, 4
        %v3478 = vadd.f32 %v3444, %v3477
        %v3479 = vrot.slane %v3478, 2
        %v3480 = vadd.f32 %v3478, %v3479
        %v3481 = vrot.slane %v3480, 1
        %v3482 = vadd.f32 %v3480, %v3481
        %v3483 = vrot.slane %v3445, 4
        %v3484 = vadd.f32 %v3445, %v3483
        %v3485 = vrot.slane %v3484, 2
        %v3486 = vadd.f32 %v3484, %v3485
        %v3487 = vrot.slane %v3486, 1
        %v3488 = vadd.f32 %v3486, %v3487
        %v3489 = vrot.slane %v3446, 4
        %v3490 = vadd.f32 %v3446, %v3489
        %v3491 = vrot.slane %v3490, 2
        %v3492 = vadd.f32 %v3490, %v3491
        %v3493 = vrot.slane %v3492, 1
        %v3494 = vadd.f32 %v3492, %v3493
        %v3495 = vmul.f32 %v3452, %v682
        %v3496 = vmul.f32 %v3458, %v682
        %v3497 = vmul.f32 %v3464, %v682
        %v3498 = vmul.f32 %v3470, %v682
        %v3499 = vmul.f32 %v3476, %v682
        %v3500 = vmul.f32 %v3482, %v682
        %v3501 = vmul.f32 %v3488, %v682
        %v3502 = vmul.f32 %v3494, %v682
        %v3503 = vadd.f32 %v3495, 0.8
        %v3504 = vadd.f32 %v3496, 0.8
        %v3505 = vadd.f32 %v3497, 0.8
        %v3506 = vadd.f32 %v3498, 0.8
        %v3507 = vadd.f32 %v3499, 0.8
        %v3508 = vadd.f32 %v3500, 0.8
        %v3509 = vadd.f32 %v3501, 0.8
        %v3510 = vadd.f32 %v3502, 0.8
        %v3511 = vrsqrt.pop %v3503
        %v3512 = vmul.f32 %v3511, %v3503
        %v3513 = vmul.f32 %v3512, %v3511
        %v3514 = vmul.f32 0.5, %v3513
        %v3515 = vsub.f32 1.5, %v3514
        %v3516 = vmul.f32 %v3511, %v3515
        %vm3517 = vweird.f32 %v3503
        %vm3518 = vweird.f32 %v3511
        %vm3519 = vmor %vm3517, %vm3518
        %v3520 = vsel %vm3519, %v3511, %v3516
        %v3521 = vrsqrt.pop %v3504
        %v3522 = vmul.f32 %v3521, %v3504
        %v3523 = vmul.f32 %v3522, %v3521
        %v3524 = vmul.f32 0.5, %v3523
        %v3525 = vsub.f32 1.5, %v3524
        %v3526 = vmul.f32 %v3521, %v3525
        %vm3527 = vweird.f32 %v3504
        %vm3528 = vweird.f32 %v3521
        %vm3529 = vmor %vm3527, %vm3528
        %v3530 = vsel %vm3529, %v3521, %v3526
        %v3531 = vrsqrt.pop %v3505
        %v3532 = vmul.f32 %v3531, %v3505
        %v3533 = vmul.f32 %v3532, %v3531
        %v3534 = vmul.f32 0.5, %v3533
        %v3535 = vsub.f32 1.5, %v3534
        %v3536 = vmul.f32 %v3531, %v3535
        %vm3537 = vweird.f32 %v3505
        %vm3538 = vweird.f32 %v3531
        %vm3539 = vmor %vm3537, %vm3538
        %v3540 = vsel %vm3539, %v3531, %v3536
        %v3541 = vrsqrt.pop %v3506
        %v3542 = vmul.f32 %v3541, %v3506
        %v3543 = vmul.f32 %v3542, %v3541
        %v3544 = vmul.f32 0.5, %v3543
        %v3545 = vsub.f32 1.5, %v3544
        %v3546 = vmul.f32 %v3541, %v3545
        %vm3547 = vweird.f32 %v3506
        %vm3548 = vweird.f32 %v3541
        %vm3549 = vmor %vm3547, %vm3548
        %v3550 = vsel %vm3549, %v3541, %v3546
        %v3551 = vrsqrt.pop %v3507
        %v3552 = vmul.f32 %v3551, %v3507
        %v3553 = vmul.f32 %v3552, %v3551
        %v3554 = vmul.f32 0.5, %v3553
        %v3555 = vsub.f32 1.5, %v3554
        %v3556 = vmul.f32 %v3551, %v3555
        %vm3557 = vweird.f32 %v3507
        %vm3558 = vweird.f32 %v3551
        %vm3559 = vmor %vm3557, %vm3558
        %v3560 = vsel %vm3559, %v3551, %v3556
        %v3561 = vrsqrt.pop %v3508
        %v3562 = vmul.f32 %v3561, %v3508
        %v3563 = vmul.f32 %v3562, %v3561
        %v3564 = vmul.f32 0.5, %v3563
        %v3565 = vsub.f32 1.5, %v3564
        %v3566 = vmul.f32 %v3561, %v3565
        %vm3567 = vweird.f32 %v3508
        %vm3568 = vweird.f32 %v3561
        %vm3569 = vmor %vm3567, %vm3568
        %v3570 = vsel %vm3569, %v3561, %v3566
        %v3571 = vrsqrt.pop %v3509
        %v3572 = vmul.f32 %v3571, %v3509
        %v3573 = vmul.f32 %v3572, %v3571
        %v3574 = vmul.f32 0.5, %v3573
        %v3575 = vsub.f32 1.5, %v3574
        %v3576 = vmul.f32 %v3571, %v3575
        %vm3577 = vweird.f32 %v3509
        %vm3578 = vweird.f32 %v3571
        %vm3579 = vmor %vm3577, %vm3578
        %v3580 = vsel %vm3579, %v3571, %v3576
        %v3581 = vrsqrt.pop %v3510
        %v3582 = vmul.f32 %v3581, %v3510
        %v3583 = vmul.f32 %v3582, %v3581
        %v3584 = vmul.f32 0.5, %v3583
        %v3585 = vsub.f32 1.5, %v3584
        %v3586 = vmul.f32 %v3581, %v3585
        %vm3587 = vweird.f32 %v3510
        %vm3588 = vweird.f32 %v3581
        %vm3589 = vmor %vm3587, %vm3588
        %v3590 = vsel %vm3589, %v3581, %v3586
        %v3591 = vmul.f32 %v3431, %v3520
        %v3592 = vmul.f32 %v3432, %v3530
        %v3593 = vmul.f32 %v3433, %v3540
        %v3594 = vmul.f32 %v3434, %v3550
        %v3595 = vmul.f32 %v3435, %v3560
        %v3596 = vmul.f32 %v3436, %v3570
        %v3597 = vmul.f32 %v3437, %v3580
        %v3598 = vmul.f32 %v3438, %v3590
        %v3599 = vld [vmem:[%s10 + $0x6] sm:$0xff]
        %v3601 = vperm.slane %v3599, 0
        %v3602 = vperm.slane %v3599, 1
        %v3603 = vperm.slane %v3599, 2
        %v3604 = vperm.slane %v3599, 3
        %v3605 = vperm.slane %v3599, 4
        %v3606 = vperm.slane %v3599, 5
        %v3607 = vperm.slane %v3599, 6
        %v3608 = vperm.slane %v3599, 7
        %v3617 = vmul.f32 %v3591, %v3601
        %v3618 = vmul.f32 %v3592, %v3602
        %v3619 = vmul.f32 %v3593, %v3603
        %v3620 = vmul.f32 %v3594, %v3604
        %v3621 = vmul.f32 %v3595, %v3605
        %v3622 = vmul.f32 %v3596, %v3606
        %v3623 = vmul.f32 %v3597, %v3607
        %v3624 = vmul.f32 %v3598, %v3608
        %v3625 = vld [vmem:[%s11 + $0x6] sm:$0xff]
        %v3627 = vperm.slane %v3625, 0
        %v3628 = vperm.slane %v3625, 1
        %v3629 = vperm.slane %v3625, 2
        %v3630 = vperm.slane %v3625, 3
        %v3631 = vperm.slane %v3625, 4
        %v3632 = vperm.slane %v3625, 5
        %v3633 = vperm.slane %v3625, 6
        %v3634 = vperm.slane %v3625, 7
        %v3643 = vadd.f32 %v3617, %v3627
        %v3644 = vadd.f32 %v3618, %v3628
        %v3645 = vadd.f32 %v3619, %v3629
        %v3646 = vadd.f32 %v3620, %v3630
        %v3647 = vadd.f32 %v3621, %v3631
        %v3648 = vadd.f32 %v3622, %v3632
        %v3649 = vadd.f32 %v3623, %v3633
        %v3650 = vadd.f32 %v3624, %v3634
        %vm3651 = vcmp.gt.f32.partialorder %v3643, 0.0
        %vm3652 = vcmp.gt.f32.partialorder %v3644, 0.0
        %vm3653 = vcmp.gt.f32.partialorder %v3645, 0.0
        %vm3654 = vcmp.gt.f32.partialorder %v3646, 0.0
        %vm3655 = vcmp.gt.f32.partialorder %v3647, 0.0
        %vm3656 = vcmp.gt.f32.partialorder %v3648, 0.0
        %vm3657 = vcmp.gt.f32.partialorder %v3649, 0.0
        %vm3658 = vcmp.gt.f32.partialorder %v3650, 0.0
        %v3659 = vmul.f32 %v3643, 0.2
        %v3660 = vmul.f32 %v3644, 0.2
        %v3661 = vmul.f32 %v3645, 0.2
        %v3662 = vmul.f32 %v3646, 0.2
        %v3663 = vmul.f32 %v3647, 0.2
        %v3664 = vmul.f32 %v3648, 0.2
        %v3665 = vmul.f32 %v3649, 0.2
        %v3666 = vmul.f32 %v3650, 0.2
        %v3667 = vsel %vm3651, %v3643, %v3659
        %v3668 = vsel %vm3652, %v3644, %v3660
        %v3669 = vsel %vm3653, %v3645, %v3661
        %v3670 = vsel %vm3654, %v3646, %v3662
        %v3671 = vsel %vm3655, %v3647, %v3663
        %v3672 = vsel %vm3656, %v3648, %v3664
        %v3673 = vsel %vm3657, %v3649, %v3665
        %v3674 = vsel %vm3658, %v3650, %v3666
        %v3675 = vpack.c.bf16 %v3667, %v3667
        %v3676 = vpack.c.bf16 %v3668, %v3668
        %v3677 = vpack.c.bf16 %v3669, %v3669
        %v3678 = vpack.c.bf16 %v3670, %v3670
        %v3679 = vpack.c.bf16 %v3671, %v3671
        %v3680 = vpack.c.bf16 %v3672, %v3672
        %v3681 = vpack.c.bf16 %v3673, %v3673
        %v3682 = vpack.c.bf16 %v3674, %v3674
        %v3683 = vld [vmem:[%s8] sm:$0xf]
        %v3684 = vld [vmem:[%s8 + $0x4] sm:$0xf]
        %v3685 = vld [vmem:[%s8 + $0x8] sm:$0xf]
        %v3686 = vld [vmem:[%s8 + $0xc] sm:$0xf]
        %v3687 = vld [vmem:[%s8 + $0x10] sm:$0xf]
        %v3688 = vld [vmem:[%s8 + $0x14] sm:$0xf]
        %v3689 = vld [vmem:[%s8 + $0x18] sm:$0xf]
        %v3690 = vld [vmem:[%s8 + $0x1c] sm:$0xf]
        %v3691 = vld [vmem:[%s8 + $0x20] sm:$0xf]
        %v3692 = vld [vmem:[%s8 + $0x24] sm:$0xf]
        %v3693 = vld [vmem:[%s8 + $0x28] sm:$0xf]
        %v3694 = vld [vmem:[%s8 + $0x2c] sm:$0xf]
        %v3695 = vld [vmem:[%s8 + $0x30] sm:$0xf]
        %v3696 = vld [vmem:[%s8 + $0x34] sm:$0xf]
        %v3697 = vld [vmem:[%s8 + $0x38] sm:$0xf]
        %v3698 = vld [vmem:[%s8 + $0x3c] sm:$0xf]
        %v3699 = vld [vmem:[%s8 + $0x40] sm:$0xf]
        %v3700 = vld [vmem:[%s8 + $0x44] sm:$0xf]
        %v3701 = vld [vmem:[%s8 + $0x48] sm:$0xf]
        %v3702 = vld [vmem:[%s8 + $0x4c] sm:$0xf]
        %v3703 = vld [vmem:[%s8 + $0x50] sm:$0xf]
        %v3704 = vld [vmem:[%s8 + $0x54] sm:$0xf]
        %v3705 = vld [vmem:[%s8 + $0x58] sm:$0xf]
        %v3706 = vld [vmem:[%s8 + $0x5c] sm:$0xf]
        %v3707 = vld [vmem:[%s8 + $0x60] sm:$0xf]
        %v3708 = vld [vmem:[%s8 + $0x64] sm:$0xf]
        %v3709 = vld [vmem:[%s8 + $0x68] sm:$0xf]
        %v3710 = vld [vmem:[%s8 + $0x6c] sm:$0xf]
        %v3711 = vld [vmem:[%s8 + $0x70] sm:$0xf]
        %v3712 = vld [vmem:[%s8 + $0x74] sm:$0xf]
        %v3713 = vld [vmem:[%s8 + $0x78] sm:$0xf]
        %v3714 = vld [vmem:[%s8 + $0x7c] sm:$0xf]
        %v3715 = vld [vmem:[%s8 + $0x80] sm:$0xf]
        %v3716 = vld [vmem:[%s8 + $0x84] sm:$0xf]
        %v3717 = vld [vmem:[%s8 + $0x88] sm:$0xf]
        %v3718 = vld [vmem:[%s8 + $0x8c] sm:$0xf]
        %v3719 = vld [vmem:[%s8 + $0x90] sm:$0xf]
        %v3720 = vld [vmem:[%s8 + $0x94] sm:$0xf]
        %v3721 = vld [vmem:[%s8 + $0x98] sm:$0xf]
        %v3722 = vld [vmem:[%s8 + $0x9c] sm:$0xf]
        %v3723 = vld [vmem:[%s8 + $0xa0] sm:$0xf]
        %v3724 = vld [vmem:[%s8 + $0xa4] sm:$0xf]
        %v3725 = vld [vmem:[%s8 + $0xa8] sm:$0xf]
        %v3726 = vld [vmem:[%s8 + $0xac] sm:$0xf]
        %v3727 = vld [vmem:[%s8 + $0xb0] sm:$0xf]
        %v3728 = vld [vmem:[%s8 + $0xb4] sm:$0xf]
        %v3729 = vld [vmem:[%s8 + $0xb8] sm:$0xf]
        %v3730 = vld [vmem:[%s8 + $0xbc] sm:$0xf]
        %v3731 = vld [vmem:[%s8 + $0xc0] sm:$0xf]
        %v3732 = vld [vmem:[%s8 + $0xc4] sm:$0xf]
        %v3733 = vld [vmem:[%s8 + $0xc8] sm:$0xf]
        %v3734 = vld [vmem:[%s8 + $0xcc] sm:$0xf]
        %v3735 = vld [vmem:[%s8 + $0xd0] sm:$0xf]
        %v3736 = vld [vmem:[%s8 + $0xd4] sm:$0xf]
        %v3737 = vld [vmem:[%s8 + $0xd8] sm:$0xf]
        %v3738 = vld [vmem:[%s8 + $0xdc] sm:$0xf]
        %v3739 = vld [vmem:[%s8 + $0xe0] sm:$0xf]
        %v3740 = vld [vmem:[%s8 + $0xe4] sm:$0xf]
        %v3741 = vld [vmem:[%s8 + $0xe8] sm:$0xf]
        %v3742 = vld [vmem:[%s8 + $0xec] sm:$0xf]
        %v3743 = vld [vmem:[%s8 + $0xf0] sm:$0xf]
        %v3744 = vld [vmem:[%s8 + $0xf4] sm:$0xf]
        %v3745 = vld [vmem:[%s8 + $0xf8] sm:$0xf]
        %v3746 = vld [vmem:[%s8 + $0xfc] sm:$0xf]
        %v3747 = vld [vmem:[%s8 + $0x100] sm:$0xf]
        %v3748 = vld [vmem:[%s8 + $0x104] sm:$0xf]
        %v3749 = vld [vmem:[%s8 + $0x108] sm:$0xf]
        %v3750 = vld [vmem:[%s8 + $0x10c] sm:$0xf]
        %v3751 = vld [vmem:[%s8 + $0x110] sm:$0xf]
        %v3752 = vld [vmem:[%s8 + $0x114] sm:$0xf]
        %v3753 = vld [vmem:[%s8 + $0x118] sm:$0xf]
        %v3754 = vld [vmem:[%s8 + $0x11c] sm:$0xf]
        %v3755 = vld [vmem:[%s8 + $0x120] sm:$0xf]
        %v3756 = vld [vmem:[%s8 + $0x124] sm:$0xf]
        %v3757 = vld [vmem:[%s8 + $0x128] sm:$0xf]
        %v3758 = vld [vmem:[%s8 + $0x12c] sm:$0xf]
        %v3759 = vld [vmem:[%s8 + $0x130] sm:$0xf]
        %v3760 = vld [vmem:[%s8 + $0x134] sm:$0xf]
        %v3761 = vld [vmem:[%s8 + $0x138] sm:$0xf]
        %v3762 = vld [vmem:[%s8 + $0x13c] sm:$0xf]
        %v3763 = vld [vmem:[%s8 + $0x140] sm:$0xf]
        %v3764 = vld [vmem:[%s8 + $0x144] sm:$0xf]
        %v3765 = vld [vmem:[%s8 + $0x148] sm:$0xf]
        %v3766 = vld [vmem:[%s8 + $0x14c] sm:$0xf]
        %v3767 = vld [vmem:[%s8 + $0x150] sm:$0xf]
        %v3768 = vld [vmem:[%s8 + $0x154] sm:$0xf]
        %v3769 = vld [vmem:[%s8 + $0x158] sm:$0xf]
        %v3770 = vld [vmem:[%s8 + $0x15c] sm:$0xf]
        %v3771 = vld [vmem:[%s8 + $0x160] sm:$0xf]
        %v3772 = vld [vmem:[%s8 + $0x164] sm:$0xf]
        %v3773 = vld [vmem:[%s8 + $0x168] sm:$0xf]
        %v3774 = vld [vmem:[%s8 + $0x16c] sm:$0xf]
        %v3775 = vld [vmem:[%s8 + $0x170] sm:$0xf]
        %v3776 = vld [vmem:[%s8 + $0x174] sm:$0xf]
        %v3777 = vld [vmem:[%s8 + $0x178] sm:$0xf]
        %v3778 = vld [vmem:[%s8 + $0x17c] sm:$0xf]
        %v3779 = vld [vmem:[%s8 + $0x180] sm:$0xf]
        %v3780 = vld [vmem:[%s8 + $0x184] sm:$0xf]
        %v3781 = vld [vmem:[%s8 + $0x188] sm:$0xf]
        %v3782 = vld [vmem:[%s8 + $0x18c] sm:$0xf]
        %v3783 = vld [vmem:[%s8 + $0x190] sm:$0xf]
        %v3784 = vld [vmem:[%s8 + $0x194] sm:$0xf]
        %v3785 = vld [vmem:[%s8 + $0x198] sm:$0xf]
        %v3786 = vld [vmem:[%s8 + $0x19c] sm:$0xf]
        %v3787 = vld [vmem:[%s8 + $0x1a0] sm:$0xf]
        %v3788 = vld [vmem:[%s8 + $0x1a4] sm:$0xf]
        %v3789 = vld [vmem:[%s8 + $0x1a8] sm:$0xf]
        %v3790 = vld [vmem:[%s8 + $0x1ac] sm:$0xf]
        %v3791 = vld [vmem:[%s8 + $0x1b0] sm:$0xf]
        %v3792 = vld [vmem:[%s8 + $0x1b4] sm:$0xf]
        %v3793 = vld [vmem:[%s8 + $0x1b8] sm:$0xf]
        %v3794 = vld [vmem:[%s8 + $0x1bc] sm:$0xf]
        %v3795 = vld [vmem:[%s8 + $0x1c0] sm:$0xf]
        %v3796 = vld [vmem:[%s8 + $0x1c4] sm:$0xf]
        %v3797 = vld [vmem:[%s8 + $0x1c8] sm:$0xf]
        %v3798 = vld [vmem:[%s8 + $0x1cc] sm:$0xf]
        %v3799 = vld [vmem:[%s8 + $0x1d0] sm:$0xf]
        %v3800 = vld [vmem:[%s8 + $0x1d4] sm:$0xf]
        %v3801 = vld [vmem:[%s8 + $0x1d8] sm:$0xf]
        %v3802 = vld [vmem:[%s8 + $0x1dc] sm:$0xf]
        %v3803 = vld [vmem:[%s8 + $0x1e0] sm:$0xf]
        %v3804 = vld [vmem:[%s8 + $0x1e4] sm:$0xf]
        %v3805 = vld [vmem:[%s8 + $0x1e8] sm:$0xf]
        %v3806 = vld [vmem:[%s8 + $0x1ec] sm:$0xf]
        %v3807 = vld [vmem:[%s8 + $0x1f0] sm:$0xf]
        %v3808 = vld [vmem:[%s8 + $0x1f4] sm:$0xf]
        %v3809 = vld [vmem:[%s8 + $0x1f8] sm:$0xf]
        %v3810 = vld [vmem:[%s8 + $0x1fc] sm:$0xf]
        %v3811 = vld [vmem:[%s9 + $0xf] sm:$0x1]
        %v3813 = vperm.slane %v3811, 0
        %v3943 = vunpack.c.l.b16 %v3683
        %v3944 = vunpack.c.l.b16 %v3684
        %v3945 = vunpack.c.l.b16 %v3685
        %v3946 = vunpack.c.l.b16 %v3686
        %v3947 = vunpack.c.l.b16 %v3687
        %v3948 = vunpack.c.l.b16 %v3688
        %v3949 = vunpack.c.l.b16 %v3689
        %v3950 = vunpack.c.l.b16 %v3690
        %v3951 = vunpack.c.l.b16 %v3691
        %v3952 = vunpack.c.l.b16 %v3692
        %v3953 = vunpack.c.l.b16 %v3693
        %v3954 = vunpack.c.l.b16 %v3694
        %v3955 = vunpack.c.l.b16 %v3695
        %v3956 = vunpack.c.l.b16 %v3696
        %v3957 = vunpack.c.l.b16 %v3697
        %v3958 = vunpack.c.l.b16 %v3698
        %v3959 = vunpack.c.l.b16 %v3699
        %v3960 = vunpack.c.l.b16 %v3700
        %v3961 = vunpack.c.l.b16 %v3701
        %v3962 = vunpack.c.l.b16 %v3702
        %v3963 = vunpack.c.l.b16 %v3703
        %v3964 = vunpack.c.l.b16 %v3704
        %v3965 = vunpack.c.l.b16 %v3705
        %v3966 = vunpack.c.l.b16 %v3706
        %v3967 = vunpack.c.l.b16 %v3707
        %v3968 = vunpack.c.l.b16 %v3708
        %v3969 = vunpack.c.l.b16 %v3709
        %v3970 = vunpack.c.l.b16 %v3710
        %v3971 = vunpack.c.l.b16 %v3711
        %v3972 = vunpack.c.l.b16 %v3712
        %v3973 = vunpack.c.l.b16 %v3713
        %v3974 = vunpack.c.l.b16 %v3714
        %v3975 = vunpack.c.l.b16 %v3715
        %v3976 = vunpack.c.l.b16 %v3716
        %v3977 = vunpack.c.l.b16 %v3717
        %v3978 = vunpack.c.l.b16 %v3718
        %v3979 = vunpack.c.l.b16 %v3719
        %v3980 = vunpack.c.l.b16 %v3720
        %v3981 = vunpack.c.l.b16 %v3721
        %v3982 = vunpack.c.l.b16 %v3722
        %v3983 = vunpack.c.l.b16 %v3723
        %v3984 = vunpack.c.l.b16 %v3724
        %v3985 = vunpack.c.l.b16 %v3725
        %v3986 = vunpack.c.l.b16 %v3726
        %v3987 = vunpack.c.l.b16 %v3727
        %v3988 = vunpack.c.l.b16 %v3728
        %v3989 = vunpack.c.l.b16 %v3729
        %v3990 = vunpack.c.l.b16 %v3730
        %v3991 = vunpack.c.l.b16 %v3731
        %v3992 = vunpack.c.l.b16 %v3732
        %v3993 = vunpack.c.l.b16 %v3733
        %v3994 = vunpack.c.l.b16 %v3734
        %v3995 = vunpack.c.l.b16 %v3735
        %v3996 = vunpack.c.l.b16 %v3736
        %v3997 = vunpack.c.l.b16 %v3737
        %v3998 = vunpack.c.l.b16 %v3738
        %v3999 = vunpack.c.l.b16 %v3739
        %v4000 = vunpack.c.l.b16 %v3740
        %v4001 = vunpack.c.l.b16 %v3741
        %v4002 = vunpack.c.l.b16 %v3742
        %v4003 = vunpack.c.l.b16 %v3743
        %v4004 = vunpack.c.l.b16 %v3744
        %v4005 = vunpack.c.l.b16 %v3745
        %v4006 = vunpack.c.l.b16 %v3746
        %v4007 = vunpack.c.l.b16 %v3747
        %v4008 = vunpack.c.l.b16 %v3748
        %v4009 = vunpack.c.l.b16 %v3749
        %v4010 = vunpack.c.l.b16 %v3750
        %v4011 = vunpack.c.l.b16 %v3751
        %v4012 = vunpack.c.l.b16 %v3752
        %v4013 = vunpack.c.l.b16 %v3753
        %v4014 = vunpack.c.l.b16 %v3754
        %v4015 = vunpack.c.l.b16 %v3755
        %v4016 = vunpack.c.l.b16 %v3756
        %v4017 = vunpack.c.l.b16 %v3757
        %v4018 = vunpack.c.l.b16 %v3758
        %v4019 = vunpack.c.l.b16 %v3759
        %v4020 = vunpack.c.l.b16 %v3760
        %v4021 = vunpack.c.l.b16 %v3761
        %v4022 = vunpack.c.l.b16 %v3762
        %v4023 = vunpack.c.l.b16 %v3763
        %v4024 = vunpack.c.l.b16 %v3764
        %v4025 = vunpack.c.l.b16 %v3765
        %v4026 = vunpack.c.l.b16 %v3766
        %v4027 = vunpack.c.l.b16 %v3767
        %v4028 = vunpack.c.l.b16 %v3768
        %v4029 = vunpack.c.l.b16 %v3769
        %v4030 = vunpack.c.l.b16 %v3770
        %v4031 = vunpack.c.l.b16 %v3771
        %v4032 = vunpack.c.l.b16 %v3772
        %v4033 = vunpack.c.l.b16 %v3773
        %v4034 = vunpack.c.l.b16 %v3774
        %v4035 = vunpack.c.l.b16 %v3775
        %v4036 = vunpack.c.l.b16 %v3776
        %v4037 = vunpack.c.l.b16 %v3777
        %v4038 = vunpack.c.l.b16 %v3778
        %v4039 = vunpack.c.l.b16 %v3779
        %v4040 = vunpack.c.l.b16 %v3780
        %v4041 = vunpack.c.l.b16 %v3781
        %v4042 = vunpack.c.l.b16 %v3782
        %v4043 = vunpack.c.l.b16 %v3783
        %v4044 = vunpack.c.l.b16 %v3784
        %v4045 = vunpack.c.l.b16 %v3785
        %v4046 = vunpack.c.l.b16 %v3786
        %v4047 = vunpack.c.l.b16 %v3787
        %v4048 = vunpack.c.l.b16 %v3788
        %v4049 = vunpack.c.l.b16 %v3789
        %v4050 = vunpack.c.l.b16 %v3790
        %v4051 = vunpack.c.l.b16 %v3791
        %v4052 = vunpack.c.l.b16 %v3792
        %v4053 = vunpack.c.l.b16 %v3793
        %v4054 = vunpack.c.l.b16 %v3794
        %v4055 = vunpack.c.l.b16 %v3795
        %v4056 = vunpack.c.l.b16 %v3796
        %v4057 = vunpack.c.l.b16 %v3797
        %v4058 = vunpack.c.l.b16 %v3798
        %v4059 = vunpack.c.l.b16 %v3799
        %v4060 = vunpack.c.l.b16 %v3800
        %v4061 = vunpack.c.l.b16 %v3801
        %v4062 = vunpack.c.l.b16 %v3802
        %v4063 = vunpack.c.l.b16 %v3803
        %v4064 = vunpack.c.l.b16 %v3804
        %v4065 = vunpack.c.l.b16 %v3805
        %v4066 = vunpack.c.l.b16 %v3806
        %v4067 = vunpack.c.l.b16 %v3807
        %v4068 = vunpack.c.l.b16 %v3808
        %v4069 = vunpack.c.l.b16 %v3809
        %v4070 = vunpack.c.l.b16 %v3810
        %v4071 = vpack.c.b16 %v3944, %v3943
        %v4072 = vpack.c.b16 %v3946, %v3945
        %v4073 = vpack.c.b16 %v3948, %v3947
        %v4074 = vpack.c.b16 %v3950, %v3949
        %v4075 = vpack.c.b16 %v3952, %v3951
        %v4076 = vpack.c.b16 %v3954, %v3953
        %v4077 = vpack.c.b16 %v3956, %v3955
        %v4078 = vpack.c.b16 %v3958, %v3957
        %v4079 = vpack.c.b16 %v3960, %v3959
        %v4080 = vpack.c.b16 %v3962, %v3961
        %v4081 = vpack.c.b16 %v3964, %v3963
        %v4082 = vpack.c.b16 %v3966, %v3965
        %v4083 = vpack.c.b16 %v3968, %v3967
        %v4084 = vpack.c.b16 %v3970, %v3969
        %v4085 = vpack.c.b16 %v3972, %v3971
        %v4086 = vpack.c.b16 %v3974, %v3973
        %v4087 = vpack.c.b16 %v3976, %v3975
        %v4088 = vpack.c.b16 %v3978, %v3977
        %v4089 = vpack.c.b16 %v3980, %v3979
        %v4090 = vpack.c.b16 %v3982, %v3981
        %v4091 = vpack.c.b16 %v3984, %v3983
        %v4092 = vpack.c.b16 %v3986, %v3985
        %v4093 = vpack.c.b16 %v3988, %v3987
        %v4094 = vpack.c.b16 %v3990, %v3989
        %v4095 = vpack.c.b16 %v3992, %v3991
        %v4096 = vpack.c.b16 %v3994, %v3993
        %v4097 = vpack.c.b16 %v3996, %v3995
        %v4098 = vpack.c.b16 %v3998, %v3997
        %v4099 = vpack.c.b16 %v4000, %v3999
        %v4100 = vpack.c.b16 %v4002, %v4001
        %v4101 = vpack.c.b16 %v4004, %v4003
        %v4102 = vpack.c.b16 %v4006, %v4005
        %v4103 = vpack.c.b16 %v4008, %v4007
        %v4104 = vpack.c.b16 %v4010, %v4009
        %v4105 = vpack.c.b16 %v4012, %v4011
        %v4106 = vpack.c.b16 %v4014, %v4013
        %v4107 = vpack.c.b16 %v4016, %v4015
        %v4108 = vpack.c.b16 %v4018, %v4017
        %v4109 = vpack.c.b16 %v4020, %v4019
        %v4110 = vpack.c.b16 %v4022, %v4021
        %v4111 = vpack.c.b16 %v4024, %v4023
        %v4112 = vpack.c.b16 %v4026, %v4025
        %v4113 = vpack.c.b16 %v4028, %v4027
        %v4114 = vpack.c.b16 %v4030, %v4029
        %v4115 = vpack.c.b16 %v4032, %v4031
        %v4116 = vpack.c.b16 %v4034, %v4033
        %v4117 = vpack.c.b16 %v4036, %v4035
        %v4118 = vpack.c.b16 %v4038, %v4037
        %v4119 = vpack.c.b16 %v4040, %v4039
        %v4120 = vpack.c.b16 %v4042, %v4041
        %v4121 = vpack.c.b16 %v4044, %v4043
        %v4122 = vpack.c.b16 %v4046, %v4045
        %v4123 = vpack.c.b16 %v4048, %v4047
        %v4124 = vpack.c.b16 %v4050, %v4049
        %v4125 = vpack.c.b16 %v4052, %v4051
        %v4126 = vpack.c.b16 %v4054, %v4053
        %v4127 = vpack.c.b16 %v4056, %v4055
        %v4128 = vpack.c.b16 %v4058, %v4057
        %v4129 = vpack.c.b16 %v4060, %v4059
        %v4130 = vpack.c.b16 %v4062, %v4061
        %v4131 = vpack.c.b16 %v4064, %v4063
        %v4132 = vpack.c.b16 %v4066, %v4065
        %v4133 = vpack.c.b16 %v4068, %v4067
        %v4134 = vpack.c.b16 %v4070, %v4069
        %4199 = vmatpush.bf16.msra.mxu0 %v4078
        %4200 = vmatpush.bf16.msra.mxu0 %v4077
        %4201 = vmatpush.bf16.msra.mxu0 %v4076
        %4202 = vmatpush.bf16.msra.mxu0 %v4075
        %4203 = vmatpush.bf16.msra.mxu0 %v4074
        %4204 = vmatpush.bf16.msra.mxu0 %v4073
        %4205 = vmatpush.bf16.msra.mxu0 %v4072
        %4206 = vmatpush.bf16.msra.mxu0 %v4071
        %4207 = vmatmul.bf16.gmra.mxu0 %v3675
        %v4208 = vpop.f32.mrf.mxu0
        %v4209 = vadd.f32 %v3813, %v4208
        %v4210 = vpop.f32.mrf.mxu0
        %4211 = vdwg.mxu0
        %4212 = vmatpush.bf16.msra.mxu0 %v4086
        %4213 = vmatpush.bf16.msra.mxu0 %v4085
        %4214 = vmatpush.bf16.msra.mxu0 %v4084
        %4215 = vmatpush.bf16.msra.mxu0 %v4083
        %4216 = vmatpush.bf16.msra.mxu0 %v4082
        %4217 = vmatpush.bf16.msra.mxu0 %v4081
        %4218 = vmatpush.bf16.msra.mxu0 %v4080
        %4219 = vmatpush.bf16.msra.mxu0 %v4079
        %4220 = vmatmul.bf16.gmra.mxu0 %v3676
        %v4221 = vpop.f32.mrf.mxu0
        %v4222 = vadd.f32 %v4209, %v4221
        %v4223 = vpop.f32.mrf.mxu0
        %4224 = vdwg.mxu0
        %4225 = vmatpush.bf16.msra.mxu0 %v4094
        %4226 = vmatpush.bf16.msra.mxu0 %v4093
        %4227 = vmatpush.bf16.msra.mxu0 %v4092
        %4228 = vmatpush.bf16.msra.mxu0 %v4091
        %4229 = vmatpush.bf16.msra.mxu0 %v4090
        %4230 = vmatpush.bf16.msra.mxu0 %v4089
        %4231 = vmatpush.bf16.msra.mxu0 %v4088
        %4232 = vmatpush.bf16.msra.mxu0 %v4087
        %4233 = vmatmul.bf16.gmra.mxu0 %v3677
        %v4234 = vpop.f32.mrf.mxu0
        %v4235 = vadd.f32 %v4222, %v4234
        %v4236 = vpop.f32.mrf.mxu0
        %4237 = vdwg.mxu0
        %4238 = vmatpush.bf16.msra.mxu0 %v4102
        %4239 = vmatpush.bf16.msra.mxu0 %v4101
        %4240 = vmatpush.bf16.msra.mxu0 %v4100
        %4241 = vmatpush.bf16.msra.mxu0 %v4099
        %4242 = vmatpush.bf16.msra.mxu0 %v4098
        %4243 = vmatpush.bf16.msra.mxu0 %v4097
        %4244 = vmatpush.bf16.msra.mxu0 %v4096
        %4245 = vmatpush.bf16.msra.mxu0 %v4095
        %4246 = vmatmul.bf16.gmra.mxu0 %v3678
        %v4247 = vpop.f32.mrf.mxu0
        %v4248 = vadd.f32 %v4235, %v4247
        %v4249 = vpop.f32.mrf.mxu0
        %4250 = vdwg.mxu0
        %4251 = vmatpush.bf16.msra.mxu0 %v4110
        %4252 = vmatpush.bf16.msra.mxu0 %v4109
        %4253 = vmatpush.bf16.msra.mxu0 %v4108
        %4254 = vmatpush.bf16.msra.mxu0 %v4107
        %4255 = vmatpush.bf16.msra.mxu0 %v4106
        %4256 = vmatpush.bf16.msra.mxu0 %v4105
        %4257 = vmatpush.bf16.msra.mxu0 %v4104
        %4258 = vmatpush.bf16.msra.mxu0 %v4103
        %4259 = vmatmul.bf16.gmra.mxu0 %v3679
        %v4260 = vpop.f32.mrf.mxu0
        %v4261 = vadd.f32 %v4248, %v4260
        %v4262 = vpop.f32.mrf.mxu0
        %4263 = vdwg.mxu0
        %4264 = vmatpush.bf16.msra.mxu0 %v4118
        %4265 = vmatpush.bf16.msra.mxu0 %v4117
        %4266 = vmatpush.bf16.msra.mxu0 %v4116
        %4267 = vmatpush.bf16.msra.mxu0 %v4115
        %4268 = vmatpush.bf16.msra.mxu0 %v4114
        %4269 = vmatpush.bf16.msra.mxu0 %v4113
        %4270 = vmatpush.bf16.msra.mxu0 %v4112
        %4271 = vmatpush.bf16.msra.mxu0 %v4111
        %4272 = vmatmul.bf16.gmra.mxu0 %v3680
        %v4273 = vpop.f32.mrf.mxu0
        %v4274 = vadd.f32 %v4261, %v4273
        %v4275 = vpop.f32.mrf.mxu0
        %4276 = vdwg.mxu0
        %4277 = vmatpush.bf16.msra.mxu0 %v4126
        %4278 = vmatpush.bf16.msra.mxu0 %v4125
        %4279 = vmatpush.bf16.msra.mxu0 %v4124
        %4280 = vmatpush.bf16.msra.mxu0 %v4123
        %4281 = vmatpush.bf16.msra.mxu0 %v4122
        %4282 = vmatpush.bf16.msra.mxu0 %v4121
        %4283 = vmatpush.bf16.msra.mxu0 %v4120
        %4284 = vmatpush.bf16.msra.mxu0 %v4119
        %4285 = vmatmul.bf16.gmra.mxu0 %v3681
        %v4286 = vpop.f32.mrf.mxu0
        %v4287 = vadd.f32 %v4274, %v4286
        %v4288 = vpop.f32.mrf.mxu0
        %4289 = vdwg.mxu0
        %4290 = vmatpush.bf16.msra.mxu0 %v4134
        %4291 = vmatpush.bf16.msra.mxu0 %v4133
        %4292 = vmatpush.bf16.msra.mxu0 %v4132
        %4293 = vmatpush.bf16.msra.mxu0 %v4131
        %4294 = vmatpush.bf16.msra.mxu0 %v4130
        %4295 = vmatpush.bf16.msra.mxu0 %v4129
        %4296 = vmatpush.bf16.msra.mxu0 %v4128
        %4297 = vmatpush.bf16.msra.mxu0 %v4127
        %4298 = vmatmul.bf16.gmra.mxu0 %v3682
        %v4299 = vpop.f32.mrf.mxu0
        %v4300 = vadd.f32 %v4287, %v4299
        %v4301 = vpop.f32.mrf.mxu0
        %4302 = vdwg.mxu0
        %v4303 = vtanh.pop %v4300
        %vm4304 = vcmask 523264
        %4305 = vst.msk [vmem:[%s442] sm:$0xff] %vm4304, %v4303
        %p4306 = scmp.lt.s32.totalorder %s24, 1
        %s4307 = scalar_select %p4306, %s24, 1
        %s4308 = smul.addr %s4307, 8
        %s4309 = scalar_lea.vmem %s12, %s4308
        // Predicated region
        $region73: #{generator_forward.1} parent=67 // pred_check
          %p4310 = pneg %p304
        $region74: #{generator_forward.1} parent=67 // pred_check_branch
          %4312 = sbr.rel (%p4310) target = $region76
        $region75: #{generator_forward.1} parent=67 // pred_region
          _
        $region76: #{generator_forward.1} parent=67 // pred_fallthru
          _
      $region68: #{generator_forward.1} parent=5 // pred_fallthru
        _
      %p4313 = scmp.le.s32.totalorder 2, %s19
      // Predicated region
      $region77: #{generator_forward.1} parent=5 // pred_check
        %p4314 = pneg %p4313
      $region78: #{generator_forward.1} parent=5 // pred_check_branch
        %4316 = sbr.rel (%p4314) target = $region80
      $region79: #{generator_forward.1} parent=5 // pred_region
        %s4317 = ssub.s32 %s19, 2
        // Predicated region
        $region81: #{generator_forward.1} parent=79 // pred_check
          %p4318 = pneg %p310
        $region82: #{generator_forward.1} parent=79 // pred_check_branch
          %4320 = sbr.rel (%p4318) target = $region84
        $region83: #{generator_forward.1} parent=79 // pred_region
          %p4321 = scmp.lt.s32.totalorder %s25, 1
          %s4322 = scalar_select %p4321, %s25, 1
          %s4323 = smul.addr %s4322, 8
          %s4324 = scalar_lea.vmem %s12, %s4323
        $region84: #{generator_forward.1} parent=79 // pred_fallthru
          _
      $region80: #{generator_forward.1} parent=5 // pred_fallthru
        _
    $region6: #{generator_forward.1} parent=1 // loop_footer
      %s23 = sadd.s32 1, %s19
    $region7: #{generator_forward.1} parent=1 // loop_footer_branch
      %18 = sbr.rel target = $region3
    $region8: #{generator_forward.1} parent=1 // loop_exit
      _
    %4325 = vsyncpa [#allocation3], 1
    %s4326 = scalar_lea.sflag [#allocation3], 1
    %4327 = vsyncpa %s4326, 1

</llo_original>
